<compile_context>
chip_gen: v7x
topology: tpu7x:2x2x1
jax: 0.10.0
libtpu: 0.0.40
codegen_flags: <defaults>
</compile_context>

<pallas_src>
import functools

import jax
import jax.numpy as jnp
from jax.experimental import pallas as pl
from jax.experimental.pallas import tpu as pltpu


_NEG_SENTINEL = 1e8    # sentinel PyTorch adds to masked-out negatives
_SENT_SQ = 1e16        # same sentinel in squared-distance space (sqrt -> 1e8)


def _round_up(v, m):
    return ((v + m - 1) // m) * m


def _semantic_cbm_kernel(
        # inputs
        wv_ref, xr_ref, xc2_ref, w_ref, b_ref, raux_ref, caux_ref,
        # outputs
        diff_ref, sem_ref,
        # scratch
        ssq_sc, fp_sc, cn_sc,
        *, block_rows, block_cols, h_eps, fc_bf16, dist_bf16):
    i = pl.program_id(0)          # batch-row block
    j = pl.program_id(1)          # batch-column block (streamed reduction)
    last_j = pl.num_programs(1) - 1
    n_lane_groups = block_cols // 128

    # ---- first column step: fc projection + alpha-mix for this row block ----
    @pl.when(j == 0)
    def _():
        wv = wv_ref[...]                                   # (BR, Wv)
        w = w_ref[...]                                     # (H, Wv)  nn.Linear layout
        if fc_bf16:
            wv = wv.astype(jnp.bfloat16)
            w = w.astype(jnp.bfloat16)
        # sem_org = wv @ W^T + b  (contract dim 1 of both; no wrapper transpose)
        sem_org = jax.lax.dot_general(
            wv, w, (((1,), (1,)), ((), ())),
            preferred_element_type=jnp.float32) + b_ref[...]
        alpha = raux_ref[:, 0:1]                           # (BR, 1)
        sem = alpha * sem_org + (1.0 - alpha) * xr_ref[...]
        # sem out-block index is constant along j -> VMEM-resident; reuse it as
        # the row-block cache instead of a separate scratch.
        sem_ref[...] = sem
        # ||sem_i||^2 hoisted out of the column loop (invariant along j).
        ssq_sc[...] = jnp.sum(sem * sem, axis=1, keepdims=True)
        fp_sc[...] = jnp.zeros_like(fp_sc)
        cn_sc[...] = jnp.full_like(cn_sc, _SENT_SQ)

    # ---- distance tile: rows = sem (row block i), cols = x (column block j) ----
    sem = sem_ref[...]                                     # (BR, Hp) f32
    xc2 = xc2_ref[...]                                     # (BC, Hp) f32, pre-scaled by 2
    if dist_bf16:
        cross2 = jax.lax.dot_general(                      # (BR, BC) MXU (bf16 in, f32 acc)
            sem.astype(jnp.bfloat16), xc2.astype(jnp.bfloat16),
            (((1,), (1,)), ((), ())), preferred_element_type=jnp.float32)
    else:
        cross2 = jax.lax.dot_general(                      # (BR, BC) MXU, f32
            sem, xc2, (((1,), (1,)), ((), ())),
            preferred_element_type=jnp.float32)
    x_sq = caux_ref[1:2, :]                                # (1, BC) precomputed ||x_j||^2
    # squared ||a-b||^2 expansion; max(.,0) guards f32 cancellation. sqrt deferred.
    sq = jnp.maximum(ssq_sc[...] + x_sq - cross2, 0.0)

    # ---- masks (labels travel as f32; exact for |label| < 2^24 class IDs) ----
    lab_r = raux_ref[:, 1:2]                               # (BR, 1)
    lab_c = caux_ref[0:1, :]                               # (1, BC); padded cols = -1
    same = lab_r == lab_c                                  # (BR, BC) bool

    # closest negative (squared), lane-wise running min (pure VPU inner work;
    # padded cols carry x_sq = _SENT_SQ so they never win the min).
    neg = jnp.where(same, _SENT_SQ, sq)
    cn = cn_sc[...]
    for c in range(n_lane_groups):
        cn = jnp.minimum(cn, neg[:, c * 128:(c + 1) * 128])
    cn_sc[...] = cn

    # furthest positive (squared), lane-wise running max; self-exclusion mask
    # (and its iotas) only built on tiles whose row/col ranges overlap.
    def _accum_fp(pos_mask):
        masked = jnp.where(pos_mask, sq, 0.0)
        fp = fp_sc[...]
        for c in range(n_lane_groups):
            fp = jnp.maximum(fp, masked[:, c * 128:(c + 1) * 128])
        fp_sc[...] = fp

    diag = jnp.logical_and(i * block_rows < (j + 1) * block_cols,
                           j * block_cols < (i + 1) * block_rows)

    @pl.when(diag)
    def _():
        row_g = i * block_rows + jax.lax.broadcasted_iota(
            jnp.int32, (block_rows, block_cols), 0)
        col_g = j * block_cols + jax.lax.broadcasted_iota(
            jnp.int32, (block_rows, block_cols), 1)
        _accum_fp(jnp.logical_and(same, row_g != col_g))

    @pl.when(jnp.logical_not(diag))
    def _():
        _accum_fp(same)

    # ---- last column step: cross-lane reduce, sqrt, softplus, lane-dense store ----
    @pl.when(j == last_j)
    def _():
        fp = jnp.sqrt(jnp.max(fp_sc[...], axis=1, keepdims=True) + h_eps)
        cn = jnp.sqrt(jnp.min(cn_sc[...], axis=1, keepdims=True) + h_eps)
        d = fp - cn
        # PyTorch F.softplus (beta=1, threshold=20)
        sp = jnp.where(d > 20.0, d, jnp.log1p(jnp.exp(jnp.minimum(d, 20.0))))
        # broadcast across 128 lanes -> unmasked, lane-dense stores
        diff_ref[...] = jnp.broadcast_to(sp, (block_rows, 128))


def semantic_cbm_forward(x, wv, label, fc_weight, fc_bias, alpha,
                         *, fc_bf16=False, dist_bf16=False):
    """K == 0 path of SemanticCBM.forward.

    x:         (B, num_hashing) features
    wv:        (B, wv_size) word vectors
    label:     (B,) integer labels (assumed >= 0, < 2^24)
    fc_weight: (num_hashing, wv_size)  -- PyTorch nn.Linear layout (NOT transposed)
    fc_bias:   (num_hashing,)
    alpha:     (B, 1) uniform draws (torch.rand equivalent, drawn by the caller)
    fc_bf16:   cast fc-matmul inputs to bf16 (MXU); accumulation stays f32.
    dist_bf16: cast the distance cross-term matmul inputs to bf16 (validate vs
               a HIGHEST-precision reference before enabling by default).
    """
    B, H = x.shape
    Wv = wv.shape[1]
    f32 = jnp.float32

    # Lane-dense padding of the feature dims.
    H_pad = _round_up(H, 128)
    Wv_pad = _round_up(Wv, 128)

    # Tiles first, then pad the batch up to a multiple of them.  block_cols is
    # a multiple of block_rows, so lcm == block_cols and padded columns land
    # only in the last column block (neutralised with data below).
    block_rows = 256
    block_cols = 512
    B_pad = _round_up(B, block_cols)
    grid = (B_pad // block_rows, B_pad // block_cols)

    xf = x.astype(f32)
    xp = jnp.pad(xf, ((0, B_pad - B), (0, H_pad - H)))
    xc2 = 2.0 * xp              # column-side x pre-scaled by 2 (folds the 2.0* out)
    wvp = jnp.pad(wv.astype(f32), ((0, B_pad - B), (0, Wv_pad - Wv)))
    # fc weight kept resident in (out,in) layout; bias/weight zero-padded so
    # padded feature columns of sem are exactly zero.
    wp = jnp.pad(fc_weight.astype(f32), ((0, H_pad - H), (0, Wv_pad - Wv)))
    bp = jnp.pad(fc_bias.astype(f32), (0, H_pad - H)).reshape(1, H_pad)

    lab_f = label.astype(f32)   # exact for |label| < 2^24 (class IDs)
    # per-row scalars packed into one aux input: [:, 0] = alpha, [:, 1] = label
    row_aux = jnp.pad(
        jnp.concatenate([alpha.reshape(B, 1).astype(f32), lab_f.reshape(B, 1)], axis=1),
        ((0, B_pad - B), (0, 0)))
    # per-column scalars, lane-dense: row 0 = label (padded cols -> -1, never a
    # "same identity"), row 1 = ||x_j||^2 (padded cols -> squared sentinel, so
    # they never win the closest-negative min).  No col_valid mask needed.
    x_sq = jnp.sum(xf * xf, axis=1)
    col_aux = jnp.stack([
        jnp.pad(lab_f, (0, B_pad - B), constant_values=-1.0),
        jnp.pad(x_sq, (0, B_pad - B), constant_values=_SENT_SQ)], axis=0)

    kernel = functools.partial(
        _semantic_cbm_kernel,
        block_rows=block_rows, block_cols=block_cols,
        h_eps=float(H) * 1e-16, fc_bf16=fc_bf16, dist_bf16=dist_bf16)

    diff2d, sem = pl.pallas_call(
        kernel,
        out_shape=(jax.ShapeDtypeStruct((B_pad, 128), f32),
                   jax.ShapeDtypeStruct((B_pad, H_pad), f32)),
        grid=grid,
        in_specs=[
            pl.BlockSpec((block_rows, Wv_pad), lambda i, j: (i, 0)),   # wv
            pl.BlockSpec((block_rows, H_pad), lambda i, j: (i, 0)),    # x (row side)
            pl.BlockSpec((block_cols, H_pad), lambda i, j: (j, 0)),    # 2*x (column side)
            pl.BlockSpec((H_pad, Wv_pad), lambda i, j: (0, 0)),        # fc weight (out,in)
            pl.BlockSpec((1, H_pad), lambda i, j: (0, 0)),             # fc bias
            pl.BlockSpec((block_rows, 2), lambda i, j: (i, 0)),        # [alpha, label] rows
            pl.BlockSpec((2, block_cols), lambda i, j: (0, j)),        # [label, ||x||^2] cols
        ],
        out_specs=(
            pl.BlockSpec((block_rows, 128), lambda i, j: (i, 0)),      # diff (lane-dense)
            pl.BlockSpec((block_rows, H_pad), lambda i, j: (i, 0)),    # sem (resident)
        ),
        scratch_shapes=[
            pltpu.VMEM((block_rows, 1), f32),     # ||sem_i||^2 (hoisted)
            pltpu.VMEM((block_rows, 128), f32),   # running furthest positive (squared)
            pltpu.VMEM((block_rows, 128), f32),   # running closest negative (squared)
        ],
        compiler_params=pltpu.CompilerParams(
            dimension_semantics=("parallel", "arbitrary"),
            # footprint ~6-8 MiB with 256x512 tiles; 32 MiB leaves headroom on
            # every generation without over-constraining v7x's 64 MiB VMEM.
            vmem_limit_bytes=32 * 1024 * 1024),
    )(wvp, xp, xc2, wp, bp, row_aux, col_aux)

    return diff2d[:B, 0], sem[:B, :H]


if __name__ == "__main__":
    key = jax.random.PRNGKey(0)
    # B=260 pads to 512 -> grid (2, 1): exercises multiple row blocks, the
    # diagonal-overlap mask specialisation and the padded-column handling.
    B, wv_size, num_hashing = 260, 32, 32

    k1, k2, k3, k4, k5, k6 = jax.random.split(key, 6)
    x = jax.random.normal(k1, (B, num_hashing), jnp.float32)
    wv = jax.random.normal(k2, (B, wv_size), jnp.float32)
    label = jax.random.randint(k3, (B,), 0, 4, jnp.int32)

    fc_weight = jax.random.normal(k4, (num_hashing, wv_size), jnp.float32) / jnp.sqrt(
        jnp.float32(wv_size))
    fc_bias = 0.01 * jax.random.normal(k5, (num_hashing,), jnp.float32)
    alpha = jax.random.uniform(k6, (B, 1), jnp.float32)   # torch.rand(x.size(0), 1)

    diff, sem = semantic_cbm_forward(x, wv, label, fc_weight, fc_bias, alpha)
    jax.block_until_ready((diff, sem))
    assert diff.shape == (B,) and sem.shape == (B, num_hashing)

    # Pure-JAX reference (same distance expansion) for a blocking/masking check.
    hi = jax.lax.Precision.HIGHEST
    sem_exp = alpha * (jnp.dot(wv, fc_weight.T, precision=hi) + fc_bias) + (1.0 - alpha) * x
    sq_ref = (jnp.sum(sem_exp * sem_exp, axis=1, keepdims=True)
              + jnp.sum(x * x, axis=1)[None, :]
              - 2.0 * jnp.dot(sem_exp, x.T, precision=hi))
    dists_ref = jnp.sqrt(jnp.maximum(sq_ref, 0.0) + num_hashing * 1e-16)
    same_ref = label[:, None] == label[None, :]
    eye_ref = jnp.eye(B, dtype=bool)
    fp_ref = jnp.max(jnp.where(same_ref & ~eye_ref, dists_ref, 0.0), axis=1)
    cn_ref = jnp.min(jnp.where(same_ref, _NEG_SENTINEL, dists_ref), axis=1)
    diff_exp = jax.nn.softplus(fp_ref - cn_ref)

    # Loose tolerance to absorb MXU f32-emulation differences; logic errors are O(1).
    assert jnp.allclose(sem, sem_exp, rtol=5e-2, atol=5e-2)
    assert jnp.allclose(diff, diff_exp, rtol=5e-2, atol=5e-2)
    print("KERNEL_OK")
</pallas_src>

<mosaic_0001>
module attributes {stable_mosaic.version = 11 : i64} {
  func.func @_semantic_cbm_kernel(%arg0: i32, %arg1: i32, %arg2: memref<256x128xf32, #tpu.memory_space<vmem>>, %arg3: memref<256x128xf32, #tpu.memory_space<vmem>>, %arg4: memref<512x128xf32, #tpu.memory_space<vmem>>, %arg5: memref<128x128xf32, #tpu.memory_space<vmem>>, %arg6: memref<1x128xf32, #tpu.memory_space<vmem>>, %arg7: memref<256x2xf32, #tpu.memory_space<vmem>>, %arg8: memref<2x512xf32, #tpu.memory_space<vmem>>, %arg9: memref<256x128xf32, #tpu.memory_space<vmem>>, %arg10: memref<256x128xf32, #tpu.memory_space<vmem>>, %arg11: memref<256x1xf32, #tpu.memory_space<vmem>>, %arg12: memref<256x128xf32, #tpu.memory_space<vmem>>, %arg13: memref<256x128xf32, #tpu.memory_space<vmem>>) attributes {dimension_semantics = [#tpu.dimension_semantics<parallel>, #tpu.dimension_semantics<arbitrary>], iteration_bounds = array<i64: 2, 1>, scalar_prefetch = 0 : i64, scratch_operands = 3 : i64, tpu.core_type = #tpu.core_type<tc>, window_params = [{transform_indices = @transform_0, window_bounds = array<i64: 256, 128>}, {transform_indices = @transform_1, window_bounds = array<i64: 256, 128>}, {transform_indices = @transform_2, window_bounds = array<i64: 512, 128>}, {pipeline_mode = #tpu.pipeline_mode<synchronous>, transform_indices = @transform_3, window_bounds = array<i64: 128, 128>}, {pipeline_mode = #tpu.pipeline_mode<synchronous>, transform_indices = @transform_4, window_bounds = array<i64: 1, 128>}, {transform_indices = @transform_5, window_bounds = array<i64: 256, 2>}, {transform_indices = @transform_6, window_bounds = array<i64: 2, 512>}, {transform_indices = @transform_7, window_bounds = array<i64: 256, 128>}, {transform_indices = @transform_8, window_bounds = array<i64: 256, 128>}]} {
    %c0_i32 = arith.constant 0 : i32
    %0 = arith.cmpi eq, %arg1, %c0_i32 : i32
    %1 = arith.extui %0 : i1 to i32
    %c0_i32_0 = arith.constant 0 : i32
    %2 = arith.cmpi ne, %1, %c0_i32_0 : i32
    scf.if %2 {
      %c0_24 = arith.constant 0 : index
      %c0_25 = arith.constant 0 : index
      %48 = vector.load %arg2[%c0_24, %c0_25] : memref<256x128xf32, #tpu.memory_space<vmem>>, vector<256x128xf32>
      %c0_26 = arith.constant 0 : index
      %c0_27 = arith.constant 0 : index
      %49 = vector.load %arg5[%c0_26, %c0_27] : memref<128x128xf32, #tpu.memory_space<vmem>>, vector<128x128xf32>
      %cst_28 = arith.constant dense<0.000000e+00> : vector<256x128xf32>
      %50 = tpu.matmul %48, %49, %cst_28 {dimension_numbers = #tpu.dot_dimension_numbers<[1], [1], [0], [0], [0, 0, 1, 0], [], []>} : vector<256x128xf32>, vector<128x128xf32>, vector<256x128xf32> -> vector<256x128xf32>
      %c0_29 = arith.constant 0 : index
      %c0_30 = arith.constant 0 : index
      %51 = vector.load %arg6[%c0_29, %c0_30] : memref<1x128xf32, #tpu.memory_space<vmem>>, vector<1x128xf32>
      %52 = vector.broadcast %51 : vector<1x128xf32> to vector<256x128xf32>
      %53 = arith.addf %50, %52 : vector<256x128xf32>
      %c0_31 = arith.constant 0 : index
      %c0_32 = arith.constant 0 : index
      %54 = vector.load %arg7[%c0_31, %c0_32] : memref<256x2xf32, #tpu.memory_space<vmem>>, vector<256x1xf32>
      %55 = vector.broadcast %54 : vector<256x1xf32> to vector<256x128xf32>
      %56 = arith.mulf %55, %53 : vector<256x128xf32>
      %cst_33 = arith.constant 1.000000e+00 : f32
      %57 = vector.broadcast %cst_33 : f32 to vector<256x1xf32>
      %58 = arith.subf %57, %54 : vector<256x1xf32>
      %c0_34 = arith.constant 0 : index
      %c0_35 = arith.constant 0 : index
      %59 = vector.load %arg3[%c0_34, %c0_35] : memref<256x128xf32, #tpu.memory_space<vmem>>, vector<256x128xf32>
      %60 = vector.broadcast %58 : vector<256x1xf32> to vector<256x128xf32>
      %61 = arith.mulf %60, %59 : vector<256x128xf32>
      %62 = arith.addf %56, %61 : vector<256x128xf32>
      %c0_36 = arith.constant 0 : index
      %c0_37 = arith.constant 0 : index
      %63 = vector.load %arg10[%c0_36, %c0_37] : memref<256x128xf32, #tpu.memory_space<vmem>>, vector<256x128xf32>
      tpu.vector_store %arg10[%c0_36, %c0_37], %62 {strides = array<i32>} : memref<256x128xf32, #tpu.memory_space<vmem>>, vector<256x128xf32>,
      %64 = arith.mulf %62, %62 : vector<256x128xf32>
      %cst_38 = arith.constant dense<0.000000e+00> : vector<256xf32>
      %65 = vector.multi_reduction <add>, %64, %cst_38 [1] : vector<256x128xf32> to vector<256xf32>
      %66 = vector.shape_cast %65 : vector<256xf32> to vector<256x1xf32>
      %c0_39 = arith.constant 0 : index
      %c0_40 = arith.constant 0 : index
      %67 = vector.load %arg11[%c0_39, %c0_40] : memref<256x1xf32, #tpu.memory_space<vmem>>, vector<256x1xf32>
      tpu.vector_store %arg11[%c0_39, %c0_40], %66 {strides = array<i32>} : memref<256x1xf32, #tpu.memory_space<vmem>>, vector<256x1xf32>,
      %cst_41 = arith.constant 0.000000e+00 : f32
      %68 = vector.broadcast %cst_41 : f32 to vector<256x128xf32>
      %c0_42 = arith.constant 0 : index
      %c0_43 = arith.constant 0 : index
      %69 = vector.load %arg12[%c0_42, %c0_43] : memref<256x128xf32, #tpu.memory_space<vmem>>, vector<256x128xf32>
      tpu.vector_store %arg12[%c0_42, %c0_43], %68 {strides = array<i32>} : memref<256x128xf32, #tpu.memory_space<vmem>>, vector<256x128xf32>,
      %cst_44 = arith.constant 1.000000e+16 : f32
      %70 = vector.broadcast %cst_44 : f32 to vector<256x128xf32>
      %c0_45 = arith.constant 0 : index
      %c0_46 = arith.constant 0 : index
      %71 = vector.load %arg13[%c0_45, %c0_46] : memref<256x128xf32, #tpu.memory_space<vmem>>, vector<256x128xf32>
      tpu.vector_store %arg13[%c0_45, %c0_46], %70 {strides = array<i32>} : memref<256x128xf32, #tpu.memory_space<vmem>>, vector<256x128xf32>,
    } else {
    }
    %c0 = arith.constant 0 : index
    %c0_1 = arith.constant 0 : index
    %3 = vector.load %arg10[%c0, %c0_1] : memref<256x128xf32, #tpu.memory_space<vmem>>, vector<256x128xf32>
    %c0_2 = arith.constant 0 : index
    %c0_3 = arith.constant 0 : index
    %4 = vector.load %arg4[%c0_2, %c0_3] : memref<512x128xf32, #tpu.memory_space<vmem>>, vector<512x128xf32>
    %cst = arith.constant dense<0.000000e+00> : vector<256x512xf32>
    %5 = tpu.matmul %3, %4, %cst {dimension_numbers = #tpu.dot_dimension_numbers<[1], [1], [0], [0], [0, 0, 1, 0], [], []>} : vector<256x128xf32>, vector<512x128xf32>, vector<256x512xf32> -> vector<256x512xf32>
    %c1 = arith.constant 1 : index
    %c0_4 = arith.constant 0 : index
    %6 = vector.load %arg8[%c1, %c0_4] : memref<2x512xf32, #tpu.memory_space<vmem>>, vector<1x512xf32>
    %c0_5 = arith.constant 0 : index
    %c0_6 = arith.constant 0 : index
    %7 = vector.load %arg11[%c0_5, %c0_6] : memref<256x1xf32, #tpu.memory_space<vmem>>, vector<256x1xf32>
    %8 = vector.broadcast %7 : vector<256x1xf32> to vector<256x512xf32>
    %9 = vector.broadcast %6 : vector<1x512xf32> to vector<256x512xf32>
    %10 = arith.addf %8, %9 : vector<256x512xf32>
    %11 = arith.subf %10, %5 : vector<256x512xf32>
    %cst_7 = arith.constant 0.000000e+00 : f32
    %12 = vector.broadcast %cst_7 : f32 to vector<256x512xf32>
    %13 = arith.maximumf %11, %12 : vector<256x512xf32>
    %c0_8 = arith.constant 0 : index
    %c1_9 = arith.constant 1 : index
    %14 = vector.load %arg7[%c0_8, %c1_9] : memref<256x2xf32, #tpu.memory_space<vmem>>, vector<256x1xf32>
    %c0_10 = arith.constant 0 : index
    %c0_11 = arith.constant 0 : index
    %15 = vector.load %arg8[%c0_10, %c0_11] : memref<2x512xf32, #tpu.memory_space<vmem>>, vector<1x512xf32>
    %16 = vector.broadcast %14 : vector<256x1xf32> to vector<256x512xf32>
    %17 = vector.broadcast %15 : vector<1x512xf32> to vector<256x512xf32>
    %18 = arith.cmpf oeq, %16, %17 : vector<256x512xf32>
    %cst_12 = arith.constant 1.000000e+16 : f32
    %19 = vector.broadcast %cst_12 : f32 to vector<256x512xf32>
    %20 = arith.select %18, %19, %13 : vector<256x512xi1>, vector<256x512xf32>
    %c0_13 = arith.constant 0 : index
    %c0_14 = arith.constant 0 : index
    %21 = vector.load %arg13[%c0_13, %c0_14] : memref<256x128xf32, #tpu.memory_space<vmem>>, vector<256x128xf32>
    %22 = vector.extract_strided_slice %20 {offsets = [0, 0], sizes = [256, 128], strides = [1, 1]} : vector<256x512xf32> to vector<256x128xf32>
    %23 = arith.minimumf %21, %22 : vector<256x128xf32>
    %24 = vector.extract_strided_slice %20 {offsets = [0, 128], sizes = [256, 128], strides = [1, 1]} : vector<256x512xf32> to vector<256x128xf32>
    %25 = arith.minimumf %23, %24 : vector<256x128xf32>
    %26 = vector.extract_strided_slice %20 {offsets = [0, 256], sizes = [256, 128], strides = [1, 1]} : vector<256x512xf32> to vector<256x128xf32>
    %27 = arith.minimumf %25, %26 : vector<256x128xf32>
    %28 = vector.extract_strided_slice %20 {offsets = [0, 384], sizes = [256, 128], strides = [1, 1]} : vector<256x512xf32> to vector<256x128xf32>
    %29 = arith.minimumf %27, %28 : vector<256x128xf32>
    %c0_15 = arith.constant 0 : index
    %c0_16 = arith.constant 0 : index
    %30 = vector.load %arg13[%c0_15, %c0_16] : memref<256x128xf32, #tpu.memory_space<vmem>>, vector<256x128xf32>
    tpu.vector_store %arg13[%c0_15, %c0_16], %29 {strides = array<i32>} : memref<256x128xf32, #tpu.memory_space<vmem>>, vector<256x128xf32>,
    %c256_i32 = arith.constant 256 : i32
    %31 = arith.muli %arg0, %c256_i32 : i32
    %c1_i32 = arith.constant 1 : i32
    %32 = arith.addi %arg1, %c1_i32 : i32
    %c512_i32 = arith.constant 512 : i32
    %33 = arith.muli %32, %c512_i32 : i32
    %34 = arith.cmpi slt, %31, %33 : i32
    %c512_i32_17 = arith.constant 512 : i32
    %35 = arith.muli %arg1, %c512_i32_17 : i32
    %c1_i32_18 = arith.constant 1 : i32
    %36 = arith.addi %arg0, %c1_i32_18 : i32
    %c256_i32_19 = arith.constant 256 : i32
    %37 = arith.muli %36, %c256_i32_19 : i32
    %38 = arith.cmpi slt, %35, %37 : i32
    %39 = arith.andi %34, %38 : i1
    %40 = arith.extui %39 : i1 to i32
    %c0_i32_20 = arith.constant 0 : i32
    %41 = arith.cmpi ne, %40, %c0_i32_20 : i32
    scf.if %41 {
      %c256_i32_24 = arith.constant 256 : i32
      %48 = arith.muli %arg0, %c256_i32_24 : i32
      %49 = tpu.iota {dimensions = array<i32: 0>} : vector<256x512xi32>
      %50 = vector.broadcast %48 : i32 to vector<256x512xi32>
      %51 = arith.addi %50, %49 : vector<256x512xi32>
      %c512_i32_25 = arith.constant 512 : i32
      %52 = arith.muli %arg1, %c512_i32_25 : i32
      %53 = tpu.iota {dimensions = array<i32: 1>} : vector<256x512xi32>
      %54 = vector.broadcast %52 : i32 to vector<256x512xi32>
      %55 = arith.addi %54, %53 : vector<256x512xi32>
      %56 = arith.cmpi ne, %51, %55 : vector<256x512xi32>
      %57 = arith.andi %18, %56 : vector<256x512xi1>
      %cst_26 = arith.constant 0.000000e+00 : f32
      %58 = vector.broadcast %cst_26 : f32 to vector<256x512xf32>
      %59 = arith.select %57, %13, %58 : vector<256x512xi1>, vector<256x512xf32>
      %c0_27 = arith.constant 0 : index
      %c0_28 = arith.constant 0 : index
      %60 = vector.load %arg12[%c0_27, %c0_28] : memref<256x128xf32, #tpu.memory_space<vmem>>, vector<256x128xf32>
      %61 = vector.extract_strided_slice %59 {offsets = [0, 0], sizes = [256, 128], strides = [1, 1]} : vector<256x512xf32> to vector<256x128xf32>
      %62 = arith.maximumf %60, %61 : vector<256x128xf32>
      %63 = vector.extract_strided_slice %59 {offsets = [0, 128], sizes = [256, 128], strides = [1, 1]} : vector<256x512xf32> to vector<256x128xf32>
      %64 = arith.maximumf %62, %63 : vector<256x128xf32>
      %65 = vector.extract_strided_slice %59 {offsets = [0, 256], sizes = [256, 128], strides = [1, 1]} : vector<256x512xf32> to vector<256x128xf32>
      %66 = arith.maximumf %64, %65 : vector<256x128xf32>
      %67 = vector.extract_strided_slice %59 {offsets = [0, 384], sizes = [256, 128], strides = [1, 1]} : vector<256x512xf32> to vector<256x128xf32>
      %68 = arith.maximumf %66, %67 : vector<256x128xf32>
      %c0_29 = arith.constant 0 : index
      %c0_30 = arith.constant 0 : index
      %69 = vector.load %arg12[%c0_29, %c0_30] : memref<256x128xf32, #tpu.memory_space<vmem>>, vector<256x128xf32>
      tpu.vector_store %arg12[%c0_29, %c0_30], %68 {strides = array<i32>} : memref<256x128xf32, #tpu.memory_space<vmem>>, vector<256x128xf32>,
    } else {
    }
    %true = arith.constant true
    %42 = arith.xori %39, %true : i1
    %43 = arith.extui %42 : i1 to i32
    %c0_i32_21 = arith.constant 0 : i32
    %44 = arith.cmpi ne, %43, %c0_i32_21 : i32
    scf.if %44 {
      %cst_24 = arith.constant 0.000000e+00 : f32
      %48 = vector.broadcast %cst_24 : f32 to vector<256x512xf32>
      %49 = arith.select %18, %13, %48 : vector<256x512xi1>, vector<256x512xf32>
      %c0_25 = arith.constant 0 : index
      %c0_26 = arith.constant 0 : index
      %50 = vector.load %arg12[%c0_25, %c0_26] : memref<256x128xf32, #tpu.memory_space<vmem>>, vector<256x128xf32>
      %51 = vector.extract_strided_slice %49 {offsets = [0, 0], sizes = [256, 128], strides = [1, 1]} : vector<256x512xf32> to vector<256x128xf32>
      %52 = arith.maximumf %50, %51 : vector<256x128xf32>
      %53 = vector.extract_strided_slice %49 {offsets = [0, 128], sizes = [256, 128], strides = [1, 1]} : vector<256x512xf32> to vector<256x128xf32>
      %54 = arith.maximumf %52, %53 : vector<256x128xf32>
      %55 = vector.extract_strided_slice %49 {offsets = [0, 256], sizes = [256, 128], strides = [1, 1]} : vector<256x512xf32> to vector<256x128xf32>
      %56 = arith.maximumf %54, %55 : vector<256x128xf32>
      %57 = vector.extract_strided_slice %49 {offsets = [0, 384], sizes = [256, 128], strides = [1, 1]} : vector<256x512xf32> to vector<256x128xf32>
      %58 = arith.maximumf %56, %57 : vector<256x128xf32>
      %c0_27 = arith.constant 0 : index
      %c0_28 = arith.constant 0 : index
      %59 = vector.load %arg12[%c0_27, %c0_28] : memref<256x128xf32, #tpu.memory_space<vmem>>, vector<256x128xf32>
      tpu.vector_store %arg12[%c0_27, %c0_28], %58 {strides = array<i32>} : memref<256x128xf32, #tpu.memory_space<vmem>>, vector<256x128xf32>,
    } else {
    }
    %c0_i32_22 = arith.constant 0 : i32
    %45 = arith.cmpi eq, %arg1, %c0_i32_22 : i32
    %46 = arith.extui %45 : i1 to i32
    %c0_i32_23 = arith.constant 0 : i32
    %47 = arith.cmpi ne, %46, %c0_i32_23 : i32
    scf.if %47 {
      %c0_24 = arith.constant 0 : index
      %c0_25 = arith.constant 0 : index
      %48 = vector.load %arg12[%c0_24, %c0_25] : memref<256x128xf32, #tpu.memory_space<vmem>>, vector<256x128xf32>
      %cst_26 = arith.constant dense<0xFF800000> : vector<256xf32>
      %49 = vector.multi_reduction <maximumf>, %48, %cst_26 [1] : vector<256x128xf32> to vector<256xf32>
      %50 = vector.shape_cast %49 : vector<256xf32> to vector<256x1xf32>
      %cst_27 = arith.constant 3.200000e-15 : f32
      %51 = vector.broadcast %cst_27 : f32 to vector<256x1xf32>
      %52 = arith.addf %50, %51 : vector<256x1xf32>
      %53 = math.sqrt %52 : vector<256x1xf32>
      %c0_28 = arith.constant 0 : index
      %c0_29 = arith.constant 0 : index
      %54 = vector.load %arg13[%c0_28, %c0_29] : memref<256x128xf32, #tpu.memory_space<vmem>>, vector<256x128xf32>
      %cst_30 = arith.constant dense<0x7F800000> : vector<256xf32>
      %55 = vector.multi_reduction <minimumf>, %54, %cst_30 [1] : vector<256x128xf32> to vector<256xf32>
      %56 = vector.shape_cast %55 : vector<256xf32> to vector<256x1xf32>
      %cst_31 = arith.constant 3.200000e-15 : f32
      %57 = vector.broadcast %cst_31 : f32 to vector<256x1xf32>
      %58 = arith.addf %56, %57 : vector<256x1xf32>
      %59 = math.sqrt %58 : vector<256x1xf32>
      %60 = arith.subf %53, %59 : vector<256x1xf32>
      %cst_32 = arith.constant 2.000000e+01 : f32
      %61 = vector.broadcast %cst_32 : f32 to vector<256x1xf32>
      %62 = arith.cmpf ogt, %60, %61 : vector<256x1xf32>
      %cst_33 = arith.constant 2.000000e+01 : f32
      %63 = vector.broadcast %cst_33 : f32 to vector<256x1xf32>
      %64 = arith.minimumf %60, %63 : vector<256x1xf32>
      %65 = math.exp %64 : vector<256x1xf32>
      %66 = math.log1p %65 : vector<256x1xf32>
      %67 = arith.select %62, %60, %66 : vector<256x1xi1>, vector<256x1xf32>
      %68 = vector.shape_cast %67 : vector<256x1xf32> to vector<256x1xf32>
      %69 = vector.broadcast %68 : vector<256x1xf32> to vector<256x128xf32>
      %c0_34 = arith.constant 0 : index
      %c0_35 = arith.constant 0 : index
      %70 = vector.load %arg9[%c0_34, %c0_35] : memref<256x128xf32, #tpu.memory_space<vmem>>, vector<256x128xf32>
      tpu.vector_store %arg9[%c0_34, %c0_35], %69 {strides = array<i32>} : memref<256x128xf32, #tpu.memory_space<vmem>>, vector<256x128xf32>,
    } else {
    }
    return
  }
  func.func @transform_0(%arg0: i32, %arg1: i32) -> (i32, i32) {
    %c0_i32 = arith.constant 0 : i32
    %c0_i32_0 = arith.constant 0 : i32
    return %arg0, %c0_i32 : i32, i32
  }
  func.func @transform_1(%arg0: i32, %arg1: i32) -> (i32, i32) {
    %c0_i32 = arith.constant 0 : i32
    %c0_i32_0 = arith.constant 0 : i32
    return %arg0, %c0_i32 : i32, i32
  }
  func.func @transform_2(%arg0: i32, %arg1: i32) -> (i32, i32) {
    %c0_i32 = arith.constant 0 : i32
    %c0_i32_0 = arith.constant 0 : i32
    return %arg1, %c0_i32 : i32, i32
  }
  func.func @transform_3(%arg0: i32, %arg1: i32) -> (i32, i32) {
    %c0_i32 = arith.constant 0 : i32
    %c0_i32_0 = arith.constant 0 : i32
    %c0_i32_1 = arith.constant 0 : i32
    return %c0_i32, %c0_i32_0 : i32, i32
  }
  func.func @transform_4(%arg0: i32, %arg1: i32) -> (i32, i32) {
    %c0_i32 = arith.constant 0 : i32
    %c0_i32_0 = arith.constant 0 : i32
    %c0_i32_1 = arith.constant 0 : i32
    return %c0_i32, %c0_i32_0 : i32, i32
  }
  func.func @transform_5(%arg0: i32, %arg1: i32) -> (i32, i32) {
    %c0_i32 = arith.constant 0 : i32
    %c0_i32_0 = arith.constant 0 : i32
    return %arg0, %c0_i32 : i32, i32
  }
  func.func @transform_6(%arg0: i32, %arg1: i32) -> (i32, i32) {
    %c0_i32 = arith.constant 0 : i32
    %c0_i32_0 = arith.constant 0 : i32
    return %c0_i32, %arg1 : i32, i32
  }
  func.func @transform_7(%arg0: i32, %arg1: i32) -> (i32, i32) {
    %c0_i32 = arith.constant 0 : i32
    %c0_i32_0 = arith.constant 0 : i32
    return %arg0, %c0_i32 : i32, i32
  }
  func.func @transform_8(%arg0: i32, %arg1: i32) -> (i32, i32) {
    %c0_i32 = arith.constant 0 : i32
    %c0_i32_0 = arith.constant 0 : i32
    return %arg0, %c0_i32 : i32, i32
  }
}

</mosaic_0001>

<llo_original>
// kernel: tpu_custom_call.1
$region0: #{tpu_custom_call.1}
  #allocation0 [shape = 'u32[]', space=smem, size = 0x4, offset = 0x4, fixed_abs, tag = 'smem constant byte address 0x4 - core index']
  #allocation1 [shape = 'u32[144,128]{1,0:T(1,128)}', space=vmem, size = 0x12000, scoped, tag = 'internal scratch']
  #allocation2 [shape = 'f32[256,1]{1,0:T(8,128)}', space=vmem, size = 0x20000, scoped, tag = 'scratch operand']
  #allocation3 [shape = 'f32[256,128]{1,0:T(8,128)}', space=vmem, size = 0x20000, scoped, tag = 'scratch operand']
  #allocation4 [shape = 'f32[256,128]{1,0:T(8,128)}', space=vmem, size = 0x20000, scoped, tag = 'scratch operand']
  %s0 = inlined_call_operand.vmem [shape: f32[512,128], index: 0, kind: input, shape index: {}]
  %s1 = inlined_call_operand.hbm [shape: f32[512,128], index: 1, kind: input, shape index: {}]
  %s2 = inlined_call_operand.hbm [shape: f32[512,128], index: 2, kind: input, shape index: {}]
  %s3 = inlined_call_operand.hbm [shape: f32[128,128], index: 3, kind: input, shape index: {}]
  %s4 = inlined_call_operand.vmem [shape: f32[1,128], index: 4, kind: input, shape index: {}]
  %s5 = inlined_call_operand.vmem [shape: f32[512,2], index: 5, kind: input, shape index: {}]
  %s6 = inlined_call_operand.vmem [shape: f32[2,512], index: 6, kind: input, shape index: {}]
  %s7 = inlined_call_operand.hbm [shape: f32[512,128], index: 7, kind: output, shape index: {0}]
  %s8 = inlined_call_operand.hbm [shape: f32[512,128], index: 8, kind: output, shape index: {1}]
  %9 = xla_tuple %s7, %s8
  %s10 = sld [smem:[#allocation0]]
  $region97: #{tpu_custom_call.1} parent=0
    _
  %s12 = ssub.s32 1, %s10
  %s13 = scalar_select 0, %s12, %s10
  $region1: #{tpu_custom_call.1} parent=0
    #allocation5 [shape = 'u8[262144]{0}', space=vmem, size = 0x40000, scoped, tag = 'input window, operand 1']
    #allocation6 [shape = 's32[2]{0}', space=sflag, size = 0x8, scoped, tag = 'scoped memory for tpu_custom_call.1']
    #allocation7 [shape = 's32[2]{0}', space=sflag, size = 0x8, scoped, tag = 'scoped memory for tpu_custom_call.1']
    #allocation8 [shape = 'u8[262144]{0}', space=vmem, size = 0x40000, scoped, tag = 'input window, operand 2, single buffered']
    #allocation9 [shape = 's32[1]{0}', space=sflag, size = 0x4, scoped, tag = 'scoped memory for tpu_custom_call.1']
    #allocation10 [shape = 'u8[65536]{0}', space=vmem, size = 0x10000, scoped, tag = 'input window, operand 3, single buffered']
    #allocation11 [shape = 'u8[262144]{0}', space=vmem, size = 0x40000, scoped, tag = 'output window, operand 0']
    #allocation12 [shape = 'u8[262144]{0}', space=vmem, size = 0x40000, scoped, tag = 'output window, operand 1']
    #allocation13 [shape = 's32[2]{0}', space=sflag, size = 0x8, scoped, tag = 'scoped memory for tpu_custom_call.1']
    %14 = vsyncpa [#allocation6], 0
    %s15 = scalar_lea.sflag [#allocation6], 1
    %16 = vsyncpa %s15, 0
    %17 = vsyncpa [#allocation9], 0
    %18 = vsyncpa [#allocation7], 0
    %s19 = scalar_lea.sflag [#allocation7], 1
    %20 = vsyncpa %s19, 0
    %21 = vsyncpa [#allocation13], 0
    %s22 = scalar_lea.sflag [#allocation13], 1
    %23 = vsyncpa %s22, 0
    loop: start=0, step=1, limit=4
    $region2: #{tpu_custom_call.1} parent=1 // loop_pre_header
      _
    $region3: #{tpu_custom_call.1} parent=1 // loop_header
      %s25 = sphi 0, %s29
      %p26 = scmp.ge.s32.totalorder %s25, 4
      %s32 = sphi 0, %s44
      %s33 = sphi 0, %s40
      %s34 = sphi 0, %s32
      %s35 = sphi 0, %s33
      %s36 = sphi 0, %s34
      %s37 = sphi 0, %s35
      %s47 = sphi 0, %s49
      %s50 = sphi 0, %s47
      %s51 = sphi 0, %s50
      %s67 = sphi 0, %s51
      %s73 = sphi 0, %s75
      %s76 = sphi 0, %s73
      %s77 = sphi 0, %s76
      %s93 = sphi 0, %s77
      %s99 = sphi 0, %s101
      %s102 = sphi 0, %s99
      %s103 = sphi 0, %s102
      %s119 = sphi 0, %s103
      %s123 = sphi 0, %s123
      %s125 = sphi 0, %s123
      %s126 = sphi 0, %s125
      %s140 = sphi 0, %s126
      %s144 = sphi 0, %s144
      %s146 = sphi 0, %s144
      %s147 = sphi 0, %s146
      %s161 = sphi 0, %s147
      %s167 = sphi 0, %s169
      %s170 = sphi 0, %s167
      %s171 = sphi 0, %s170
      %s187 = sphi 0, %s171
      %s193 = sphi 0, %s195
      %s196 = sphi 0, %s193
      %s197 = sphi 0, %s196
      %s213 = sphi 0, %s197
      %s219 = sphi 0, %s221
      %s222 = sphi 0, %s219
      %s223 = sphi 0, %s222
      %s239 = sphi 0, %s223
      %s245 = sphi 0, %s247
      %s248 = sphi 0, %s245
      %s249 = sphi 0, %s248
      %s265 = sphi 0, %s249
    $region4: #{tpu_custom_call.1} parent=1 // loop_header_branch
      %28 = sbr.rel (%p26) target = $region8
    $region5: #{tpu_custom_call.1} parent=1 // loop_body
      %s30 = ssub.s32 %s25, 1
      %s31 = ssub.s32 %s25, 2
      %s38 = sadd.s32 1, %s33
      %p39 = scmp.ge.s32.totalorder %s38, 1
      %s40 = scalar_select %p39, 0, %s38
      %s41 = sadd.s32 1, %s32
      %s42 = scalar_select %p39, %s41, %s32
      %p43 = scmp.ge.s32.totalorder %s42, 2
      %s44 = scalar_select %p43, 0, %s42
      %s45 = ssub.s32 %s32, %s44
      %p46 = scmp.eq.s32.totalorder %s45, 0
      %s48 = sadd.s32 %s47, 1
      %s49 = scalar_select %p46, %s47, %s48
      %p52 = pneg %p46
      %p53 = scmp.eq.s32.totalorder %s25, 1
      %p54 = por %p52, %p53
      %p55 = scmp.ne.s32.totalorder %s47, %s50
      %p56 = scmp.eq.s32.totalorder %s25, 0
      %p57 = por %p55, %p56
      %p58 = scmp.ne.s32.totalorder %s47, %s50
      %p59 = scmp.eq.s32.totalorder %s30, 1
      %p60 = por %p58, %p59
      %p61 = scmp.ne.s32.totalorder %s50, %s51
      %p62 = scmp.eq.s32.totalorder %s30, 0
      %p63 = por %p61, %p62
      %p64 = scmp.ne.s32.totalorder %s50, %s51
      %p65 = scmp.eq.s32.totalorder %s31, 1
      %p66 = por %p64, %p65
      %p68 = scmp.ne.s32.totalorder %s51, %s67
      %p69 = scmp.eq.s32.totalorder %s31, 0
      %p70 = por %p68, %p69
      %s71 = ssub.s32 %s32, %s44
      %p72 = scmp.eq.s32.totalorder %s71, 0
      %s74 = sadd.s32 %s73, 1
      %s75 = scalar_select %p72, %s73, %s74
      %p78 = pneg %p72
      %p79 = scmp.eq.s32.totalorder %s25, 1
      %p80 = por %p78, %p79
      %p81 = scmp.ne.s32.totalorder %s73, %s76
      %p82 = scmp.eq.s32.totalorder %s25, 0
      %p83 = por %p81, %p82
      %p84 = scmp.ne.s32.totalorder %s73, %s76
      %p85 = scmp.eq.s32.totalorder %s30, 1
      %p86 = por %p84, %p85
      %p87 = scmp.ne.s32.totalorder %s76, %s77
      %p88 = scmp.eq.s32.totalorder %s30, 0
      %p89 = por %p87, %p88
      %p90 = scmp.ne.s32.totalorder %s76, %s77
      %p91 = scmp.eq.s32.totalorder %s31, 1
      %p92 = por %p90, %p91
      %p94 = scmp.ne.s32.totalorder %s77, %s93
      %p95 = scmp.eq.s32.totalorder %s31, 0
      %p96 = por %p94, %p95
      %s97 = ssub.s32 %s33, %s40
      %p98 = scmp.eq.s32.totalorder %s97, 0
      %s100 = sadd.s32 %s99, 1
      %s101 = scalar_select %p98, %s99, %s100
      %p104 = pneg %p98
      %p105 = scmp.eq.s32.totalorder %s25, 1
      %p106 = por %p104, %p105
      %p107 = scmp.ne.s32.totalorder %s99, %s102
      %p108 = scmp.eq.s32.totalorder %s25, 0
      %p109 = por %p107, %p108
      %p110 = scmp.ne.s32.totalorder %s99, %s102
      %p111 = scmp.eq.s32.totalorder %s30, 1
      %p112 = por %p110, %p111
      %p113 = scmp.ne.s32.totalorder %s102, %s103
      %p114 = scmp.eq.s32.totalorder %s30, 0
      %p115 = por %p113, %p114
      %p116 = scmp.ne.s32.totalorder %s102, %s103
      %p117 = scmp.eq.s32.totalorder %s31, 1
      %p118 = por %p116, %p117
      %p120 = scmp.ne.s32.totalorder %s103, %s119
      %p121 = scmp.eq.s32.totalorder %s31, 0
      %p122 = por %p120, %p121
      %s124 = sadd.s32 %s123, 1
      %p127 = scmp.eq.s32.totalorder %s25, 1
      %p128 = scmp.ne.s32.totalorder %s123, %s125
      %p129 = scmp.eq.s32.totalorder %s25, 0
      %p130 = por %p128, %p129
      %p131 = scmp.ne.s32.totalorder %s123, %s125
      %p132 = scmp.eq.s32.totalorder %s30, 1
      %p133 = por %p131, %p132
      %p134 = scmp.ne.s32.totalorder %s125, %s126
      %p135 = scmp.eq.s32.totalorder %s30, 0
      %p136 = por %p134, %p135
      %p137 = scmp.ne.s32.totalorder %s125, %s126
      %p138 = scmp.eq.s32.totalorder %s31, 1
      %p139 = por %p137, %p138
      %p141 = scmp.ne.s32.totalorder %s126, %s140
      %p142 = scmp.eq.s32.totalorder %s31, 0
      %p143 = por %p141, %p142
      %s145 = sadd.s32 %s144, 1
      %p148 = scmp.eq.s32.totalorder %s25, 1
      %p149 = scmp.ne.s32.totalorder %s144, %s146
      %p150 = scmp.eq.s32.totalorder %s25, 0
      %p151 = por %p149, %p150
      %p152 = scmp.ne.s32.totalorder %s144, %s146
      %p153 = scmp.eq.s32.totalorder %s30, 1
      %p154 = por %p152, %p153
      %p155 = scmp.ne.s32.totalorder %s146, %s147
      %p156 = scmp.eq.s32.totalorder %s30, 0
      %p157 = por %p155, %p156
      %p158 = scmp.ne.s32.totalorder %s146, %s147
      %p159 = scmp.eq.s32.totalorder %s31, 1
      %p160 = por %p158, %p159
      %p162 = scmp.ne.s32.totalorder %s147, %s161
      %p163 = scmp.eq.s32.totalorder %s31, 0
      %p164 = por %p162, %p163
      %s165 = ssub.s32 %s32, %s44
      %p166 = scmp.eq.s32.totalorder %s165, 0
      %s168 = sadd.s32 %s167, 1
      %s169 = scalar_select %p166, %s167, %s168
      %p172 = pneg %p166
      %p173 = scmp.eq.s32.totalorder %s25, 1
      %p174 = por %p172, %p173
      %p175 = scmp.ne.s32.totalorder %s167, %s170
      %p176 = scmp.eq.s32.totalorder %s25, 0
      %p177 = por %p175, %p176
      %p178 = scmp.ne.s32.totalorder %s167, %s170
      %p179 = scmp.eq.s32.totalorder %s30, 1
      %p180 = por %p178, %p179
      %p181 = scmp.ne.s32.totalorder %s170, %s171
      %p182 = scmp.eq.s32.totalorder %s30, 0
      %p183 = por %p181, %p182
      %p184 = scmp.ne.s32.totalorder %s170, %s171
      %p185 = scmp.eq.s32.totalorder %s31, 1
      %p186 = por %p184, %p185
      %p188 = scmp.ne.s32.totalorder %s171, %s187
      %p189 = scmp.eq.s32.totalorder %s31, 0
      %p190 = por %p188, %p189
      %s191 = ssub.s32 %s33, %s40
      %p192 = scmp.eq.s32.totalorder %s191, 0
      %s194 = sadd.s32 %s193, 1
      %s195 = scalar_select %p192, %s193, %s194
      %p198 = pneg %p192
      %p199 = scmp.eq.s32.totalorder %s25, 1
      %p200 = por %p198, %p199
      %p201 = scmp.ne.s32.totalorder %s193, %s196
      %p202 = scmp.eq.s32.totalorder %s25, 0
      %p203 = por %p201, %p202
      %p204 = scmp.ne.s32.totalorder %s193, %s196
      %p205 = scmp.eq.s32.totalorder %s30, 1
      %p206 = por %p204, %p205
      %p207 = scmp.ne.s32.totalorder %s196, %s197
      %p208 = scmp.eq.s32.totalorder %s30, 0
      %p209 = por %p207, %p208
      %p210 = scmp.ne.s32.totalorder %s196, %s197
      %p211 = scmp.eq.s32.totalorder %s31, 1
      %p212 = por %p210, %p211
      %p214 = scmp.ne.s32.totalorder %s197, %s213
      %p215 = scmp.eq.s32.totalorder %s31, 0
      %p216 = por %p214, %p215
      %s217 = ssub.s32 %s32, %s44
      %p218 = scmp.eq.s32.totalorder %s217, 0
      %s220 = sadd.s32 %s219, 1
      %s221 = scalar_select %p218, %s219, %s220
      %p224 = pneg %p218
      %p225 = scmp.eq.s32.totalorder %s25, 1
      %p226 = por %p224, %p225
      %p227 = scmp.ne.s32.totalorder %s219, %s222
      %p228 = scmp.eq.s32.totalorder %s25, 0
      %p229 = por %p227, %p228
      %p230 = scmp.ne.s32.totalorder %s219, %s222
      %p231 = scmp.eq.s32.totalorder %s30, 1
      %p232 = por %p230, %p231
      %p233 = scmp.ne.s32.totalorder %s222, %s223
      %p234 = scmp.eq.s32.totalorder %s30, 0
      %p235 = por %p233, %p234
      %p236 = scmp.ne.s32.totalorder %s222, %s223
      %p237 = scmp.eq.s32.totalorder %s31, 1
      %p238 = por %p236, %p237
      %p240 = scmp.ne.s32.totalorder %s223, %s239
      %p241 = scmp.eq.s32.totalorder %s31, 0
      %p242 = por %p240, %p241
      %s243 = ssub.s32 %s32, %s44
      %p244 = scmp.eq.s32.totalorder %s243, 0
      %s246 = sadd.s32 %s245, 1
      %s247 = scalar_select %p244, %s245, %s246
      %p250 = pneg %p244
      %p251 = scmp.eq.s32.totalorder %s25, 1
      %p252 = por %p250, %p251
      %p253 = scmp.ne.s32.totalorder %s245, %s248
      %p254 = scmp.eq.s32.totalorder %s25, 0
      %p255 = por %p253, %p254
      %p256 = scmp.ne.s32.totalorder %s245, %s248
      %p257 = scmp.eq.s32.totalorder %s30, 1
      %p258 = por %p256, %p257
      %p259 = scmp.ne.s32.totalorder %s248, %s249
      %p260 = scmp.eq.s32.totalorder %s30, 0
      %p261 = por %p259, %p260
      %p262 = scmp.ne.s32.totalorder %s248, %s249
      %p263 = scmp.eq.s32.totalorder %s31, 1
      %p264 = por %p262, %p263
      %p266 = scmp.ne.s32.totalorder %s249, %s265
      %p267 = scmp.eq.s32.totalorder %s31, 0
      %p268 = por %p266, %p267
      %p269 = scmp.le.s32.totalorder 1, %s25
      %p270 = scmp.lt.s32.totalorder %s25, 3
      %p271 = pnand %p269, %p270
      %p272 = pneg %p271
      // Predicated region
      $region9: #{tpu_custom_call.1} parent=5 // pred_check
        _
      $region10: #{tpu_custom_call.1} parent=5 // pred_check_branch
        %274 = sbr.rel (%p271) target = $region12
      $region11: #{tpu_custom_call.1} parent=5 // pred_region
        %s275 = ssub.s32 %s25, 1
        // Predicated region
        $region13: #{tpu_custom_call.1} parent=11 // pred_check
          %p276 = pneg %p115
        $region14: #{tpu_custom_call.1} parent=11 // pred_check_branch
          %278 = sbr.rel (%p276) target = $region16
        $region15: #{tpu_custom_call.1} parent=11 // pred_region
          %s279 = smul.u32 64, %s35
          %s281 = ssub.s32 8192, 8192
          %282 = vsyncadd [#allocation9], %s281
          %s283 = smul.addr %s279, 128
          %s284 = scalar_lea.hbm %s2, %s283
          %s285 = sshll.u32 [#allocation8], 4
          %s286 = int_to_ptr.vmem [resolvable:$true] %s285
          %291 = dma.hbm_to_vmem [thread:$0]  %s284, 8192, %s286, [#allocation9], 128, 128, 8
        $region16: #{tpu_custom_call.1} parent=11 // pred_fallthru
          _
        // Predicated region
        $region17: #{tpu_custom_call.1} parent=11 // pred_check
          %p292 = pneg %p136
        $region18: #{tpu_custom_call.1} parent=11 // pred_check_branch
          %294 = sbr.rel (%p292) target = $region20
        $region19: #{tpu_custom_call.1} parent=11 // pred_region
          %s296 = ssub.s32 2048, 2048
          %297 = vsyncadd [#allocation9], %s296
          %s298 = sshll.u32 [#allocation10], 4
          %s299 = int_to_ptr.vmem [resolvable:$true] %s298
          %304 = dma.hbm_to_vmem [thread:$0]  %s3, 2048, %s299, [#allocation9], 128, 128, 8
        $region20: #{tpu_custom_call.1} parent=11 // pred_fallthru
          _
        // Predicated region
        $region21: #{tpu_custom_call.1} parent=11 // pred_check
          %p305 = pneg %p157
        $region22: #{tpu_custom_call.1} parent=11 // pred_check_branch
          %307 = sbr.rel (%p305) target = $region24
        $region23: #{tpu_custom_call.1} parent=11 // pred_region
          _
        $region24: #{tpu_custom_call.1} parent=11 // pred_fallthru
          _
        // Predicated region
        $region25: #{tpu_custom_call.1} parent=11 // pred_check
          %p308 = pneg %p209
        $region26: #{tpu_custom_call.1} parent=11 // pred_check_branch
          %310 = sbr.rel (%p308) target = $region28
        $region27: #{tpu_custom_call.1} parent=11 // pred_region
          %s311 = smul.u32 4, %s35
          %p312 = scmp.lt.s32.totalorder %s311, 3
          %s313 = scalar_select %p312, %s311, 3
          %s314 = smul.addr %s313, 2
          %s315 = scalar_lea.vmem %s6, %s314
          %s316 = smul.u32 4, %s35
        $region28: #{tpu_custom_call.1} parent=11 // pred_fallthru
          _
      $region12: #{tpu_custom_call.1} parent=5 // pred_fallthru
        _
      %p317 = scmp.lt.s32.totalorder %s25, 2
      // Predicated region
      $region29: #{tpu_custom_call.1} parent=5 // pred_check
        %p318 = pneg %p317
      $region30: #{tpu_custom_call.1} parent=5 // pred_check_branch
        %320 = sbr.rel (%p318) target = $region32
      $region31: #{tpu_custom_call.1} parent=5 // pred_region
        // Predicated region
        $region33: #{tpu_custom_call.1} parent=31 // pred_check
          %p321 = pneg %p57
        $region34: #{tpu_custom_call.1} parent=31 // pred_check_branch
          %323 = sbr.rel (%p321) target = $region36
        $region35: #{tpu_custom_call.1} parent=31 // pred_region
          %s324 = smul.u32 32, %s32
          %p325 = scmp.lt.s32.totalorder %s324, 63
          %s326 = scalar_select %p325, %s324, 63
          %s327 = smul.addr %s326, 8
          %s328 = scalar_lea.vmem %s0, %s327
          %s329 = smul.u32 32, %s32
        $region36: #{tpu_custom_call.1} parent=31 // pred_fallthru
          _
        // Predicated region
        $region37: #{tpu_custom_call.1} parent=31 // pred_check
          %p330 = pneg %p83
        $region38: #{tpu_custom_call.1} parent=31 // pred_check_branch
          %332 = sbr.rel (%p330) target = $region40
        $region39: #{tpu_custom_call.1} parent=31 // pred_region
          %s333 = sand.u32 %s73, 1
          %s334 = scalar_lea.sflag [#allocation6], %s333
          %s335 = sand.u32 %s73, 1
          %s336 = smul.addr %s335, 256
          %s337 = scalar_lea.vmem [#allocation5], %s336
          %s338 = smul.u32 32, %s32
          %s340 = ssub.s32 4096, 4096
          %341 = vsyncadd %s334, %s340
          %s342 = smul.addr %s338, 128
          %s343 = scalar_lea.hbm %s1, %s342
          %s344 = sshll.u32 %s337, 4
          %s345 = int_to_ptr.vmem [resolvable:$true] %s344
          %350 = dma.hbm_to_vmem [thread:$0]  %s343, 4096, %s345, %s334, 128, 128, 8
        $region40: #{tpu_custom_call.1} parent=31 // pred_fallthru
          _
        // Predicated region
        $region41: #{tpu_custom_call.1} parent=31 // pred_check
          %p351 = pneg %p177
        $region42: #{tpu_custom_call.1} parent=31 // pred_check_branch
          %353 = sbr.rel (%p351) target = $region44
        $region43: #{tpu_custom_call.1} parent=31 // pred_region
          %s354 = smul.u32 32, %s32
          %p355 = scmp.lt.s32.totalorder %s354, 63
          %s356 = scalar_select %p355, %s354, 63
          %s357 = smul.addr %s356, 8
          %s358 = scalar_lea.vmem %s5, %s357
          %s359 = smul.u32 32, %s32
        $region44: #{tpu_custom_call.1} parent=31 // pred_fallthru
          _
      $region32: #{tpu_custom_call.1} parent=5 // pred_fallthru
        _
      %p360 = scmp.le.s32.totalorder 1, %s25
      %p361 = scmp.lt.s32.totalorder %s25, 3
      %p362 = pnand %p360, %p361
      %p363 = pneg %p362
      // Predicated region
      $region45: #{tpu_custom_call.1} parent=5 // pred_check
        _
      $region46: #{tpu_custom_call.1} parent=5 // pred_check_branch
        %365 = sbr.rel (%p362) target = $region48
      $region47: #{tpu_custom_call.1} parent=5 // pred_region
        %s366 = ssub.s32 %s25, 1
        %s367 = sand.u32 %s76, 1
        %s368 = scalar_lea.sflag [#allocation6], %s367
        %s369 = sand.u32 %s76, 1
        %s370 = smul.addr %s369, 256
        %s371 = scalar_lea.vmem [#allocation5], %s370
        // Predicated region
        $region49: #{tpu_custom_call.1} parent=47 // pred_check
          %p372 = pneg %p89
        $region50: #{tpu_custom_call.1} parent=47 // pred_check_branch
          %374 = sbr.rel (%p372) target = $region52
        $region51: #{tpu_custom_call.1} parent=47 // pred_region
          %375 = dma.done %s368, 4096
        $region52: #{tpu_custom_call.1} parent=47 // pred_fallthru
          _
        // Predicated region
        $region53: #{tpu_custom_call.1} parent=47 // pred_check
          %p376 = pneg %p115
        $region54: #{tpu_custom_call.1} parent=47 // pred_check_branch
          %378 = sbr.rel (%p376) target = $region56
        $region55: #{tpu_custom_call.1} parent=47 // pred_region
          %379 = dma.done [#allocation9], 8192
        $region56: #{tpu_custom_call.1} parent=47 // pred_fallthru
          _
        // Predicated region
        $region57: #{tpu_custom_call.1} parent=47 // pred_check
          %p380 = pneg %p136
        $region58: #{tpu_custom_call.1} parent=47 // pred_check_branch
          %382 = sbr.rel (%p380) target = $region60
        $region59: #{tpu_custom_call.1} parent=47 // pred_region
          %383 = dma.done [#allocation9], 2048
        $region60: #{tpu_custom_call.1} parent=47 // pred_fallthru
          _
        %s384 = smul.u32 32, %s34
        %p385 = scmp.lt.s32.totalorder %s384, 63
        %s386 = scalar_select %p385, %s384, 63
        %s387 = smul.addr %s386, 8
        %s388 = scalar_lea.vmem %s0, %s387
        %p389 = pneg %p63
        %p390 = pneg %p60
        %s391 = sand.u32 %s76, 1
        %s392 = scalar_lea.sflag [#allocation6], %s391
        %s393 = sand.u32 %s76, 1
        %s394 = smul.addr %s393, 256
        %s395 = scalar_lea.vmem [#allocation5], %s394
        %p396 = pneg %p89
        %p397 = pneg %p86
        %p398 = pneg %p115
        %p399 = pneg %p112
        %p400 = pneg %p136
        %p401 = pneg %p133
        %p402 = pneg %p157
        %p403 = pneg %p154
        %s404 = smul.u32 32, %s34
        %p405 = scmp.lt.s32.totalorder %s404, 63
        %s406 = scalar_select %p405, %s404, 63
        %s407 = smul.addr %s406, 8
        %s408 = scalar_lea.vmem %s5, %s407
        %p409 = pneg %p183
        %p410 = pneg %p180
        %s411 = smul.u32 4, %s35
        %p412 = scmp.lt.s32.totalorder %s411, 3
        %s413 = scalar_select %p412, %s411, 3
        %s414 = smul.addr %s413, 2
        %s415 = scalar_lea.vmem %s6, %s414
        %p416 = pneg %p209
        %p417 = pneg %p206
        %p418 = pneg %p235
        %p419 = pneg %p232
        %s420 = sand.u32 %s222, 1
        %s421 = scalar_lea.sflag [#allocation7], %s420
        %s422 = sand.u32 %s222, 1
        %s423 = smul.addr %s422, 256
        %s424 = scalar_lea.vmem [#allocation11], %s423
        %p425 = pneg %p261
        %p426 = pneg %p258
        %s427 = sand.u32 %s248, 1
        %s428 = scalar_lea.sflag [#allocation13], %s427
        %s429 = sand.u32 %s248, 1
        %s430 = smul.addr %s429, 256
        %s431 = scalar_lea.vmem [#allocation12], %s430
        %s432 = smul.u32 32, %s34
        %p433 = scmp.lt.s32.totalorder %s432, 63
        %s434 = scalar_select %p433, %s432, 63
        %s435 = smul.addr %s434, 8
        %s436 = scalar_lea.vmem %s0, %s435
        %s437 = smul.u32 32, %s34
        %s438 = smul.u32 32, %s34
        %s439 = smul.u32 64, %s35
        %s440 = smul.u32 32, %s34
        %p441 = scmp.lt.s32.totalorder %s440, 63
        %s442 = scalar_select %p441, %s440, 63
        %s443 = smul.addr %s442, 8
        %s444 = scalar_lea.vmem %s5, %s443
        %s445 = smul.u32 32, %s34
        %s446 = smul.u32 4, %s35
        %p447 = scmp.lt.s32.totalorder %s446, 3
        %s448 = scalar_select %p447, %s446, 3
        %s449 = smul.addr %s448, 2
        %s450 = scalar_lea.vmem %s6, %s449
        %s451 = smul.u32 4, %s35
        %s452 = smul.u32 32, %s34
        %s453 = smul.u32 32, %s34
        %p454 = scmp.eq.s32.totalorder %s35, 0
        // Predicated region
        $region61: #{tpu_custom_call.1} parent=47 // pred_check
          %p455 = pneg %p454
        $region62: #{tpu_custom_call.1} parent=47 // pred_check_branch
          %457 = sbr.rel (%p455) target = $region64
        $region63: #{tpu_custom_call.1} parent=47 // pred_region
          %v458 = vld [vmem:[%s436] sm:$0xff]
          %v459 = vld [vmem:[%s436 + $0x8] sm:$0xff]
          %v460 = vld [vmem:[%s436 + $0x10] sm:$0xff]
          %v461 = vld [vmem:[%s436 + $0x18] sm:$0xff]
          %v462 = vld [vmem:[%s436 + $0x20] sm:$0xff]
          %v463 = vld [vmem:[%s436 + $0x28] sm:$0xff]
          %v464 = vld [vmem:[%s436 + $0x30] sm:$0xff]
          %v465 = vld [vmem:[%s436 + $0x38] sm:$0xff]
          %v466 = vld [vmem:[%s436 + $0x40] sm:$0xff]
          %v467 = vld [vmem:[%s436 + $0x48] sm:$0xff]
          %v468 = vld [vmem:[%s436 + $0x50] sm:$0xff]
          %v469 = vld [vmem:[%s436 + $0x58] sm:$0xff]
          %v470 = vld [vmem:[%s436 + $0x60] sm:$0xff]
          %v471 = vld [vmem:[%s436 + $0x68] sm:$0xff]
          %v472 = vld [vmem:[%s436 + $0x70] sm:$0xff]
          %v473 = vld [vmem:[%s436 + $0x78] sm:$0xff]
          %v474 = vld [vmem:[%s436 + $0x80] sm:$0xff]
          %v475 = vld [vmem:[%s436 + $0x88] sm:$0xff]
          %v476 = vld [vmem:[%s436 + $0x90] sm:$0xff]
          %v477 = vld [vmem:[%s436 + $0x98] sm:$0xff]
          %v478 = vld [vmem:[%s436 + $0xa0] sm:$0xff]
          %v479 = vld [vmem:[%s436 + $0xa8] sm:$0xff]
          %v480 = vld [vmem:[%s436 + $0xb0] sm:$0xff]
          %v481 = vld [vmem:[%s436 + $0xb8] sm:$0xff]
          %v482 = vld [vmem:[%s436 + $0xc0] sm:$0xff]
          %v483 = vld [vmem:[%s436 + $0xc8] sm:$0xff]
          %v484 = vld [vmem:[%s436 + $0xd0] sm:$0xff]
          %v485 = vld [vmem:[%s436 + $0xd8] sm:$0xff]
          %v486 = vld [vmem:[%s436 + $0xe0] sm:$0xff]
          %v487 = vld [vmem:[%s436 + $0xe8] sm:$0xff]
          %v488 = vld [vmem:[%s436 + $0xf0] sm:$0xff]
          %v489 = vld [vmem:[%s436 + $0xf8] sm:$0xff]
          %v490 = vld [vmem:[#allocation10] sm:$0xff]
          %v491 = vld [vmem:[#allocation10 + $0x8] sm:$0xff]
          %v492 = vld [vmem:[#allocation10 + $0x10] sm:$0xff]
          %v493 = vld [vmem:[#allocation10 + $0x18] sm:$0xff]
          %v494 = vld [vmem:[#allocation10 + $0x20] sm:$0xff]
          %v495 = vld [vmem:[#allocation10 + $0x28] sm:$0xff]
          %v496 = vld [vmem:[#allocation10 + $0x30] sm:$0xff]
          %v497 = vld [vmem:[#allocation10 + $0x38] sm:$0xff]
          %v498 = vld [vmem:[#allocation10 + $0x40] sm:$0xff]
          %v499 = vld [vmem:[#allocation10 + $0x48] sm:$0xff]
          %v500 = vld [vmem:[#allocation10 + $0x50] sm:$0xff]
          %v501 = vld [vmem:[#allocation10 + $0x58] sm:$0xff]
          %v502 = vld [vmem:[#allocation10 + $0x60] sm:$0xff]
          %v503 = vld [vmem:[#allocation10 + $0x68] sm:$0xff]
          %v504 = vld [vmem:[#allocation10 + $0x70] sm:$0xff]
          %v505 = vld [vmem:[#allocation10 + $0x78] sm:$0xff]
          %v506 = vld [vmem:[%s4] sm:$0x1]
          %v508 = vlaneseq
          %v509 = vshrl.u32 %v508, 7
          %v510 = vsub.s32 0, %v509
          %v511 = vrot.slane %v506, %v510
          %513 = vmatprep.subr.mxu0 0.0
          %514 = vmatpush1.xpose.msra.mxu0 %v490
          %515 = vmatprep.subr.mxu0 0.0
          %516 = vmatpush1.xpose.msra.mxu0 %v491
          %517 = vmatprep.subr.mxu0 0.0
          %518 = vmatpush1.xpose.msra.mxu0 %v492
          %519 = vmatprep.subr.mxu0 0.0
          %520 = vmatpush1.xpose.msra.mxu0 %v493
          %521 = vmatprep.subr.mxu0 0.0
          %522 = vmatpush1.xpose.msra.mxu0 %v494
          %523 = vmatprep.subr.mxu0 0.0
          %524 = vmatpush1.xpose.msra.mxu0 %v495
          %525 = vmatprep.subr.mxu0 0.0
          %526 = vmatpush1.xpose.msra.mxu0 %v496
          %527 = vmatprep.subr.mxu0 0.0
          %528 = vmatpush1.xpose.msra.mxu0 %v497
          %529 = vmatprep.subr.mxu0 0.0
          %530 = vmatpush1.xpose.msra.mxu0 %v498
          %531 = vmatprep.subr.mxu0 0.0
          %532 = vmatpush1.xpose.msra.mxu0 %v499
          %533 = vmatprep.subr.mxu0 0.0
          %534 = vmatpush1.xpose.msra.mxu0 %v500
          %535 = vmatprep.subr.mxu0 0.0
          %536 = vmatpush1.xpose.msra.mxu0 %v501
          %537 = vmatprep.subr.mxu0 0.0
          %538 = vmatpush1.xpose.msra.mxu0 %v502
          %539 = vmatprep.subr.mxu0 0.0
          %540 = vmatpush1.xpose.msra.mxu0 %v503
          %541 = vmatprep.subr.mxu0 0.0
          %542 = vmatpush1.xpose.msra.mxu0 %v504
          %543 = vmatprep.subr.mxu0 0.0
          %544 = vmatpush1.xpose.msra.mxu0 %v505
          %545 = vmatprep.subr.mxu0 0.0
          %546 = vmatpush1.xpose.msra.mxu0 0.0
          %547 = vmatprep.subr.mxu0 0.0
          %548 = vmatpush1.xpose.msra.mxu0 0.0
          %549 = vmatprep.subr.mxu0 0.0
          %550 = vmatpush1.xpose.msra.mxu0 0.0
          %551 = vmatprep.subr.mxu0 0.0
          %552 = vmatpush1.xpose.msra.mxu0 0.0
          %553 = vmatprep.subr.mxu0 0.0
          %554 = vmatpush1.xpose.msra.mxu0 0.0
          %555 = vmatprep.subr.mxu0 0.0
          %556 = vmatpush1.xpose.msra.mxu0 0.0
          %557 = vmatprep.subr.mxu0 0.0
          %558 = vmatpush1.xpose.msra.mxu0 0.0
          %559 = vmatprep.subr.mxu0 0.0
          %560 = vmatpush1.xpose.msra.mxu0 0.0
          %561 = vmatprep.subr.mxu0 0.0
          %562 = vmatpush1.xpose.msra.mxu0 0.0
          %563 = vmatprep.subr.mxu0 0.0
          %564 = vmatpush1.xpose.msra.mxu0 0.0
          %565 = vmatprep.subr.mxu0 0.0
          %566 = vmatpush1.xpose.msra.mxu0 0.0
          %567 = vmatprep.subr.mxu0 0.0
          %568 = vmatpush1.xpose.msra.mxu0 0.0
          %569 = vmatprep.subr.mxu0 0.0
          %570 = vmatpush1.xpose.msra.mxu0 0.0
          %571 = vmatprep.subr.mxu0 0.0
          %572 = vmatpush1.xpose.msra.mxu0 0.0
          %573 = vmatprep.subr.mxu0 0.0
          %574 = vmatpush1.xpose.msra.mxu0 0.0
          %575 = vmatprep.subr.mxu0 0.0
          %576 = vmatpush1.xpose.msra.mxu0 0.0
          %577 = vmatprep.mubr.f32.mxu0 0.0
          %578 = vmatmul.mubr.f32.gmra.mrb[0].mxu0 %v458
          %v579 = vpop.f32.mrb[0].mxu0
          %v580 = vadd.f32 %v511, %v579
          %v581 = vpop.f32.mrb[0].mxu0
          %582 = vmatprep.mubr.f32.mxu0 0.0
          %583 = vmatmul.mubr.f32.gmra.mrb[0].mxu0 %v459
          %v584 = vpop.f32.mrb[0].mxu0
          %v585 = vadd.f32 %v511, %v584
          %v586 = vpop.f32.mrb[0].mxu0
          %587 = vmatprep.mubr.f32.mxu0 0.0
          %588 = vmatmul.mubr.f32.gmra.mrb[0].mxu0 %v460
          %v589 = vpop.f32.mrb[0].mxu0
          %v590 = vadd.f32 %v511, %v589
          %v591 = vpop.f32.mrb[0].mxu0
          %592 = vmatprep.mubr.f32.mxu0 0.0
          %593 = vmatmul.mubr.f32.gmra.mrb[0].mxu0 %v461
          %v594 = vpop.f32.mrb[0].mxu0
          %v595 = vadd.f32 %v511, %v594
          %v596 = vpop.f32.mrb[0].mxu0
          %597 = vmatprep.mubr.f32.mxu0 0.0
          %598 = vmatmul.mubr.f32.gmra.mrb[0].mxu0 %v462
          %v599 = vpop.f32.mrb[0].mxu0
          %v600 = vadd.f32 %v511, %v599
          %v601 = vpop.f32.mrb[0].mxu0
          %602 = vmatprep.mubr.f32.mxu0 0.0
          %603 = vmatmul.mubr.f32.gmra.mrb[0].mxu0 %v463
          %v604 = vpop.f32.mrb[0].mxu0
          %v605 = vadd.f32 %v511, %v604
          %v606 = vpop.f32.mrb[0].mxu0
          %607 = vmatprep.mubr.f32.mxu0 0.0
          %608 = vmatmul.mubr.f32.gmra.mrb[0].mxu0 %v464
          %v609 = vpop.f32.mrb[0].mxu0
          %v610 = vadd.f32 %v511, %v609
          %v611 = vpop.f32.mrb[0].mxu0
          %612 = vmatprep.mubr.f32.mxu0 0.0
          %613 = vmatmul.mubr.f32.gmra.mrb[0].mxu0 %v465
          %v614 = vpop.f32.mrb[0].mxu0
          %v615 = vadd.f32 %v511, %v614
          %v616 = vpop.f32.mrb[0].mxu0
          %617 = vmatprep.mubr.f32.mxu0 0.0
          %618 = vmatmul.mubr.f32.gmra.mrb[0].mxu0 %v466
          %v619 = vpop.f32.mrb[0].mxu0
          %v620 = vadd.f32 %v511, %v619
          %v621 = vpop.f32.mrb[0].mxu0
          %622 = vmatprep.mubr.f32.mxu0 0.0
          %623 = vmatmul.mubr.f32.gmra.mrb[0].mxu0 %v467
          %v624 = vpop.f32.mrb[0].mxu0
          %v625 = vadd.f32 %v511, %v624
          %v626 = vpop.f32.mrb[0].mxu0
          %627 = vmatprep.mubr.f32.mxu0 0.0
          %628 = vmatmul.mubr.f32.gmra.mrb[0].mxu0 %v468
          %v629 = vpop.f32.mrb[0].mxu0
          %v630 = vadd.f32 %v511, %v629
          %v631 = vpop.f32.mrb[0].mxu0
          %632 = vmatprep.mubr.f32.mxu0 0.0
          %633 = vmatmul.mubr.f32.gmra.mrb[0].mxu0 %v469
          %v634 = vpop.f32.mrb[0].mxu0
          %v635 = vadd.f32 %v511, %v634
          %v636 = vpop.f32.mrb[0].mxu0
          %637 = vmatprep.mubr.f32.mxu0 0.0
          %638 = vmatmul.mubr.f32.gmra.mrb[0].mxu0 %v470
          %v639 = vpop.f32.mrb[0].mxu0
          %v640 = vadd.f32 %v511, %v639
          %v641 = vpop.f32.mrb[0].mxu0
          %642 = vmatprep.mubr.f32.mxu0 0.0
          %643 = vmatmul.mubr.f32.gmra.mrb[0].mxu0 %v471
          %v644 = vpop.f32.mrb[0].mxu0
          %v645 = vadd.f32 %v511, %v644
          %v646 = vpop.f32.mrb[0].mxu0
          %647 = vmatprep.mubr.f32.mxu0 0.0
          %648 = vmatmul.mubr.f32.gmra.mrb[0].mxu0 %v472
          %v649 = vpop.f32.mrb[0].mxu0
          %v650 = vadd.f32 %v511, %v649
          %v651 = vpop.f32.mrb[0].mxu0
          %652 = vmatprep.mubr.f32.mxu0 0.0
          %653 = vmatmul.mubr.f32.gmra.mrb[0].mxu0 %v473
          %v654 = vpop.f32.mrb[0].mxu0
          %v655 = vadd.f32 %v511, %v654
          %v656 = vpop.f32.mrb[0].mxu0
          %657 = vmatprep.mubr.f32.mxu0 0.0
          %658 = vmatmul.mubr.f32.gmra.mrb[0].mxu0 %v474
          %v659 = vpop.f32.mrb[0].mxu0
          %v660 = vadd.f32 %v511, %v659
          %v661 = vpop.f32.mrb[0].mxu0
          %662 = vmatprep.mubr.f32.mxu0 0.0
          %663 = vmatmul.mubr.f32.gmra.mrb[0].mxu0 %v475
          %v664 = vpop.f32.mrb[0].mxu0
          %v665 = vadd.f32 %v511, %v664
          %v666 = vpop.f32.mrb[0].mxu0
          %667 = vmatprep.mubr.f32.mxu0 0.0
          %668 = vmatmul.mubr.f32.gmra.mrb[0].mxu0 %v476
          %v669 = vpop.f32.mrb[0].mxu0
          %v670 = vadd.f32 %v511, %v669
          %v671 = vpop.f32.mrb[0].mxu0
          %672 = vmatprep.mubr.f32.mxu0 0.0
          %673 = vmatmul.mubr.f32.gmra.mrb[0].mxu0 %v477
          %v674 = vpop.f32.mrb[0].mxu0
          %v675 = vadd.f32 %v511, %v674
          %v676 = vpop.f32.mrb[0].mxu0
          %677 = vmatprep.mubr.f32.mxu0 0.0
          %678 = vmatmul.mubr.f32.gmra.mrb[0].mxu0 %v478
          %v679 = vpop.f32.mrb[0].mxu0
          %v680 = vadd.f32 %v511, %v679
          %v681 = vpop.f32.mrb[0].mxu0
          %682 = vmatprep.mubr.f32.mxu0 0.0
          %683 = vmatmul.mubr.f32.gmra.mrb[0].mxu0 %v479
          %v684 = vpop.f32.mrb[0].mxu0
          %v685 = vadd.f32 %v511, %v684
          %v686 = vpop.f32.mrb[0].mxu0
          %687 = vmatprep.mubr.f32.mxu0 0.0
          %688 = vmatmul.mubr.f32.gmra.mrb[0].mxu0 %v480
          %v689 = vpop.f32.mrb[0].mxu0
          %v690 = vadd.f32 %v511, %v689
          %v691 = vpop.f32.mrb[0].mxu0
          %692 = vmatprep.mubr.f32.mxu0 0.0
          %693 = vmatmul.mubr.f32.gmra.mrb[0].mxu0 %v481
          %v694 = vpop.f32.mrb[0].mxu0
          %v695 = vadd.f32 %v511, %v694
          %v696 = vpop.f32.mrb[0].mxu0
          %697 = vmatprep.mubr.f32.mxu0 0.0
          %698 = vmatmul.mubr.f32.gmra.mrb[0].mxu0 %v482
          %v699 = vpop.f32.mrb[0].mxu0
          %v700 = vadd.f32 %v511, %v699
          %v701 = vpop.f32.mrb[0].mxu0
          %702 = vmatprep.mubr.f32.mxu0 0.0
          %703 = vmatmul.mubr.f32.gmra.mrb[0].mxu0 %v483
          %v704 = vpop.f32.mrb[0].mxu0
          %v705 = vadd.f32 %v511, %v704
          %v706 = vpop.f32.mrb[0].mxu0
          %707 = vmatprep.mubr.f32.mxu0 0.0
          %708 = vmatmul.mubr.f32.gmra.mrb[0].mxu0 %v484
          %v709 = vpop.f32.mrb[0].mxu0
          %v710 = vadd.f32 %v511, %v709
          %v711 = vpop.f32.mrb[0].mxu0
          %712 = vmatprep.mubr.f32.mxu0 0.0
          %713 = vmatmul.mubr.f32.gmra.mrb[0].mxu0 %v485
          %v714 = vpop.f32.mrb[0].mxu0
          %v715 = vadd.f32 %v511, %v714
          %v716 = vpop.f32.mrb[0].mxu0
          %717 = vmatprep.mubr.f32.mxu0 0.0
          %718 = vmatmul.mubr.f32.gmra.mrb[0].mxu0 %v486
          %v719 = vpop.f32.mrb[0].mxu0
          %v720 = vadd.f32 %v511, %v719
          %v721 = vpop.f32.mrb[0].mxu0
          %722 = vmatprep.mubr.f32.mxu0 0.0
          %723 = vmatmul.mubr.f32.gmra.mrb[0].mxu0 %v487
          %v724 = vpop.f32.mrb[0].mxu0
          %v725 = vadd.f32 %v511, %v724
          %v726 = vpop.f32.mrb[0].mxu0
          %727 = vmatprep.mubr.f32.mxu0 0.0
          %728 = vmatmul.mubr.f32.gmra.mrb[0].mxu0 %v488
          %v729 = vpop.f32.mrb[0].mxu0
          %v730 = vadd.f32 %v511, %v729
          %v731 = vpop.f32.mrb[0].mxu0
          %732 = vmatprep.mubr.f32.mxu0 0.0
          %733 = vmatmul.mubr.f32.gmra.mrb[0].mxu0 %v489
          %v734 = vpop.f32.mrb[0].mxu0
          %v735 = vadd.f32 %v511, %v734
          %v736 = vpop.f32.mrb[0].mxu0
          %737 = vdwg.mxu0
          %v738 = vld [vmem:[%s444] sm:$0xff]
          %v739 = vld [vmem:[%s444 + $0x8] sm:$0xff]
          %v740 = vld [vmem:[%s444 + $0x10] sm:$0xff]
          %v741 = vld [vmem:[%s444 + $0x18] sm:$0xff]
          %v742 = vld [vmem:[%s444 + $0x20] sm:$0xff]
          %v743 = vld [vmem:[%s444 + $0x28] sm:$0xff]
          %v744 = vld [vmem:[%s444 + $0x30] sm:$0xff]
          %v745 = vld [vmem:[%s444 + $0x38] sm:$0xff]
          %v746 = vld [vmem:[%s444 + $0x40] sm:$0xff]
          %v747 = vld [vmem:[%s444 + $0x48] sm:$0xff]
          %v748 = vld [vmem:[%s444 + $0x50] sm:$0xff]
          %v749 = vld [vmem:[%s444 + $0x58] sm:$0xff]
          %v750 = vld [vmem:[%s444 + $0x60] sm:$0xff]
          %v751 = vld [vmem:[%s444 + $0x68] sm:$0xff]
          %v752 = vld [vmem:[%s444 + $0x70] sm:$0xff]
          %v753 = vld [vmem:[%s444 + $0x78] sm:$0xff]
          %v754 = vld [vmem:[%s444 + $0x80] sm:$0xff]
          %v755 = vld [vmem:[%s444 + $0x88] sm:$0xff]
          %v756 = vld [vmem:[%s444 + $0x90] sm:$0xff]
          %v757 = vld [vmem:[%s444 + $0x98] sm:$0xff]
          %v758 = vld [vmem:[%s444 + $0xa0] sm:$0xff]
          %v759 = vld [vmem:[%s444 + $0xa8] sm:$0xff]
          %v760 = vld [vmem:[%s444 + $0xb0] sm:$0xff]
          %v761 = vld [vmem:[%s444 + $0xb8] sm:$0xff]
          %v762 = vld [vmem:[%s444 + $0xc0] sm:$0xff]
          %v763 = vld [vmem:[%s444 + $0xc8] sm:$0xff]
          %v764 = vld [vmem:[%s444 + $0xd0] sm:$0xff]
          %v765 = vld [vmem:[%s444 + $0xd8] sm:$0xff]
          %v766 = vld [vmem:[%s444 + $0xe0] sm:$0xff]
          %v767 = vld [vmem:[%s444 + $0xe8] sm:$0xff]
          %v768 = vld [vmem:[%s444 + $0xf0] sm:$0xff]
          %v769 = vld [vmem:[%s444 + $0xf8] sm:$0xff]
          %771 = vset.pattern.permute.xlu0 0
          %772 = vperm.xlu0 %771, %v738
          %v773 = vpop.permute.xlu0 %772
          %776 = vset.pattern.permute.xlu0 0
          %777 = vperm.xlu0 %776, %v739
          %v778 = vpop.permute.xlu0 %777
          %781 = vset.pattern.permute.xlu0 0
          %782 = vperm.xlu0 %781, %v740
          %v783 = vpop.permute.xlu0 %782
          %786 = vset.pattern.permute.xlu0 0
          %787 = vperm.xlu0 %786, %v741
          %v788 = vpop.permute.xlu0 %787
          %791 = vset.pattern.permute.xlu0 0
          %792 = vperm.xlu0 %791, %v742
          %v793 = vpop.permute.xlu0 %792
          %796 = vset.pattern.permute.xlu0 0
          %797 = vperm.xlu0 %796, %v743
          %v798 = vpop.permute.xlu0 %797
          %801 = vset.pattern.permute.xlu0 0
          %802 = vperm.xlu0 %801, %v744
          %v803 = vpop.permute.xlu0 %802
          %806 = vset.pattern.permute.xlu0 0
          %807 = vperm.xlu0 %806, %v745
          %v808 = vpop.permute.xlu0 %807
          %811 = vset.pattern.permute.xlu0 0
          %812 = vperm.xlu0 %811, %v746
          %v813 = vpop.permute.xlu0 %812
          %816 = vset.pattern.permute.xlu0 0
          %817 = vperm.xlu0 %816, %v747
          %v818 = vpop.permute.xlu0 %817
          %821 = vset.pattern.permute.xlu0 0
          %822 = vperm.xlu0 %821, %v748
          %v823 = vpop.permute.xlu0 %822
          %826 = vset.pattern.permute.xlu0 0
          %827 = vperm.xlu0 %826, %v749
          %v828 = vpop.permute.xlu0 %827
          %831 = vset.pattern.permute.xlu0 0
          %832 = vperm.xlu0 %831, %v750
          %v833 = vpop.permute.xlu0 %832
          %836 = vset.pattern.permute.xlu0 0
          %837 = vperm.xlu0 %836, %v751
          %v838 = vpop.permute.xlu0 %837
          %841 = vset.pattern.permute.xlu0 0
          %842 = vperm.xlu0 %841, %v752
          %v843 = vpop.permute.xlu0 %842
          %846 = vset.pattern.permute.xlu0 0
          %847 = vperm.xlu0 %846, %v753
          %v848 = vpop.permute.xlu0 %847
          %851 = vset.pattern.permute.xlu0 0
          %852 = vperm.xlu0 %851, %v754
          %v853 = vpop.permute.xlu0 %852
          %856 = vset.pattern.permute.xlu0 0
          %857 = vperm.xlu0 %856, %v755
          %v858 = vpop.permute.xlu0 %857
          %861 = vset.pattern.permute.xlu0 0
          %862 = vperm.xlu0 %861, %v756
          %v863 = vpop.permute.xlu0 %862
          %866 = vset.pattern.permute.xlu0 0
          %867 = vperm.xlu0 %866, %v757
          %v868 = vpop.permute.xlu0 %867
          %871 = vset.pattern.permute.xlu0 0
          %872 = vperm.xlu0 %871, %v758
          %v873 = vpop.permute.xlu0 %872
          %876 = vset.pattern.permute.xlu0 0
          %877 = vperm.xlu0 %876, %v759
          %v878 = vpop.permute.xlu0 %877
          %881 = vset.pattern.permute.xlu0 0
          %882 = vperm.xlu0 %881, %v760
          %v883 = vpop.permute.xlu0 %882
          %886 = vset.pattern.permute.xlu0 0
          %887 = vperm.xlu0 %886, %v761
          %v888 = vpop.permute.xlu0 %887
          %891 = vset.pattern.permute.xlu0 0
          %892 = vperm.xlu0 %891, %v762
          %v893 = vpop.permute.xlu0 %892
          %896 = vset.pattern.permute.xlu0 0
          %897 = vperm.xlu0 %896, %v763
          %v898 = vpop.permute.xlu0 %897
          %901 = vset.pattern.permute.xlu0 0
          %902 = vperm.xlu0 %901, %v764
          %v903 = vpop.permute.xlu0 %902
          %906 = vset.pattern.permute.xlu0 0
          %907 = vperm.xlu0 %906, %v765
          %v908 = vpop.permute.xlu0 %907
          %911 = vset.pattern.permute.xlu0 0
          %912 = vperm.xlu0 %911, %v766
          %v913 = vpop.permute.xlu0 %912
          %916 = vset.pattern.permute.xlu0 0
          %917 = vperm.xlu0 %916, %v767
          %v918 = vpop.permute.xlu0 %917
          %921 = vset.pattern.permute.xlu0 0
          %922 = vperm.xlu0 %921, %v768
          %v923 = vpop.permute.xlu0 %922
          %926 = vset.pattern.permute.xlu0 0
          %927 = vperm.xlu0 %926, %v769
          %v928 = vpop.permute.xlu0 %927
          %v930 = vmul.f32 %v773, %v580
          %v931 = vmul.f32 %v778, %v585
          %v932 = vmul.f32 %v783, %v590
          %v933 = vmul.f32 %v788, %v595
          %v934 = vmul.f32 %v793, %v600
          %v935 = vmul.f32 %v798, %v605
          %v936 = vmul.f32 %v803, %v610
          %v937 = vmul.f32 %v808, %v615
          %v938 = vmul.f32 %v813, %v620
          %v939 = vmul.f32 %v818, %v625
          %v940 = vmul.f32 %v823, %v630
          %v941 = vmul.f32 %v828, %v635
          %v942 = vmul.f32 %v833, %v640
          %v943 = vmul.f32 %v838, %v645
          %v944 = vmul.f32 %v843, %v650
          %v945 = vmul.f32 %v848, %v655
          %v946 = vmul.f32 %v853, %v660
          %v947 = vmul.f32 %v858, %v665
          %v948 = vmul.f32 %v863, %v670
          %v949 = vmul.f32 %v868, %v675
          %v950 = vmul.f32 %v873, %v680
          %v951 = vmul.f32 %v878, %v685
          %v952 = vmul.f32 %v883, %v690
          %v953 = vmul.f32 %v888, %v695
          %v954 = vmul.f32 %v893, %v700
          %v955 = vmul.f32 %v898, %v705
          %v956 = vmul.f32 %v903, %v710
          %v957 = vmul.f32 %v908, %v715
          %v958 = vmul.f32 %v913, %v720
          %v959 = vmul.f32 %v918, %v725
          %v960 = vmul.f32 %v923, %v730
          %v961 = vmul.f32 %v928, %v735
          %v962 = vsub.f32 1.0, %v738
          %v963 = vsub.f32 1.0, %v739
          %v964 = vsub.f32 1.0, %v740
          %v965 = vsub.f32 1.0, %v741
          %v966 = vsub.f32 1.0, %v742
          %v967 = vsub.f32 1.0, %v743
          %v968 = vsub.f32 1.0, %v744
          %v969 = vsub.f32 1.0, %v745
          %v970 = vsub.f32 1.0, %v746
          %v971 = vsub.f32 1.0, %v747
          %v972 = vsub.f32 1.0, %v748
          %v973 = vsub.f32 1.0, %v749
          %v974 = vsub.f32 1.0, %v750
          %v975 = vsub.f32 1.0, %v751
          %v976 = vsub.f32 1.0, %v752
          %v977 = vsub.f32 1.0, %v753
          %v978 = vsub.f32 1.0, %v754
          %v979 = vsub.f32 1.0, %v755
          %v980 = vsub.f32 1.0, %v756
          %v981 = vsub.f32 1.0, %v757
          %v982 = vsub.f32 1.0, %v758
          %v983 = vsub.f32 1.0, %v759
          %v984 = vsub.f32 1.0, %v760
          %v985 = vsub.f32 1.0, %v761
          %v986 = vsub.f32 1.0, %v762
          %v987 = vsub.f32 1.0, %v763
          %v988 = vsub.f32 1.0, %v764
          %v989 = vsub.f32 1.0, %v765
          %v990 = vsub.f32 1.0, %v766
          %v991 = vsub.f32 1.0, %v767
          %v992 = vsub.f32 1.0, %v768
          %v993 = vsub.f32 1.0, %v769
          %v994 = vld [vmem:[%s371] sm:$0xff]
          %v995 = vld [vmem:[%s371 + $0x8] sm:$0xff]
          %v996 = vld [vmem:[%s371 + $0x10] sm:$0xff]
          %v997 = vld [vmem:[%s371 + $0x18] sm:$0xff]
          %v998 = vld [vmem:[%s371 + $0x20] sm:$0xff]
          %v999 = vld [vmem:[%s371 + $0x28] sm:$0xff]
          %v1000 = vld [vmem:[%s371 + $0x30] sm:$0xff]
          %v1001 = vld [vmem:[%s371 + $0x38] sm:$0xff]
          %v1002 = vld [vmem:[%s371 + $0x40] sm:$0xff]
          %v1003 = vld [vmem:[%s371 + $0x48] sm:$0xff]
          %v1004 = vld [vmem:[%s371 + $0x50] sm:$0xff]
          %v1005 = vld [vmem:[%s371 + $0x58] sm:$0xff]
          %v1006 = vld [vmem:[%s371 + $0x60] sm:$0xff]
          %v1007 = vld [vmem:[%s371 + $0x68] sm:$0xff]
          %v1008 = vld [vmem:[%s371 + $0x70] sm:$0xff]
          %v1009 = vld [vmem:[%s371 + $0x78] sm:$0xff]
          %v1010 = vld [vmem:[%s371 + $0x80] sm:$0xff]
          %v1011 = vld [vmem:[%s371 + $0x88] sm:$0xff]
          %v1012 = vld [vmem:[%s371 + $0x90] sm:$0xff]
          %v1013 = vld [vmem:[%s371 + $0x98] sm:$0xff]
          %v1014 = vld [vmem:[%s371 + $0xa0] sm:$0xff]
          %v1015 = vld [vmem:[%s371 + $0xa8] sm:$0xff]
          %v1016 = vld [vmem:[%s371 + $0xb0] sm:$0xff]
          %v1017 = vld [vmem:[%s371 + $0xb8] sm:$0xff]
          %v1018 = vld [vmem:[%s371 + $0xc0] sm:$0xff]
          %v1019 = vld [vmem:[%s371 + $0xc8] sm:$0xff]
          %v1020 = vld [vmem:[%s371 + $0xd0] sm:$0xff]
          %v1021 = vld [vmem:[%s371 + $0xd8] sm:$0xff]
          %v1022 = vld [vmem:[%s371 + $0xe0] sm:$0xff]
          %v1023 = vld [vmem:[%s371 + $0xe8] sm:$0xff]
          %v1024 = vld [vmem:[%s371 + $0xf0] sm:$0xff]
          %v1025 = vld [vmem:[%s371 + $0xf8] sm:$0xff]
          %1027 = vset.pattern.permute.xlu0 0
          %1028 = vperm.xlu0 %1027, %v962
          %v1029 = vpop.permute.xlu0 %1028
          %1032 = vset.pattern.permute.xlu0 0
          %1033 = vperm.xlu0 %1032, %v963
          %v1034 = vpop.permute.xlu0 %1033
          %1037 = vset.pattern.permute.xlu0 0
          %1038 = vperm.xlu0 %1037, %v964
          %v1039 = vpop.permute.xlu0 %1038
          %1042 = vset.pattern.permute.xlu0 0
          %1043 = vperm.xlu0 %1042, %v965
          %v1044 = vpop.permute.xlu0 %1043
          %1047 = vset.pattern.permute.xlu0 0
          %1048 = vperm.xlu0 %1047, %v966
          %v1049 = vpop.permute.xlu0 %1048
          %1052 = vset.pattern.permute.xlu0 0
          %1053 = vperm.xlu0 %1052, %v967
          %v1054 = vpop.permute.xlu0 %1053
          %1057 = vset.pattern.permute.xlu0 0
          %1058 = vperm.xlu0 %1057, %v968
          %v1059 = vpop.permute.xlu0 %1058
          %1062 = vset.pattern.permute.xlu0 0
          %1063 = vperm.xlu0 %1062, %v969
          %v1064 = vpop.permute.xlu0 %1063
          %1067 = vset.pattern.permute.xlu0 0
          %1068 = vperm.xlu0 %1067, %v970
          %v1069 = vpop.permute.xlu0 %1068
          %1072 = vset.pattern.permute.xlu0 0
          %1073 = vperm.xlu0 %1072, %v971
          %v1074 = vpop.permute.xlu0 %1073
          %1077 = vset.pattern.permute.xlu0 0
          %1078 = vperm.xlu0 %1077, %v972
          %v1079 = vpop.permute.xlu0 %1078
          %1082 = vset.pattern.permute.xlu0 0
          %1083 = vperm.xlu0 %1082, %v973
          %v1084 = vpop.permute.xlu0 %1083
          %1087 = vset.pattern.permute.xlu0 0
          %1088 = vperm.xlu0 %1087, %v974
          %v1089 = vpop.permute.xlu0 %1088
          %1092 = vset.pattern.permute.xlu0 0
          %1093 = vperm.xlu0 %1092, %v975
          %v1094 = vpop.permute.xlu0 %1093
          %1097 = vset.pattern.permute.xlu0 0
          %1098 = vperm.xlu0 %1097, %v976
          %v1099 = vpop.permute.xlu0 %1098
          %1102 = vset.pattern.permute.xlu0 0
          %1103 = vperm.xlu0 %1102, %v977
          %v1104 = vpop.permute.xlu0 %1103
          %1107 = vset.pattern.permute.xlu0 0
          %1108 = vperm.xlu0 %1107, %v978
          %v1109 = vpop.permute.xlu0 %1108
          %1112 = vset.pattern.permute.xlu0 0
          %1113 = vperm.xlu0 %1112, %v979
          %v1114 = vpop.permute.xlu0 %1113
          %1117 = vset.pattern.permute.xlu0 0
          %1118 = vperm.xlu0 %1117, %v980
          %v1119 = vpop.permute.xlu0 %1118
          %1122 = vset.pattern.permute.xlu0 0
          %1123 = vperm.xlu0 %1122, %v981
          %v1124 = vpop.permute.xlu0 %1123
          %1127 = vset.pattern.permute.xlu0 0
          %1128 = vperm.xlu0 %1127, %v982
          %v1129 = vpop.permute.xlu0 %1128
          %1132 = vset.pattern.permute.xlu0 0
          %1133 = vperm.xlu0 %1132, %v983
          %v1134 = vpop.permute.xlu0 %1133
          %1137 = vset.pattern.permute.xlu0 0
          %1138 = vperm.xlu0 %1137, %v984
          %v1139 = vpop.permute.xlu0 %1138
          %1142 = vset.pattern.permute.xlu0 0
          %1143 = vperm.xlu0 %1142, %v985
          %v1144 = vpop.permute.xlu0 %1143
          %1147 = vset.pattern.permute.xlu0 0
          %1148 = vperm.xlu0 %1147, %v986
          %v1149 = vpop.permute.xlu0 %1148
          %1152 = vset.pattern.permute.xlu0 0
          %1153 = vperm.xlu0 %1152, %v987
          %v1154 = vpop.permute.xlu0 %1153
          %1157 = vset.pattern.permute.xlu0 0
          %1158 = vperm.xlu0 %1157, %v988
          %v1159 = vpop.permute.xlu0 %1158
          %1162 = vset.pattern.permute.xlu0 0
          %1163 = vperm.xlu0 %1162, %v989
          %v1164 = vpop.permute.xlu0 %1163
          %1167 = vset.pattern.permute.xlu0 0
          %1168 = vperm.xlu0 %1167, %v990
          %v1169 = vpop.permute.xlu0 %1168
          %1172 = vset.pattern.permute.xlu0 0
          %1173 = vperm.xlu0 %1172, %v991
          %v1174 = vpop.permute.xlu0 %1173
          %1177 = vset.pattern.permute.xlu0 0
          %1178 = vperm.xlu0 %1177, %v992
          %v1179 = vpop.permute.xlu0 %1178
          %1182 = vset.pattern.permute.xlu0 0
          %1183 = vperm.xlu0 %1182, %v993
          %v1184 = vpop.permute.xlu0 %1183
          %v1186 = vmul.f32 %v1029, %v994
          %v1187 = vmul.f32 %v1034, %v995
          %v1188 = vmul.f32 %v1039, %v996
          %v1189 = vmul.f32 %v1044, %v997
          %v1190 = vmul.f32 %v1049, %v998
          %v1191 = vmul.f32 %v1054, %v999
          %v1192 = vmul.f32 %v1059, %v1000
          %v1193 = vmul.f32 %v1064, %v1001
          %v1194 = vmul.f32 %v1069, %v1002
          %v1195 = vmul.f32 %v1074, %v1003
          %v1196 = vmul.f32 %v1079, %v1004
          %v1197 = vmul.f32 %v1084, %v1005
          %v1198 = vmul.f32 %v1089, %v1006
          %v1199 = vmul.f32 %v1094, %v1007
          %v1200 = vmul.f32 %v1099, %v1008
          %v1201 = vmul.f32 %v1104, %v1009
          %v1202 = vmul.f32 %v1109, %v1010
          %v1203 = vmul.f32 %v1114, %v1011
          %v1204 = vmul.f32 %v1119, %v1012
          %v1205 = vmul.f32 %v1124, %v1013
          %v1206 = vmul.f32 %v1129, %v1014
          %v1207 = vmul.f32 %v1134, %v1015
          %v1208 = vmul.f32 %v1139, %v1016
          %v1209 = vmul.f32 %v1144, %v1017
          %v1210 = vmul.f32 %v1149, %v1018
          %v1211 = vmul.f32 %v1154, %v1019
          %v1212 = vmul.f32 %v1159, %v1020
          %v1213 = vmul.f32 %v1164, %v1021
          %v1214 = vmul.f32 %v1169, %v1022
          %v1215 = vmul.f32 %v1174, %v1023
          %v1216 = vmul.f32 %v1179, %v1024
          %v1217 = vmul.f32 %v1184, %v1025
          %v1218 = vadd.f32 %v930, %v1186
          %v1219 = vadd.f32 %v931, %v1187
          %v1220 = vadd.f32 %v932, %v1188
          %v1221 = vadd.f32 %v933, %v1189
          %v1222 = vadd.f32 %v934, %v1190
          %v1223 = vadd.f32 %v935, %v1191
          %v1224 = vadd.f32 %v936, %v1192
          %v1225 = vadd.f32 %v937, %v1193
          %v1226 = vadd.f32 %v938, %v1194
          %v1227 = vadd.f32 %v939, %v1195
          %v1228 = vadd.f32 %v940, %v1196
          %v1229 = vadd.f32 %v941, %v1197
          %v1230 = vadd.f32 %v942, %v1198
          %v1231 = vadd.f32 %v943, %v1199
          %v1232 = vadd.f32 %v944, %v1200
          %v1233 = vadd.f32 %v945, %v1201
          %v1234 = vadd.f32 %v946, %v1202
          %v1235 = vadd.f32 %v947, %v1203
          %v1236 = vadd.f32 %v948, %v1204
          %v1237 = vadd.f32 %v949, %v1205
          %v1238 = vadd.f32 %v950, %v1206
          %v1239 = vadd.f32 %v951, %v1207
          %v1240 = vadd.f32 %v952, %v1208
          %v1241 = vadd.f32 %v953, %v1209
          %v1242 = vadd.f32 %v954, %v1210
          %v1243 = vadd.f32 %v955, %v1211
          %v1244 = vadd.f32 %v956, %v1212
          %v1245 = vadd.f32 %v957, %v1213
          %v1246 = vadd.f32 %v958, %v1214
          %v1247 = vadd.f32 %v959, %v1215
          %v1248 = vadd.f32 %v960, %v1216
          %v1249 = vadd.f32 %v961, %v1217
          %1250 = vst [vmem:[%s431] sm:$0xff] %v1218
          %1251 = vst [vmem:[%s431 + $0x8] sm:$0xff] %v1219
          %1252 = vst [vmem:[%s431 + $0x10] sm:$0xff] %v1220
          %1253 = vst [vmem:[%s431 + $0x18] sm:$0xff] %v1221
          %1254 = vst [vmem:[%s431 + $0x20] sm:$0xff] %v1222
          %1255 = vst [vmem:[%s431 + $0x28] sm:$0xff] %v1223
          %1256 = vst [vmem:[%s431 + $0x30] sm:$0xff] %v1224
          %1257 = vst [vmem:[%s431 + $0x38] sm:$0xff] %v1225
          %1258 = vst [vmem:[%s431 + $0x40] sm:$0xff] %v1226
          %1259 = vst [vmem:[%s431 + $0x48] sm:$0xff] %v1227
          %1260 = vst [vmem:[%s431 + $0x50] sm:$0xff] %v1228
          %1261 = vst [vmem:[%s431 + $0x58] sm:$0xff] %v1229
          %1262 = vst [vmem:[%s431 + $0x60] sm:$0xff] %v1230
          %1263 = vst [vmem:[%s431 + $0x68] sm:$0xff] %v1231
          %1264 = vst [vmem:[%s431 + $0x70] sm:$0xff] %v1232
          %1265 = vst [vmem:[%s431 + $0x78] sm:$0xff] %v1233
          %1266 = vst [vmem:[%s431 + $0x80] sm:$0xff] %v1234
          %1267 = vst [vmem:[%s431 + $0x88] sm:$0xff] %v1235
          %1268 = vst [vmem:[%s431 + $0x90] sm:$0xff] %v1236
          %1269 = vst [vmem:[%s431 + $0x98] sm:$0xff] %v1237
          %1270 = vst [vmem:[%s431 + $0xa0] sm:$0xff] %v1238
          %1271 = vst [vmem:[%s431 + $0xa8] sm:$0xff] %v1239
          %1272 = vst [vmem:[%s431 + $0xb0] sm:$0xff] %v1240
          %1273 = vst [vmem:[%s431 + $0xb8] sm:$0xff] %v1241
          %1274 = vst [vmem:[%s431 + $0xc0] sm:$0xff] %v1242
          %1275 = vst [vmem:[%s431 + $0xc8] sm:$0xff] %v1243
          %1276 = vst [vmem:[%s431 + $0xd0] sm:$0xff] %v1244
          %1277 = vst [vmem:[%s431 + $0xd8] sm:$0xff] %v1245
          %1278 = vst [vmem:[%s431 + $0xe0] sm:$0xff] %v1246
          %1279 = vst [vmem:[%s431 + $0xe8] sm:$0xff] %v1247
          %1280 = vst [vmem:[%s431 + $0xf0] sm:$0xff] %v1248
          %1281 = vst [vmem:[%s431 + $0xf8] sm:$0xff] %v1249
          %v1282 = vmul.f32 %v1218, %v1218
          %v1283 = vmul.f32 %v1219, %v1219
          %v1284 = vmul.f32 %v1220, %v1220
          %v1285 = vmul.f32 %v1221, %v1221
          %v1286 = vmul.f32 %v1222, %v1222
          %v1287 = vmul.f32 %v1223, %v1223
          %v1288 = vmul.f32 %v1224, %v1224
          %v1289 = vmul.f32 %v1225, %v1225
          %v1290 = vmul.f32 %v1226, %v1226
          %v1291 = vmul.f32 %v1227, %v1227
          %v1292 = vmul.f32 %v1228, %v1228
          %v1293 = vmul.f32 %v1229, %v1229
          %v1294 = vmul.f32 %v1230, %v1230
          %v1295 = vmul.f32 %v1231, %v1231
          %v1296 = vmul.f32 %v1232, %v1232
          %v1297 = vmul.f32 %v1233, %v1233
          %v1298 = vmul.f32 %v1234, %v1234
          %v1299 = vmul.f32 %v1235, %v1235
          %v1300 = vmul.f32 %v1236, %v1236
          %v1301 = vmul.f32 %v1237, %v1237
          %v1302 = vmul.f32 %v1238, %v1238
          %v1303 = vmul.f32 %v1239, %v1239
          %v1304 = vmul.f32 %v1240, %v1240
          %v1305 = vmul.f32 %v1241, %v1241
          %v1306 = vmul.f32 %v1242, %v1242
          %v1307 = vmul.f32 %v1243, %v1243
          %v1308 = vmul.f32 %v1244, %v1244
          %v1309 = vmul.f32 %v1245, %v1245
          %v1310 = vmul.f32 %v1246, %v1246
          %v1311 = vmul.f32 %v1247, %v1247
          %v1312 = vmul.f32 %v1248, %v1248
          %v1313 = vmul.f32 %v1249, %v1249
          %1314 = vadd.xlane.f32.xlu0 %v1282
          %v1315 = vpop.xlane.xlu0 %1314
          %1316 = vadd.xlane.f32.xlu0 %v1283
          %v1317 = vpop.xlane.xlu0 %1316
          %1318 = vadd.xlane.f32.xlu0 %v1284
          %v1319 = vpop.xlane.xlu0 %1318
          %1320 = vadd.xlane.f32.xlu0 %v1285
          %v1321 = vpop.xlane.xlu0 %1320
          %1322 = vadd.xlane.f32.xlu0 %v1286
          %v1323 = vpop.xlane.xlu0 %1322
          %1324 = vadd.xlane.f32.xlu0 %v1287
          %v1325 = vpop.xlane.xlu0 %1324
          %1326 = vadd.xlane.f32.xlu0 %v1288
          %v1327 = vpop.xlane.xlu0 %1326
          %1328 = vadd.xlane.f32.xlu0 %v1289
          %v1329 = vpop.xlane.xlu0 %1328
          %1330 = vadd.xlane.f32.xlu0 %v1290
          %v1331 = vpop.xlane.xlu0 %1330
          %1332 = vadd.xlane.f32.xlu0 %v1291
          %v1333 = vpop.xlane.xlu0 %1332
          %1334 = vadd.xlane.f32.xlu0 %v1292
          %v1335 = vpop.xlane.xlu0 %1334
          %1336 = vadd.xlane.f32.xlu0 %v1293
          %v1337 = vpop.xlane.xlu0 %1336
          %1338 = vadd.xlane.f32.xlu0 %v1294
          %v1339 = vpop.xlane.xlu0 %1338
          %1340 = vadd.xlane.f32.xlu0 %v1295
          %v1341 = vpop.xlane.xlu0 %1340
          %1342 = vadd.xlane.f32.xlu0 %v1296
          %v1343 = vpop.xlane.xlu0 %1342
          %1344 = vadd.xlane.f32.xlu0 %v1297
          %v1345 = vpop.xlane.xlu0 %1344
          %1346 = vadd.xlane.f32.xlu0 %v1298
          %v1347 = vpop.xlane.xlu0 %1346
          %1348 = vadd.xlane.f32.xlu0 %v1299
          %v1349 = vpop.xlane.xlu0 %1348
          %1350 = vadd.xlane.f32.xlu0 %v1300
          %v1351 = vpop.xlane.xlu0 %1350
          %1352 = vadd.xlane.f32.xlu0 %v1301
          %v1353 = vpop.xlane.xlu0 %1352
          %1354 = vadd.xlane.f32.xlu0 %v1302
          %v1355 = vpop.xlane.xlu0 %1354
          %1356 = vadd.xlane.f32.xlu0 %v1303
          %v1357 = vpop.xlane.xlu0 %1356
          %1358 = vadd.xlane.f32.xlu0 %v1304
          %v1359 = vpop.xlane.xlu0 %1358
          %1360 = vadd.xlane.f32.xlu0 %v1305
          %v1361 = vpop.xlane.xlu0 %1360
          %1362 = vadd.xlane.f32.xlu0 %v1306
          %v1363 = vpop.xlane.xlu0 %1362
          %1364 = vadd.xlane.f32.xlu0 %v1307
          %v1365 = vpop.xlane.xlu0 %1364
          %1366 = vadd.xlane.f32.xlu0 %v1308
          %v1367 = vpop.xlane.xlu0 %1366
          %1368 = vadd.xlane.f32.xlu0 %v1309
          %v1369 = vpop.xlane.xlu0 %1368
          %1370 = vadd.xlane.f32.xlu0 %v1310
          %v1371 = vpop.xlane.xlu0 %1370
          %1372 = vadd.xlane.f32.xlu0 %v1311
          %v1373 = vpop.xlane.xlu0 %1372
          %1374 = vadd.xlane.f32.xlu0 %v1312
          %v1375 = vpop.xlane.xlu0 %1374
          %1376 = vadd.xlane.f32.xlu0 %v1313
          %v1377 = vpop.xlane.xlu0 %1376
          %vm1378 = vcmask 7168
          %1379 = vst.msk [vmem:[#allocation2] sm:$0xff] %vm1378, %v1315
          %1380 = vst.msk [vmem:[#allocation2 + $0x8] sm:$0xff] %vm1378, %v1317
          %1381 = vst.msk [vmem:[#allocation2 + $0x10] sm:$0xff] %vm1378, %v1319
          %1382 = vst.msk [vmem:[#allocation2 + $0x18] sm:$0xff] %vm1378, %v1321
          %1383 = vst.msk [vmem:[#allocation2 + $0x20] sm:$0xff] %vm1378, %v1323
          %1384 = vst.msk [vmem:[#allocation2 + $0x28] sm:$0xff] %vm1378, %v1325
          %1385 = vst.msk [vmem:[#allocation2 + $0x30] sm:$0xff] %vm1378, %v1327
          %1386 = vst.msk [vmem:[#allocation2 + $0x38] sm:$0xff] %vm1378, %v1329
          %1387 = vst.msk [vmem:[#allocation2 + $0x40] sm:$0xff] %vm1378, %v1331
          %1388 = vst.msk [vmem:[#allocation2 + $0x48] sm:$0xff] %vm1378, %v1333
          %1389 = vst.msk [vmem:[#allocation2 + $0x50] sm:$0xff] %vm1378, %v1335
          %1390 = vst.msk [vmem:[#allocation2 + $0x58] sm:$0xff] %vm1378, %v1337
          %1391 = vst.msk [vmem:[#allocation2 + $0x60] sm:$0xff] %vm1378, %v1339
          %1392 = vst.msk [vmem:[#allocation2 + $0x68] sm:$0xff] %vm1378, %v1341
          %1393 = vst.msk [vmem:[#allocation2 + $0x70] sm:$0xff] %vm1378, %v1343
          %1394 = vst.msk [vmem:[#allocation2 + $0x78] sm:$0xff] %vm1378, %v1345
          %1395 = vst.msk [vmem:[#allocation2 + $0x80] sm:$0xff] %vm1378, %v1347
          %1396 = vst.msk [vmem:[#allocation2 + $0x88] sm:$0xff] %vm1378, %v1349
          %1397 = vst.msk [vmem:[#allocation2 + $0x90] sm:$0xff] %vm1378, %v1351
          %1398 = vst.msk [vmem:[#allocation2 + $0x98] sm:$0xff] %vm1378, %v1353
          %1399 = vst.msk [vmem:[#allocation2 + $0xa0] sm:$0xff] %vm1378, %v1355
          %1400 = vst.msk [vmem:[#allocation2 + $0xa8] sm:$0xff] %vm1378, %v1357
          %1401 = vst.msk [vmem:[#allocation2 + $0xb0] sm:$0xff] %vm1378, %v1359
          %1402 = vst.msk [vmem:[#allocation2 + $0xb8] sm:$0xff] %vm1378, %v1361
          %1403 = vst.msk [vmem:[#allocation2 + $0xc0] sm:$0xff] %vm1378, %v1363
          %1404 = vst.msk [vmem:[#allocation2 + $0xc8] sm:$0xff] %vm1378, %v1365
          %1405 = vst.msk [vmem:[#allocation2 + $0xd0] sm:$0xff] %vm1378, %v1367
          %1406 = vst.msk [vmem:[#allocation2 + $0xd8] sm:$0xff] %vm1378, %v1369
          %1407 = vst.msk [vmem:[#allocation2 + $0xe0] sm:$0xff] %vm1378, %v1371
          %1408 = vst.msk [vmem:[#allocation2 + $0xe8] sm:$0xff] %vm1378, %v1373
          %1409 = vst.msk [vmem:[#allocation2 + $0xf0] sm:$0xff] %vm1378, %v1375
          %1410 = vst.msk [vmem:[#allocation2 + $0xf8] sm:$0xff] %vm1378, %v1377
          %1411 = vst [vmem:[#allocation3] sm:$0xff] 0.0
          %1412 = vst [vmem:[#allocation3 + $0x8] sm:$0xff] 0.0
          %1413 = vst [vmem:[#allocation3 + $0x10] sm:$0xff] 0.0
          %1414 = vst [vmem:[#allocation3 + $0x18] sm:$0xff] 0.0
          %1415 = vst [vmem:[#allocation3 + $0x20] sm:$0xff] 0.0
          %1416 = vst [vmem:[#allocation3 + $0x28] sm:$0xff] 0.0
          %1417 = vst [vmem:[#allocation3 + $0x30] sm:$0xff] 0.0
          %1418 = vst [vmem:[#allocation3 + $0x38] sm:$0xff] 0.0
          %1419 = vst [vmem:[#allocation3 + $0x40] sm:$0xff] 0.0
          %1420 = vst [vmem:[#allocation3 + $0x48] sm:$0xff] 0.0
          %1421 = vst [vmem:[#allocation3 + $0x50] sm:$0xff] 0.0
          %1422 = vst [vmem:[#allocation3 + $0x58] sm:$0xff] 0.0
          %1423 = vst [vmem:[#allocation3 + $0x60] sm:$0xff] 0.0
          %1424 = vst [vmem:[#allocation3 + $0x68] sm:$0xff] 0.0
          %1425 = vst [vmem:[#allocation3 + $0x70] sm:$0xff] 0.0
          %1426 = vst [vmem:[#allocation3 + $0x78] sm:$0xff] 0.0
          %1427 = vst [vmem:[#allocation3 + $0x80] sm:$0xff] 0.0
          %1428 = vst [vmem:[#allocation3 + $0x88] sm:$0xff] 0.0
          %1429 = vst [vmem:[#allocation3 + $0x90] sm:$0xff] 0.0
          %1430 = vst [vmem:[#allocation3 + $0x98] sm:$0xff] 0.0
          %1431 = vst [vmem:[#allocation3 + $0xa0] sm:$0xff] 0.0
          %1432 = vst [vmem:[#allocation3 + $0xa8] sm:$0xff] 0.0
          %1433 = vst [vmem:[#allocation3 + $0xb0] sm:$0xff] 0.0
          %1434 = vst [vmem:[#allocation3 + $0xb8] sm:$0xff] 0.0
          %1435 = vst [vmem:[#allocation3 + $0xc0] sm:$0xff] 0.0
          %1436 = vst [vmem:[#allocation3 + $0xc8] sm:$0xff] 0.0
          %1437 = vst [vmem:[#allocation3 + $0xd0] sm:$0xff] 0.0
          %1438 = vst [vmem:[#allocation3 + $0xd8] sm:$0xff] 0.0
          %1439 = vst [vmem:[#allocation3 + $0xe0] sm:$0xff] 0.0
          %1440 = vst [vmem:[#allocation3 + $0xe8] sm:$0xff] 0.0
          %1441 = vst [vmem:[#allocation3 + $0xf0] sm:$0xff] 0.0
          %1442 = vst [vmem:[#allocation3 + $0xf8] sm:$0xff] 0.0
          %1443 = vst [vmem:[#allocation4] sm:$0xff] 1e+16
          %1444 = vst [vmem:[#allocation4 + $0x8] sm:$0xff] 1e+16
          %1445 = vst [vmem:[#allocation4 + $0x10] sm:$0xff] 1e+16
          %1446 = vst [vmem:[#allocation4 + $0x18] sm:$0xff] 1e+16
          %1447 = vst [vmem:[#allocation4 + $0x20] sm:$0xff] 1e+16
          %1448 = vst [vmem:[#allocation4 + $0x28] sm:$0xff] 1e+16
          %1449 = vst [vmem:[#allocation4 + $0x30] sm:$0xff] 1e+16
          %1450 = vst [vmem:[#allocation4 + $0x38] sm:$0xff] 1e+16
          %1451 = vst [vmem:[#allocation4 + $0x40] sm:$0xff] 1e+16
          %1452 = vst [vmem:[#allocation4 + $0x48] sm:$0xff] 1e+16
          %1453 = vst [vmem:[#allocation4 + $0x50] sm:$0xff] 1e+16
          %1454 = vst [vmem:[#allocation4 + $0x58] sm:$0xff] 1e+16
          %1455 = vst [vmem:[#allocation4 + $0x60] sm:$0xff] 1e+16
          %1456 = vst [vmem:[#allocation4 + $0x68] sm:$0xff] 1e+16
          %1457 = vst [vmem:[#allocation4 + $0x70] sm:$0xff] 1e+16
          %1458 = vst [vmem:[#allocation4 + $0x78] sm:$0xff] 1e+16
          %1459 = vst [vmem:[#allocation4 + $0x80] sm:$0xff] 1e+16
          %1460 = vst [vmem:[#allocation4 + $0x88] sm:$0xff] 1e+16
          %1461 = vst [vmem:[#allocation4 + $0x90] sm:$0xff] 1e+16
          %1462 = vst [vmem:[#allocation4 + $0x98] sm:$0xff] 1e+16
          %1463 = vst [vmem:[#allocation4 + $0xa0] sm:$0xff] 1e+16
          %1464 = vst [vmem:[#allocation4 + $0xa8] sm:$0xff] 1e+16
          %1465 = vst [vmem:[#allocation4 + $0xb0] sm:$0xff] 1e+16
          %1466 = vst [vmem:[#allocation4 + $0xb8] sm:$0xff] 1e+16
          %1467 = vst [vmem:[#allocation4 + $0xc0] sm:$0xff] 1e+16
          %1468 = vst [vmem:[#allocation4 + $0xc8] sm:$0xff] 1e+16
          %1469 = vst [vmem:[#allocation4 + $0xd0] sm:$0xff] 1e+16
          %1470 = vst [vmem:[#allocation4 + $0xd8] sm:$0xff] 1e+16
          %1471 = vst [vmem:[#allocation4 + $0xe0] sm:$0xff] 1e+16
          %1472 = vst [vmem:[#allocation4 + $0xe8] sm:$0xff] 1e+16
          %1473 = vst [vmem:[#allocation4 + $0xf0] sm:$0xff] 1e+16
          %1474 = vst [vmem:[#allocation4 + $0xf8] sm:$0xff] 1e+16
        $region64: #{tpu_custom_call.1} parent=47 // pred_fallthru
          _
        %v1475 = vld [vmem:[%s431] sm:$0xff]
        %v1476 = vld [vmem:[%s431 + $0x8] sm:$0xff]
        %v1477 = vld [vmem:[%s431 + $0x10] sm:$0xff]
        %v1478 = vld [vmem:[%s431 + $0x18] sm:$0xff]
        %v1479 = vld [vmem:[%s431 + $0x20] sm:$0xff]
        %v1480 = vld [vmem:[%s431 + $0x28] sm:$0xff]
        %v1481 = vld [vmem:[%s431 + $0x30] sm:$0xff]
        %v1482 = vld [vmem:[%s431 + $0x38] sm:$0xff]
        %v1483 = vld [vmem:[%s431 + $0x40] sm:$0xff]
        %v1484 = vld [vmem:[%s431 + $0x48] sm:$0xff]
        %v1485 = vld [vmem:[%s431 + $0x50] sm:$0xff]
        %v1486 = vld [vmem:[%s431 + $0x58] sm:$0xff]
        %v1487 = vld [vmem:[%s431 + $0x60] sm:$0xff]
        %v1488 = vld [vmem:[%s431 + $0x68] sm:$0xff]
        %v1489 = vld [vmem:[%s431 + $0x70] sm:$0xff]
        %v1490 = vld [vmem:[%s431 + $0x78] sm:$0xff]
        %v1491 = vld [vmem:[%s431 + $0x80] sm:$0xff]
        %v1492 = vld [vmem:[%s431 + $0x88] sm:$0xff]
        %v1493 = vld [vmem:[%s431 + $0x90] sm:$0xff]
        %v1494 = vld [vmem:[%s431 + $0x98] sm:$0xff]
        %v1495 = vld [vmem:[%s431 + $0xa0] sm:$0xff]
        %v1496 = vld [vmem:[%s431 + $0xa8] sm:$0xff]
        %v1497 = vld [vmem:[%s431 + $0xb0] sm:$0xff]
        %v1498 = vld [vmem:[%s431 + $0xb8] sm:$0xff]
        %v1499 = vld [vmem:[%s431 + $0xc0] sm:$0xff]
        %v1500 = vld [vmem:[%s431 + $0xc8] sm:$0xff]
        %v1501 = vld [vmem:[%s431 + $0xd0] sm:$0xff]
        %v1502 = vld [vmem:[%s431 + $0xd8] sm:$0xff]
        %v1503 = vld [vmem:[%s431 + $0xe0] sm:$0xff]
        %v1504 = vld [vmem:[%s431 + $0xe8] sm:$0xff]
        %v1505 = vld [vmem:[%s431 + $0xf0] sm:$0xff]
        %v1506 = vld [vmem:[%s431 + $0xf8] sm:$0xff]
        %v1507 = vld [vmem:[#allocation8] sm:$0xff]
        %v1508 = vld [vmem:[#allocation8 + $0x8] sm:$0xff]
        %v1509 = vld [vmem:[#allocation8 + $0x10] sm:$0xff]
        %v1510 = vld [vmem:[#allocation8 + $0x18] sm:$0xff]
        %v1511 = vld [vmem:[#allocation8 + $0x20] sm:$0xff]
        %v1512 = vld [vmem:[#allocation8 + $0x28] sm:$0xff]
        %v1513 = vld [vmem:[#allocation8 + $0x30] sm:$0xff]
        %v1514 = vld [vmem:[#allocation8 + $0x38] sm:$0xff]
        %v1515 = vld [vmem:[#allocation8 + $0x40] sm:$0xff]
        %v1516 = vld [vmem:[#allocation8 + $0x48] sm:$0xff]
        %v1517 = vld [vmem:[#allocation8 + $0x50] sm:$0xff]
        %v1518 = vld [vmem:[#allocation8 + $0x58] sm:$0xff]
        %v1519 = vld [vmem:[#allocation8 + $0x60] sm:$0xff]
        %v1520 = vld [vmem:[#allocation8 + $0x68] sm:$0xff]
        %v1521 = vld [vmem:[#allocation8 + $0x70] sm:$0xff]
        %v1522 = vld [vmem:[#allocation8 + $0x78] sm:$0xff]
        %v1523 = vld [vmem:[#allocation8 + $0x80] sm:$0xff]
        %v1524 = vld [vmem:[#allocation8 + $0x88] sm:$0xff]
        %v1525 = vld [vmem:[#allocation8 + $0x90] sm:$0xff]
        %v1526 = vld [vmem:[#allocation8 + $0x98] sm:$0xff]
        %v1527 = vld [vmem:[#allocation8 + $0xa0] sm:$0xff]
        %v1528 = vld [vmem:[#allocation8 + $0xa8] sm:$0xff]
        %v1529 = vld [vmem:[#allocation8 + $0xb0] sm:$0xff]
        %v1530 = vld [vmem:[#allocation8 + $0xb8] sm:$0xff]
        %v1531 = vld [vmem:[#allocation8 + $0xc0] sm:$0xff]
        %v1532 = vld [vmem:[#allocation8 + $0xc8] sm:$0xff]
        %v1533 = vld [vmem:[#allocation8 + $0xd0] sm:$0xff]
        %v1534 = vld [vmem:[#allocation8 + $0xd8] sm:$0xff]
        %v1535 = vld [vmem:[#allocation8 + $0xe0] sm:$0xff]
        %v1536 = vld [vmem:[#allocation8 + $0xe8] sm:$0xff]
        %v1537 = vld [vmem:[#allocation8 + $0xf0] sm:$0xff]
        %v1538 = vld [vmem:[#allocation8 + $0xf8] sm:$0xff]
        %v1539 = vld [vmem:[#allocation8 + $0x100] sm:$0xff]
        %v1540 = vld [vmem:[#allocation8 + $0x108] sm:$0xff]
        %v1541 = vld [vmem:[#allocation8 + $0x110] sm:$0xff]
        %v1542 = vld [vmem:[#allocation8 + $0x118] sm:$0xff]
        %v1543 = vld [vmem:[#allocation8 + $0x120] sm:$0xff]
        %v1544 = vld [vmem:[#allocation8 + $0x128] sm:$0xff]
        %v1545 = vld [vmem:[#allocation8 + $0x130] sm:$0xff]
        %v1546 = vld [vmem:[#allocation8 + $0x138] sm:$0xff]
        %v1547 = vld [vmem:[#allocation8 + $0x140] sm:$0xff]
        %v1548 = vld [vmem:[#allocation8 + $0x148] sm:$0xff]
        %v1549 = vld [vmem:[#allocation8 + $0x150] sm:$0xff]
        %v1550 = vld [vmem:[#allocation8 + $0x158] sm:$0xff]
        %v1551 = vld [vmem:[#allocation8 + $0x160] sm:$0xff]
        %v1552 = vld [vmem:[#allocation8 + $0x168] sm:$0xff]
        %v1553 = vld [vmem:[#allocation8 + $0x170] sm:$0xff]
        %v1554 = vld [vmem:[#allocation8 + $0x178] sm:$0xff]
        %v1555 = vld [vmem:[#allocation8 + $0x180] sm:$0xff]
        %v1556 = vld [vmem:[#allocation8 + $0x188] sm:$0xff]
        %v1557 = vld [vmem:[#allocation8 + $0x190] sm:$0xff]
        %v1558 = vld [vmem:[#allocation8 + $0x198] sm:$0xff]
        %v1559 = vld [vmem:[#allocation8 + $0x1a0] sm:$0xff]
        %v1560 = vld [vmem:[#allocation8 + $0x1a8] sm:$0xff]
        %v1561 = vld [vmem:[#allocation8 + $0x1b0] sm:$0xff]
        %v1562 = vld [vmem:[#allocation8 + $0x1b8] sm:$0xff]
        %v1563 = vld [vmem:[#allocation8 + $0x1c0] sm:$0xff]
        %v1564 = vld [vmem:[#allocation8 + $0x1c8] sm:$0xff]
        %v1565 = vld [vmem:[#allocation8 + $0x1d0] sm:$0xff]
        %v1566 = vld [vmem:[#allocation8 + $0x1d8] sm:$0xff]
        %v1567 = vld [vmem:[#allocation8 + $0x1e0] sm:$0xff]
        %v1568 = vld [vmem:[#allocation8 + $0x1e8] sm:$0xff]
        %v1569 = vld [vmem:[#allocation8 + $0x1f0] sm:$0xff]
        %v1570 = vld [vmem:[#allocation8 + $0x1f8] sm:$0xff]
        %1571 = vmatprep.subr.mxu0 0.0
        %1572 = vmatpush1.xpose.msra.mxu0 %v1507
        %1573 = vmatprep.subr.mxu0 0.0
        %1574 = vmatpush1.xpose.msra.mxu0 %v1508
        %1575 = vmatprep.subr.mxu0 0.0
        %1576 = vmatpush1.xpose.msra.mxu0 %v1509
        %1577 = vmatprep.subr.mxu0 0.0
        %1578 = vmatpush1.xpose.msra.mxu0 %v1510
        %1579 = vmatprep.subr.mxu0 0.0
        %1580 = vmatpush1.xpose.msra.mxu0 %v1511
        %1581 = vmatprep.subr.mxu0 0.0
        %1582 = vmatpush1.xpose.msra.mxu0 %v1512
        %1583 = vmatprep.subr.mxu0 0.0
        %1584 = vmatpush1.xpose.msra.mxu0 %v1513
        %1585 = vmatprep.subr.mxu0 0.0
        %1586 = vmatpush1.xpose.msra.mxu0 %v1514
        %1587 = vmatprep.subr.mxu0 0.0
        %1588 = vmatpush1.xpose.msra.mxu0 %v1515
        %1589 = vmatprep.subr.mxu0 0.0
        %1590 = vmatpush1.xpose.msra.mxu0 %v1516
        %1591 = vmatprep.subr.mxu0 0.0
        %1592 = vmatpush1.xpose.msra.mxu0 %v1517
        %1593 = vmatprep.subr.mxu0 0.0
        %1594 = vmatpush1.xpose.msra.mxu0 %v1518
        %1595 = vmatprep.subr.mxu0 0.0
        %1596 = vmatpush1.xpose.msra.mxu0 %v1519
        %1597 = vmatprep.subr.mxu0 0.0
        %1598 = vmatpush1.xpose.msra.mxu0 %v1520
        %1599 = vmatprep.subr.mxu0 0.0
        %1600 = vmatpush1.xpose.msra.mxu0 %v1521
        %1601 = vmatprep.subr.mxu0 0.0
        %1602 = vmatpush1.xpose.msra.mxu0 %v1522
        %1603 = vmatprep.subr.mxu0 0.0
        %1604 = vmatpush1.xpose.msra.mxu0 %v1523
        %1605 = vmatprep.subr.mxu0 0.0
        %1606 = vmatpush1.xpose.msra.mxu0 %v1524
        %1607 = vmatprep.subr.mxu0 0.0
        %1608 = vmatpush1.xpose.msra.mxu0 %v1525
        %1609 = vmatprep.subr.mxu0 0.0
        %1610 = vmatpush1.xpose.msra.mxu0 %v1526
        %1611 = vmatprep.subr.mxu0 0.0
        %1612 = vmatpush1.xpose.msra.mxu0 %v1527
        %1613 = vmatprep.subr.mxu0 0.0
        %1614 = vmatpush1.xpose.msra.mxu0 %v1528
        %1615 = vmatprep.subr.mxu0 0.0
        %1616 = vmatpush1.xpose.msra.mxu0 %v1529
        %1617 = vmatprep.subr.mxu0 0.0
        %1618 = vmatpush1.xpose.msra.mxu0 %v1530
        %1619 = vmatprep.subr.mxu0 0.0
        %1620 = vmatpush1.xpose.msra.mxu0 %v1531
        %1621 = vmatprep.subr.mxu0 0.0
        %1622 = vmatpush1.xpose.msra.mxu0 %v1532
        %1623 = vmatprep.subr.mxu0 0.0
        %1624 = vmatpush1.xpose.msra.mxu0 %v1533
        %1625 = vmatprep.subr.mxu0 0.0
        %1626 = vmatpush1.xpose.msra.mxu0 %v1534
        %1627 = vmatprep.subr.mxu0 0.0
        %1628 = vmatpush1.xpose.msra.mxu0 %v1535
        %1629 = vmatprep.subr.mxu0 0.0
        %1630 = vmatpush1.xpose.msra.mxu0 %v1536
        %1631 = vmatprep.subr.mxu0 0.0
        %1632 = vmatpush1.xpose.msra.mxu0 %v1537
        %1633 = vmatprep.subr.mxu0 0.0
        %1634 = vmatpush1.xpose.msra.mxu0 %v1538
        %1635 = vmatprep.mubr.f32.mxu0 0.0
        %1636 = vmatmul.mubr.f32.gmra.mrb[0].mxu0 %v1475
        %v1637 = vpop.f32.mrb[0].mxu0
        %v1638 = vadd.f32 0.0, %v1637
        %v1639 = vpop.f32.mrb[0].mxu0
        %v1640 = vadd.f32 0.0, %v1639
        %1641 = vmatprep.mubr.f32.mxu0 0.0
        %1642 = vmatmul.mubr.f32.gmra.mrb[0].mxu0 %v1476
        %v1643 = vpop.f32.mrb[0].mxu0
        %v1644 = vadd.f32 0.0, %v1643
        %v1645 = vpop.f32.mrb[0].mxu0
        %v1646 = vadd.f32 0.0, %v1645
        %1647 = vmatprep.mubr.f32.mxu0 0.0
        %1648 = vmatmul.mubr.f32.gmra.mrb[0].mxu0 %v1477
        %v1649 = vpop.f32.mrb[0].mxu0
        %v1650 = vadd.f32 0.0, %v1649
        %v1651 = vpop.f32.mrb[0].mxu0
        %v1652 = vadd.f32 0.0, %v1651
        %1653 = vmatprep.mubr.f32.mxu0 0.0
        %1654 = vmatmul.mubr.f32.gmra.mrb[0].mxu0 %v1478
        %v1655 = vpop.f32.mrb[0].mxu0
        %v1656 = vadd.f32 0.0, %v1655
        %v1657 = vpop.f32.mrb[0].mxu0
        %v1658 = vadd.f32 0.0, %v1657
        %1659 = vmatprep.mubr.f32.mxu0 0.0
        %1660 = vmatmul.mubr.f32.gmra.mrb[0].mxu0 %v1479
        %v1661 = vpop.f32.mrb[0].mxu0
        %v1662 = vadd.f32 0.0, %v1661
        %v1663 = vpop.f32.mrb[0].mxu0
        %v1664 = vadd.f32 0.0, %v1663
        %1665 = vmatprep.mubr.f32.mxu0 0.0
        %1666 = vmatmul.mubr.f32.gmra.mrb[0].mxu0 %v1480
        %v1667 = vpop.f32.mrb[0].mxu0
        %v1668 = vadd.f32 0.0, %v1667
        %v1669 = vpop.f32.mrb[0].mxu0
        %v1670 = vadd.f32 0.0, %v1669
        %1671 = vmatprep.mubr.f32.mxu0 0.0
        %1672 = vmatmul.mubr.f32.gmra.mrb[0].mxu0 %v1481
        %v1673 = vpop.f32.mrb[0].mxu0
        %v1674 = vadd.f32 0.0, %v1673
        %v1675 = vpop.f32.mrb[0].mxu0
        %v1676 = vadd.f32 0.0, %v1675
        %1677 = vmatprep.mubr.f32.mxu0 0.0
        %1678 = vmatmul.mubr.f32.gmra.mrb[0].mxu0 %v1482
        %v1679 = vpop.f32.mrb[0].mxu0
        %v1680 = vadd.f32 0.0, %v1679
        %v1681 = vpop.f32.mrb[0].mxu0
        %v1682 = vadd.f32 0.0, %v1681
        %1683 = vmatprep.mubr.f32.mxu0 0.0
        %1684 = vmatmul.mubr.f32.gmra.mrb[0].mxu0 %v1483
        %v1685 = vpop.f32.mrb[0].mxu0
        %v1686 = vadd.f32 0.0, %v1685
        %v1687 = vpop.f32.mrb[0].mxu0
        %v1688 = vadd.f32 0.0, %v1687
        %1689 = vmatprep.mubr.f32.mxu0 0.0
        %1690 = vmatmul.mubr.f32.gmra.mrb[0].mxu0 %v1484
        %v1691 = vpop.f32.mrb[0].mxu0
        %v1692 = vadd.f32 0.0, %v1691
        %v1693 = vpop.f32.mrb[0].mxu0
        %v1694 = vadd.f32 0.0, %v1693
        %1695 = vmatprep.mubr.f32.mxu0 0.0
        %1696 = vmatmul.mubr.f32.gmra.mrb[0].mxu0 %v1485
        %v1697 = vpop.f32.mrb[0].mxu0
        %v1698 = vadd.f32 0.0, %v1697
        %v1699 = vpop.f32.mrb[0].mxu0
        %v1700 = vadd.f32 0.0, %v1699
        %1701 = vmatprep.mubr.f32.mxu0 0.0
        %1702 = vmatmul.mubr.f32.gmra.mrb[0].mxu0 %v1486
        %v1703 = vpop.f32.mrb[0].mxu0
        %v1704 = vadd.f32 0.0, %v1703
        %v1705 = vpop.f32.mrb[0].mxu0
        %v1706 = vadd.f32 0.0, %v1705
        %1707 = vmatprep.mubr.f32.mxu0 0.0
        %1708 = vmatmul.mubr.f32.gmra.mrb[0].mxu0 %v1487
        %v1709 = vpop.f32.mrb[0].mxu0
        %v1710 = vadd.f32 0.0, %v1709
        %v1711 = vpop.f32.mrb[0].mxu0
        %v1712 = vadd.f32 0.0, %v1711
        %1713 = vmatprep.mubr.f32.mxu0 0.0
        %1714 = vmatmul.mubr.f32.gmra.mrb[0].mxu0 %v1488
        %v1715 = vpop.f32.mrb[0].mxu0
        %v1716 = vadd.f32 0.0, %v1715
        %v1717 = vpop.f32.mrb[0].mxu0
        %v1718 = vadd.f32 0.0, %v1717
        %1719 = vmatprep.mubr.f32.mxu0 0.0
        %1720 = vmatmul.mubr.f32.gmra.mrb[0].mxu0 %v1489
        %v1721 = vpop.f32.mrb[0].mxu0
        %v1722 = vadd.f32 0.0, %v1721
        %v1723 = vpop.f32.mrb[0].mxu0
        %v1724 = vadd.f32 0.0, %v1723
        %1725 = vmatprep.mubr.f32.mxu0 0.0
        %1726 = vmatmul.mubr.f32.gmra.mrb[0].mxu0 %v1490
        %v1727 = vpop.f32.mrb[0].mxu0
        %v1728 = vadd.f32 0.0, %v1727
        %v1729 = vpop.f32.mrb[0].mxu0
        %v1730 = vadd.f32 0.0, %v1729
        %1731 = vmatprep.mubr.f32.mxu0 0.0
        %1732 = vmatmul.mubr.f32.gmra.mrb[0].mxu0 %v1491
        %v1733 = vpop.f32.mrb[0].mxu0
        %v1734 = vadd.f32 0.0, %v1733
        %v1735 = vpop.f32.mrb[0].mxu0
        %v1736 = vadd.f32 0.0, %v1735
        %1737 = vmatprep.mubr.f32.mxu0 0.0
        %1738 = vmatmul.mubr.f32.gmra.mrb[0].mxu0 %v1492
        %v1739 = vpop.f32.mrb[0].mxu0
        %v1740 = vadd.f32 0.0, %v1739
        %v1741 = vpop.f32.mrb[0].mxu0
        %v1742 = vadd.f32 0.0, %v1741
        %1743 = vmatprep.mubr.f32.mxu0 0.0
        %1744 = vmatmul.mubr.f32.gmra.mrb[0].mxu0 %v1493
        %v1745 = vpop.f32.mrb[0].mxu0
        %v1746 = vadd.f32 0.0, %v1745
        %v1747 = vpop.f32.mrb[0].mxu0
        %v1748 = vadd.f32 0.0, %v1747
        %1749 = vmatprep.mubr.f32.mxu0 0.0
        %1750 = vmatmul.mubr.f32.gmra.mrb[0].mxu0 %v1494
        %v1751 = vpop.f32.mrb[0].mxu0
        %v1752 = vadd.f32 0.0, %v1751
        %v1753 = vpop.f32.mrb[0].mxu0
        %v1754 = vadd.f32 0.0, %v1753
        %1755 = vmatprep.mubr.f32.mxu0 0.0
        %1756 = vmatmul.mubr.f32.gmra.mrb[0].mxu0 %v1495
        %v1757 = vpop.f32.mrb[0].mxu0
        %v1758 = vadd.f32 0.0, %v1757
        %v1759 = vpop.f32.mrb[0].mxu0
        %v1760 = vadd.f32 0.0, %v1759
        %1761 = vmatprep.mubr.f32.mxu0 0.0
        %1762 = vmatmul.mubr.f32.gmra.mrb[0].mxu0 %v1496
        %v1763 = vpop.f32.mrb[0].mxu0
        %v1764 = vadd.f32 0.0, %v1763
        %v1765 = vpop.f32.mrb[0].mxu0
        %v1766 = vadd.f32 0.0, %v1765
        %1767 = vmatprep.mubr.f32.mxu0 0.0
        %1768 = vmatmul.mubr.f32.gmra.mrb[0].mxu0 %v1497
        %v1769 = vpop.f32.mrb[0].mxu0
        %v1770 = vadd.f32 0.0, %v1769
        %v1771 = vpop.f32.mrb[0].mxu0
        %v1772 = vadd.f32 0.0, %v1771
        %1773 = vmatprep.mubr.f32.mxu0 0.0
        %1774 = vmatmul.mubr.f32.gmra.mrb[0].mxu0 %v1498
        %v1775 = vpop.f32.mrb[0].mxu0
        %v1776 = vadd.f32 0.0, %v1775
        %v1777 = vpop.f32.mrb[0].mxu0
        %v1778 = vadd.f32 0.0, %v1777
        %1779 = vmatprep.mubr.f32.mxu0 0.0
        %1780 = vmatmul.mubr.f32.gmra.mrb[0].mxu0 %v1499
        %v1781 = vpop.f32.mrb[0].mxu0
        %v1782 = vadd.f32 0.0, %v1781
        %v1783 = vpop.f32.mrb[0].mxu0
        %v1784 = vadd.f32 0.0, %v1783
        %1785 = vmatprep.mubr.f32.mxu0 0.0
        %1786 = vmatmul.mubr.f32.gmra.mrb[0].mxu0 %v1500
        %v1787 = vpop.f32.mrb[0].mxu0
        %v1788 = vadd.f32 0.0, %v1787
        %v1789 = vpop.f32.mrb[0].mxu0
        %v1790 = vadd.f32 0.0, %v1789
        %1791 = vmatprep.mubr.f32.mxu0 0.0
        %1792 = vmatmul.mubr.f32.gmra.mrb[0].mxu0 %v1501
        %v1793 = vpop.f32.mrb[0].mxu0
        %v1794 = vadd.f32 0.0, %v1793
        %v1795 = vpop.f32.mrb[0].mxu0
        %v1796 = vadd.f32 0.0, %v1795
        %1797 = vmatprep.mubr.f32.mxu0 0.0
        %1798 = vmatmul.mubr.f32.gmra.mrb[0].mxu0 %v1502
        %v1799 = vpop.f32.mrb[0].mxu0
        %v1800 = vadd.f32 0.0, %v1799
        %v1801 = vpop.f32.mrb[0].mxu0
        %v1802 = vadd.f32 0.0, %v1801
        %1803 = vmatprep.mubr.f32.mxu0 0.0
        %1804 = vmatmul.mubr.f32.gmra.mrb[0].mxu0 %v1503
        %v1805 = vpop.f32.mrb[0].mxu0
        %v1806 = vadd.f32 0.0, %v1805
        %v1807 = vpop.f32.mrb[0].mxu0
        %v1808 = vadd.f32 0.0, %v1807
        %1809 = vmatprep.mubr.f32.mxu0 0.0
        %1810 = vmatmul.mubr.f32.gmra.mrb[0].mxu0 %v1504
        %v1811 = vpop.f32.mrb[0].mxu0
        %v1812 = vadd.f32 0.0, %v1811
        %v1813 = vpop.f32.mrb[0].mxu0
        %v1814 = vadd.f32 0.0, %v1813
        %1815 = vmatprep.mubr.f32.mxu0 0.0
        %1816 = vmatmul.mubr.f32.gmra.mrb[0].mxu0 %v1505
        %v1817 = vpop.f32.mrb[0].mxu0
        %v1818 = vadd.f32 0.0, %v1817
        %v1819 = vpop.f32.mrb[0].mxu0
        %v1820 = vadd.f32 0.0, %v1819
        %1821 = vmatprep.mubr.f32.mxu0 0.0
        %1822 = vmatmul.mubr.f32.gmra.mrb[0].mxu0 %v1506
        %v1823 = vpop.f32.mrb[0].mxu0
        %v1824 = vadd.f32 0.0, %v1823
        %v1825 = vpop.f32.mrb[0].mxu0
        %v1826 = vadd.f32 0.0, %v1825
        %1827 = vdwg.mxu0
        %1828 = vmatprep.subr.mxu0 0.0
        %1829 = vmatpush1.xpose.msra.mxu0 %v1539
        %1830 = vmatprep.subr.mxu0 0.0
        %1831 = vmatpush1.xpose.msra.mxu0 %v1540
        %1832 = vmatprep.subr.mxu0 0.0
        %1833 = vmatpush1.xpose.msra.mxu0 %v1541
        %1834 = vmatprep.subr.mxu0 0.0
        %1835 = vmatpush1.xpose.msra.mxu0 %v1542
        %1836 = vmatprep.subr.mxu0 0.0
        %1837 = vmatpush1.xpose.msra.mxu0 %v1543
        %1838 = vmatprep.subr.mxu0 0.0
        %1839 = vmatpush1.xpose.msra.mxu0 %v1544
        %1840 = vmatprep.subr.mxu0 0.0
        %1841 = vmatpush1.xpose.msra.mxu0 %v1545
        %1842 = vmatprep.subr.mxu0 0.0
        %1843 = vmatpush1.xpose.msra.mxu0 %v1546
        %1844 = vmatprep.subr.mxu0 0.0
        %1845 = vmatpush1.xpose.msra.mxu0 %v1547
        %1846 = vmatprep.subr.mxu0 0.0
        %1847 = vmatpush1.xpose.msra.mxu0 %v1548
        %1848 = vmatprep.subr.mxu0 0.0
        %1849 = vmatpush1.xpose.msra.mxu0 %v1549
        %1850 = vmatprep.subr.mxu0 0.0
        %1851 = vmatpush1.xpose.msra.mxu0 %v1550
        %1852 = vmatprep.subr.mxu0 0.0
        %1853 = vmatpush1.xpose.msra.mxu0 %v1551
        %1854 = vmatprep.subr.mxu0 0.0
        %1855 = vmatpush1.xpose.msra.mxu0 %v1552
        %1856 = vmatprep.subr.mxu0 0.0
        %1857 = vmatpush1.xpose.msra.mxu0 %v1553
        %1858 = vmatprep.subr.mxu0 0.0
        %1859 = vmatpush1.xpose.msra.mxu0 %v1554
        %1860 = vmatprep.subr.mxu0 0.0
        %1861 = vmatpush1.xpose.msra.mxu0 %v1555
        %1862 = vmatprep.subr.mxu0 0.0
        %1863 = vmatpush1.xpose.msra.mxu0 %v1556
        %1864 = vmatprep.subr.mxu0 0.0
        %1865 = vmatpush1.xpose.msra.mxu0 %v1557
        %1866 = vmatprep.subr.mxu0 0.0
        %1867 = vmatpush1.xpose.msra.mxu0 %v1558
        %1868 = vmatprep.subr.mxu0 0.0
        %1869 = vmatpush1.xpose.msra.mxu0 %v1559
        %1870 = vmatprep.subr.mxu0 0.0
        %1871 = vmatpush1.xpose.msra.mxu0 %v1560
        %1872 = vmatprep.subr.mxu0 0.0
        %1873 = vmatpush1.xpose.msra.mxu0 %v1561
        %1874 = vmatprep.subr.mxu0 0.0
        %1875 = vmatpush1.xpose.msra.mxu0 %v1562
        %1876 = vmatprep.subr.mxu0 0.0
        %1877 = vmatpush1.xpose.msra.mxu0 %v1563
        %1878 = vmatprep.subr.mxu0 0.0
        %1879 = vmatpush1.xpose.msra.mxu0 %v1564
        %1880 = vmatprep.subr.mxu0 0.0
        %1881 = vmatpush1.xpose.msra.mxu0 %v1565
        %1882 = vmatprep.subr.mxu0 0.0
        %1883 = vmatpush1.xpose.msra.mxu0 %v1566
        %1884 = vmatprep.subr.mxu0 0.0
        %1885 = vmatpush1.xpose.msra.mxu0 %v1567
        %1886 = vmatprep.subr.mxu0 0.0
        %1887 = vmatpush1.xpose.msra.mxu0 %v1568
        %1888 = vmatprep.subr.mxu0 0.0
        %1889 = vmatpush1.xpose.msra.mxu0 %v1569
        %1890 = vmatprep.subr.mxu0 0.0
        %1891 = vmatpush1.xpose.msra.mxu0 %v1570
        %1892 = vmatprep.mubr.f32.mxu0 0.0
        %1893 = vmatmul.mubr.f32.gmra.mrb[0].mxu0 %v1475
        %v1894 = vpop.f32.mrb[0].mxu0
        %v1895 = vadd.f32 0.0, %v1894
        %v1896 = vpop.f32.mrb[0].mxu0
        %v1897 = vadd.f32 0.0, %v1896
        %1898 = vmatprep.mubr.f32.mxu0 0.0
        %1899 = vmatmul.mubr.f32.gmra.mrb[0].mxu0 %v1476
        %v1900 = vpop.f32.mrb[0].mxu0
        %v1901 = vadd.f32 0.0, %v1900
        %v1902 = vpop.f32.mrb[0].mxu0
        %v1903 = vadd.f32 0.0, %v1902
        %1904 = vmatprep.mubr.f32.mxu0 0.0
        %1905 = vmatmul.mubr.f32.gmra.mrb[0].mxu0 %v1477
        %v1906 = vpop.f32.mrb[0].mxu0
        %v1907 = vadd.f32 0.0, %v1906
        %v1908 = vpop.f32.mrb[0].mxu0
        %v1909 = vadd.f32 0.0, %v1908
        %1910 = vmatprep.mubr.f32.mxu0 0.0
        %1911 = vmatmul.mubr.f32.gmra.mrb[0].mxu0 %v1478
        %v1912 = vpop.f32.mrb[0].mxu0
        %v1913 = vadd.f32 0.0, %v1912
        %v1914 = vpop.f32.mrb[0].mxu0
        %v1915 = vadd.f32 0.0, %v1914
        %1916 = vmatprep.mubr.f32.mxu0 0.0
        %1917 = vmatmul.mubr.f32.gmra.mrb[0].mxu0 %v1479
        %v1918 = vpop.f32.mrb[0].mxu0
        %v1919 = vadd.f32 0.0, %v1918
        %v1920 = vpop.f32.mrb[0].mxu0
        %v1921 = vadd.f32 0.0, %v1920
        %1922 = vmatprep.mubr.f32.mxu0 0.0
        %1923 = vmatmul.mubr.f32.gmra.mrb[0].mxu0 %v1480
        %v1924 = vpop.f32.mrb[0].mxu0
        %v1925 = vadd.f32 0.0, %v1924
        %v1926 = vpop.f32.mrb[0].mxu0
        %v1927 = vadd.f32 0.0, %v1926
        %1928 = vmatprep.mubr.f32.mxu0 0.0
        %1929 = vmatmul.mubr.f32.gmra.mrb[0].mxu0 %v1481
        %v1930 = vpop.f32.mrb[0].mxu0
        %v1931 = vadd.f32 0.0, %v1930
        %v1932 = vpop.f32.mrb[0].mxu0
        %v1933 = vadd.f32 0.0, %v1932
        %1934 = vmatprep.mubr.f32.mxu0 0.0
        %1935 = vmatmul.mubr.f32.gmra.mrb[0].mxu0 %v1482
        %v1936 = vpop.f32.mrb[0].mxu0
        %v1937 = vadd.f32 0.0, %v1936
        %v1938 = vpop.f32.mrb[0].mxu0
        %v1939 = vadd.f32 0.0, %v1938
        %1940 = vmatprep.mubr.f32.mxu0 0.0
        %1941 = vmatmul.mubr.f32.gmra.mrb[0].mxu0 %v1483
        %v1942 = vpop.f32.mrb[0].mxu0
        %v1943 = vadd.f32 0.0, %v1942
        %v1944 = vpop.f32.mrb[0].mxu0
        %v1945 = vadd.f32 0.0, %v1944
        %1946 = vmatprep.mubr.f32.mxu0 0.0
        %1947 = vmatmul.mubr.f32.gmra.mrb[0].mxu0 %v1484
        %v1948 = vpop.f32.mrb[0].mxu0
        %v1949 = vadd.f32 0.0, %v1948
        %v1950 = vpop.f32.mrb[0].mxu0
        %v1951 = vadd.f32 0.0, %v1950
        %1952 = vmatprep.mubr.f32.mxu0 0.0
        %1953 = vmatmul.mubr.f32.gmra.mrb[0].mxu0 %v1485
        %v1954 = vpop.f32.mrb[0].mxu0
        %v1955 = vadd.f32 0.0, %v1954
        %v1956 = vpop.f32.mrb[0].mxu0
        %v1957 = vadd.f32 0.0, %v1956
        %1958 = vmatprep.mubr.f32.mxu0 0.0
        %1959 = vmatmul.mubr.f32.gmra.mrb[0].mxu0 %v1486
        %v1960 = vpop.f32.mrb[0].mxu0
        %v1961 = vadd.f32 0.0, %v1960
        %v1962 = vpop.f32.mrb[0].mxu0
        %v1963 = vadd.f32 0.0, %v1962
        %1964 = vmatprep.mubr.f32.mxu0 0.0
        %1965 = vmatmul.mubr.f32.gmra.mrb[0].mxu0 %v1487
        %v1966 = vpop.f32.mrb[0].mxu0
        %v1967 = vadd.f32 0.0, %v1966
        %v1968 = vpop.f32.mrb[0].mxu0
        %v1969 = vadd.f32 0.0, %v1968
        %1970 = vmatprep.mubr.f32.mxu0 0.0
        %1971 = vmatmul.mubr.f32.gmra.mrb[0].mxu0 %v1488
        %v1972 = vpop.f32.mrb[0].mxu0
        %v1973 = vadd.f32 0.0, %v1972
        %v1974 = vpop.f32.mrb[0].mxu0
        %v1975 = vadd.f32 0.0, %v1974
        %1976 = vmatprep.mubr.f32.mxu0 0.0
        %1977 = vmatmul.mubr.f32.gmra.mrb[0].mxu0 %v1489
        %v1978 = vpop.f32.mrb[0].mxu0
        %v1979 = vadd.f32 0.0, %v1978
        %v1980 = vpop.f32.mrb[0].mxu0
        %v1981 = vadd.f32 0.0, %v1980
        %1982 = vmatprep.mubr.f32.mxu0 0.0
        %1983 = vmatmul.mubr.f32.gmra.mrb[0].mxu0 %v1490
        %v1984 = vpop.f32.mrb[0].mxu0
        %v1985 = vadd.f32 0.0, %v1984
        %v1986 = vpop.f32.mrb[0].mxu0
        %v1987 = vadd.f32 0.0, %v1986
        %1988 = vmatprep.mubr.f32.mxu0 0.0
        %1989 = vmatmul.mubr.f32.gmra.mrb[0].mxu0 %v1491
        %v1990 = vpop.f32.mrb[0].mxu0
        %v1991 = vadd.f32 0.0, %v1990
        %v1992 = vpop.f32.mrb[0].mxu0
        %v1993 = vadd.f32 0.0, %v1992
        %1994 = vmatprep.mubr.f32.mxu0 0.0
        %1995 = vmatmul.mubr.f32.gmra.mrb[0].mxu0 %v1492
        %v1996 = vpop.f32.mrb[0].mxu0
        %v1997 = vadd.f32 0.0, %v1996
        %v1998 = vpop.f32.mrb[0].mxu0
        %v1999 = vadd.f32 0.0, %v1998
        %2000 = vmatprep.mubr.f32.mxu0 0.0
        %2001 = vmatmul.mubr.f32.gmra.mrb[0].mxu0 %v1493
        %v2002 = vpop.f32.mrb[0].mxu0
        %v2003 = vadd.f32 0.0, %v2002
        %v2004 = vpop.f32.mrb[0].mxu0
        %v2005 = vadd.f32 0.0, %v2004
        %2006 = vmatprep.mubr.f32.mxu0 0.0
        %2007 = vmatmul.mubr.f32.gmra.mrb[0].mxu0 %v1494
        %v2008 = vpop.f32.mrb[0].mxu0
        %v2009 = vadd.f32 0.0, %v2008
        %v2010 = vpop.f32.mrb[0].mxu0
        %v2011 = vadd.f32 0.0, %v2010
        %2012 = vmatprep.mubr.f32.mxu0 0.0
        %2013 = vmatmul.mubr.f32.gmra.mrb[0].mxu0 %v1495
        %v2014 = vpop.f32.mrb[0].mxu0
        %v2015 = vadd.f32 0.0, %v2014
        %v2016 = vpop.f32.mrb[0].mxu0
        %v2017 = vadd.f32 0.0, %v2016
        %2018 = vmatprep.mubr.f32.mxu0 0.0
        %2019 = vmatmul.mubr.f32.gmra.mrb[0].mxu0 %v1496
        %v2020 = vpop.f32.mrb[0].mxu0
        %v2021 = vadd.f32 0.0, %v2020
        %v2022 = vpop.f32.mrb[0].mxu0
        %v2023 = vadd.f32 0.0, %v2022
        %2024 = vmatprep.mubr.f32.mxu0 0.0
        %2025 = vmatmul.mubr.f32.gmra.mrb[0].mxu0 %v1497
        %v2026 = vpop.f32.mrb[0].mxu0
        %v2027 = vadd.f32 0.0, %v2026
        %v2028 = vpop.f32.mrb[0].mxu0
        %v2029 = vadd.f32 0.0, %v2028
        %2030 = vmatprep.mubr.f32.mxu0 0.0
        %2031 = vmatmul.mubr.f32.gmra.mrb[0].mxu0 %v1498
        %v2032 = vpop.f32.mrb[0].mxu0
        %v2033 = vadd.f32 0.0, %v2032
        %v2034 = vpop.f32.mrb[0].mxu0
        %v2035 = vadd.f32 0.0, %v2034
        %2036 = vmatprep.mubr.f32.mxu0 0.0
        %2037 = vmatmul.mubr.f32.gmra.mrb[0].mxu0 %v1499
        %v2038 = vpop.f32.mrb[0].mxu0
        %v2039 = vadd.f32 0.0, %v2038
        %v2040 = vpop.f32.mrb[0].mxu0
        %v2041 = vadd.f32 0.0, %v2040
        %2042 = vmatprep.mubr.f32.mxu0 0.0
        %2043 = vmatmul.mubr.f32.gmra.mrb[0].mxu0 %v1500
        %v2044 = vpop.f32.mrb[0].mxu0
        %v2045 = vadd.f32 0.0, %v2044
        %v2046 = vpop.f32.mrb[0].mxu0
        %v2047 = vadd.f32 0.0, %v2046
        %2048 = vmatprep.mubr.f32.mxu0 0.0
        %2049 = vmatmul.mubr.f32.gmra.mrb[0].mxu0 %v1501
        %v2050 = vpop.f32.mrb[0].mxu0
        %v2051 = vadd.f32 0.0, %v2050
        %v2052 = vpop.f32.mrb[0].mxu0
        %v2053 = vadd.f32 0.0, %v2052
        %2054 = vmatprep.mubr.f32.mxu0 0.0
        %2055 = vmatmul.mubr.f32.gmra.mrb[0].mxu0 %v1502
        %v2056 = vpop.f32.mrb[0].mxu0
        %v2057 = vadd.f32 0.0, %v2056
        %v2058 = vpop.f32.mrb[0].mxu0
        %v2059 = vadd.f32 0.0, %v2058
        %2060 = vmatprep.mubr.f32.mxu0 0.0
        %2061 = vmatmul.mubr.f32.gmra.mrb[0].mxu0 %v1503
        %v2062 = vpop.f32.mrb[0].mxu0
        %v2063 = vadd.f32 0.0, %v2062
        %v2064 = vpop.f32.mrb[0].mxu0
        %v2065 = vadd.f32 0.0, %v2064
        %2066 = vmatprep.mubr.f32.mxu0 0.0
        %2067 = vmatmul.mubr.f32.gmra.mrb[0].mxu0 %v1504
        %v2068 = vpop.f32.mrb[0].mxu0
        %v2069 = vadd.f32 0.0, %v2068
        %v2070 = vpop.f32.mrb[0].mxu0
        %v2071 = vadd.f32 0.0, %v2070
        %2072 = vmatprep.mubr.f32.mxu0 0.0
        %2073 = vmatmul.mubr.f32.gmra.mrb[0].mxu0 %v1505
        %v2074 = vpop.f32.mrb[0].mxu0
        %v2075 = vadd.f32 0.0, %v2074
        %v2076 = vpop.f32.mrb[0].mxu0
        %v2077 = vadd.f32 0.0, %v2076
        %2078 = vmatprep.mubr.f32.mxu0 0.0
        %2079 = vmatmul.mubr.f32.gmra.mrb[0].mxu0 %v1506
        %v2080 = vpop.f32.mrb[0].mxu0
        %v2081 = vadd.f32 0.0, %v2080
        %v2082 = vpop.f32.mrb[0].mxu0
        %v2083 = vadd.f32 0.0, %v2082
        %2084 = vdwg.mxu0
        %s2085 = scalar_lea.vmem %s450, 1
        %v2086 = vld [vmem:[%s2085] ss:$2 sm:$0xf]
        %v2087 = vld [vmem:[#allocation2] sm:$0xff]
        %v2088 = vld [vmem:[#allocation2 + $0x8] sm:$0xff]
        %v2089 = vld [vmem:[#allocation2 + $0x10] sm:$0xff]
        %v2090 = vld [vmem:[#allocation2 + $0x18] sm:$0xff]
        %v2091 = vld [vmem:[#allocation2 + $0x20] sm:$0xff]
        %v2092 = vld [vmem:[#allocation2 + $0x28] sm:$0xff]
        %v2093 = vld [vmem:[#allocation2 + $0x30] sm:$0xff]
        %v2094 = vld [vmem:[#allocation2 + $0x38] sm:$0xff]
        %v2095 = vld [vmem:[#allocation2 + $0x40] sm:$0xff]
        %v2096 = vld [vmem:[#allocation2 + $0x48] sm:$0xff]
        %v2097 = vld [vmem:[#allocation2 + $0x50] sm:$0xff]
        %v2098 = vld [vmem:[#allocation2 + $0x58] sm:$0xff]
        %v2099 = vld [vmem:[#allocation2 + $0x60] sm:$0xff]
        %v2100 = vld [vmem:[#allocation2 + $0x68] sm:$0xff]
        %v2101 = vld [vmem:[#allocation2 + $0x70] sm:$0xff]
        %v2102 = vld [vmem:[#allocation2 + $0x78] sm:$0xff]
        %v2103 = vld [vmem:[#allocation2 + $0x80] sm:$0xff]
        %v2104 = vld [vmem:[#allocation2 + $0x88] sm:$0xff]
        %v2105 = vld [vmem:[#allocation2 + $0x90] sm:$0xff]
        %v2106 = vld [vmem:[#allocation2 + $0x98] sm:$0xff]
        %v2107 = vld [vmem:[#allocation2 + $0xa0] sm:$0xff]
        %v2108 = vld [vmem:[#allocation2 + $0xa8] sm:$0xff]
        %v2109 = vld [vmem:[#allocation2 + $0xb0] sm:$0xff]
        %v2110 = vld [vmem:[#allocation2 + $0xb8] sm:$0xff]
        %v2111 = vld [vmem:[#allocation2 + $0xc0] sm:$0xff]
        %v2112 = vld [vmem:[#allocation2 + $0xc8] sm:$0xff]
        %v2113 = vld [vmem:[#allocation2 + $0xd0] sm:$0xff]
        %v2114 = vld [vmem:[#allocation2 + $0xd8] sm:$0xff]
        %v2115 = vld [vmem:[#allocation2 + $0xe0] sm:$0xff]
        %v2116 = vld [vmem:[#allocation2 + $0xe8] sm:$0xff]
        %v2117 = vld [vmem:[#allocation2 + $0xf0] sm:$0xff]
        %v2118 = vld [vmem:[#allocation2 + $0xf8] sm:$0xff]
        %2120 = vset.pattern.permute.xlu0 0
        %2121 = vperm.xlu0 %2120, %v2087
        %v2122 = vpop.permute.xlu0 %2121
        %2125 = vset.pattern.permute.xlu0 0
        %2126 = vperm.xlu0 %2125, %v2088
        %v2127 = vpop.permute.xlu0 %2126
        %2130 = vset.pattern.permute.xlu0 0
        %2131 = vperm.xlu0 %2130, %v2089
        %v2132 = vpop.permute.xlu0 %2131
        %2135 = vset.pattern.permute.xlu0 0
        %2136 = vperm.xlu0 %2135, %v2090
        %v2137 = vpop.permute.xlu0 %2136
        %2140 = vset.pattern.permute.xlu0 0
        %2141 = vperm.xlu0 %2140, %v2091
        %v2142 = vpop.permute.xlu0 %2141
        %2145 = vset.pattern.permute.xlu0 0
        %2146 = vperm.xlu0 %2145, %v2092
        %v2147 = vpop.permute.xlu0 %2146
        %2150 = vset.pattern.permute.xlu0 0
        %2151 = vperm.xlu0 %2150, %v2093
        %v2152 = vpop.permute.xlu0 %2151
        %2155 = vset.pattern.permute.xlu0 0
        %2156 = vperm.xlu0 %2155, %v2094
        %v2157 = vpop.permute.xlu0 %2156
        %2160 = vset.pattern.permute.xlu0 0
        %2161 = vperm.xlu0 %2160, %v2095
        %v2162 = vpop.permute.xlu0 %2161
        %2165 = vset.pattern.permute.xlu0 0
        %2166 = vperm.xlu0 %2165, %v2096
        %v2167 = vpop.permute.xlu0 %2166
        %2170 = vset.pattern.permute.xlu0 0
        %2171 = vperm.xlu0 %2170, %v2097
        %v2172 = vpop.permute.xlu0 %2171
        %2175 = vset.pattern.permute.xlu0 0
        %2176 = vperm.xlu0 %2175, %v2098
        %v2177 = vpop.permute.xlu0 %2176
        %2180 = vset.pattern.permute.xlu0 0
        %2181 = vperm.xlu0 %2180, %v2099
        %v2182 = vpop.permute.xlu0 %2181
        %2185 = vset.pattern.permute.xlu0 0
        %2186 = vperm.xlu0 %2185, %v2100
        %v2187 = vpop.permute.xlu0 %2186
        %2190 = vset.pattern.permute.xlu0 0
        %2191 = vperm.xlu0 %2190, %v2101
        %v2192 = vpop.permute.xlu0 %2191
        %2195 = vset.pattern.permute.xlu0 0
        %2196 = vperm.xlu0 %2195, %v2102
        %v2197 = vpop.permute.xlu0 %2196
        %2200 = vset.pattern.permute.xlu0 0
        %2201 = vperm.xlu0 %2200, %v2103
        %v2202 = vpop.permute.xlu0 %2201
        %2205 = vset.pattern.permute.xlu0 0
        %2206 = vperm.xlu0 %2205, %v2104
        %v2207 = vpop.permute.xlu0 %2206
        %2210 = vset.pattern.permute.xlu0 0
        %2211 = vperm.xlu0 %2210, %v2105
        %v2212 = vpop.permute.xlu0 %2211
        %2215 = vset.pattern.permute.xlu0 0
        %2216 = vperm.xlu0 %2215, %v2106
        %v2217 = vpop.permute.xlu0 %2216
        %2220 = vset.pattern.permute.xlu0 0
        %2221 = vperm.xlu0 %2220, %v2107
        %v2222 = vpop.permute.xlu0 %2221
        %2225 = vset.pattern.permute.xlu0 0
        %2226 = vperm.xlu0 %2225, %v2108
        %v2227 = vpop.permute.xlu0 %2226
        %2230 = vset.pattern.permute.xlu0 0
        %2231 = vperm.xlu0 %2230, %v2109
        %v2232 = vpop.permute.xlu0 %2231
        %2235 = vset.pattern.permute.xlu0 0
        %2236 = vperm.xlu0 %2235, %v2110
        %v2237 = vpop.permute.xlu0 %2236
        %2240 = vset.pattern.permute.xlu0 0
        %2241 = vperm.xlu0 %2240, %v2111
        %v2242 = vpop.permute.xlu0 %2241
        %2245 = vset.pattern.permute.xlu0 0
        %2246 = vperm.xlu0 %2245, %v2112
        %v2247 = vpop.permute.xlu0 %2246
        %2250 = vset.pattern.permute.xlu0 0
        %2251 = vperm.xlu0 %2250, %v2113
        %v2252 = vpop.permute.xlu0 %2251
        %2255 = vset.pattern.permute.xlu0 0
        %2256 = vperm.xlu0 %2255, %v2114
        %v2257 = vpop.permute.xlu0 %2256
        %2260 = vset.pattern.permute.xlu0 0
        %2261 = vperm.xlu0 %2260, %v2115
        %v2262 = vpop.permute.xlu0 %2261
        %2265 = vset.pattern.permute.xlu0 0
        %2266 = vperm.xlu0 %2265, %v2116
        %v2267 = vpop.permute.xlu0 %2266
        %2270 = vset.pattern.permute.xlu0 0
        %2271 = vperm.xlu0 %2270, %v2117
        %v2272 = vpop.permute.xlu0 %2271
        %2275 = vset.pattern.permute.xlu0 0
        %2276 = vperm.xlu0 %2275, %v2118
        %v2277 = vpop.permute.xlu0 %2276
        %v2280 = vlaneseq
        %v2281 = vshrl.u32 %v2280, 7
        %v2282 = vsub.s32 0, %v2281
        %v2283 = vrot.slane %v2086, %v2282
        %v2284 = vlaneseq
        %v2285 = vshrl.u32 %v2284, 7
        %v2286 = vsub.s32 1, %v2285
        %v2287 = vrot.slane %v2086, %v2286
        %v2288 = vlaneseq
        %v2289 = vshrl.u32 %v2288, 7
        %v2290 = vsub.s32 2, %v2289
        %v2291 = vrot.slane %v2086, %v2290
        %v2292 = vlaneseq
        %v2293 = vshrl.u32 %v2292, 7
        %v2294 = vsub.s32 3, %v2293
        %v2295 = vrot.slane %v2086, %v2294
        %v2300 = vadd.f32 %v2122, %v2283
        %v2301 = vadd.f32 %v2122, %v2287
        %v2302 = vadd.f32 %v2122, %v2291
        %v2303 = vadd.f32 %v2122, %v2295
        %v2304 = vadd.f32 %v2127, %v2283
        %v2305 = vadd.f32 %v2127, %v2287
        %v2306 = vadd.f32 %v2127, %v2291
        %v2307 = vadd.f32 %v2127, %v2295
        %v2308 = vadd.f32 %v2132, %v2283
        %v2309 = vadd.f32 %v2132, %v2287
        %v2310 = vadd.f32 %v2132, %v2291
        %v2311 = vadd.f32 %v2132, %v2295
        %v2312 = vadd.f32 %v2137, %v2283
        %v2313 = vadd.f32 %v2137, %v2287
        %v2314 = vadd.f32 %v2137, %v2291
        %v2315 = vadd.f32 %v2137, %v2295
        %v2316 = vadd.f32 %v2142, %v2283
        %v2317 = vadd.f32 %v2142, %v2287
        %v2318 = vadd.f32 %v2142, %v2291
        %v2319 = vadd.f32 %v2142, %v2295
        %v2320 = vadd.f32 %v2147, %v2283
        %v2321 = vadd.f32 %v2147, %v2287
        %v2322 = vadd.f32 %v2147, %v2291
        %v2323 = vadd.f32 %v2147, %v2295
        %v2324 = vadd.f32 %v2152, %v2283
        %v2325 = vadd.f32 %v2152, %v2287
        %v2326 = vadd.f32 %v2152, %v2291
        %v2327 = vadd.f32 %v2152, %v2295
        %v2328 = vadd.f32 %v2157, %v2283
        %v2329 = vadd.f32 %v2157, %v2287
        %v2330 = vadd.f32 %v2157, %v2291
        %v2331 = vadd.f32 %v2157, %v2295
        %v2332 = vadd.f32 %v2162, %v2283
        %v2333 = vadd.f32 %v2162, %v2287
        %v2334 = vadd.f32 %v2162, %v2291
        %v2335 = vadd.f32 %v2162, %v2295
        %v2336 = vadd.f32 %v2167, %v2283
        %v2337 = vadd.f32 %v2167, %v2287
        %v2338 = vadd.f32 %v2167, %v2291
        %v2339 = vadd.f32 %v2167, %v2295
        %v2340 = vadd.f32 %v2172, %v2283
        %v2341 = vadd.f32 %v2172, %v2287
        %v2342 = vadd.f32 %v2172, %v2291
        %v2343 = vadd.f32 %v2172, %v2295
        %v2344 = vadd.f32 %v2177, %v2283
        %v2345 = vadd.f32 %v2177, %v2287
        %v2346 = vadd.f32 %v2177, %v2291
        %v2347 = vadd.f32 %v2177, %v2295
        %v2348 = vadd.f32 %v2182, %v2283
        %v2349 = vadd.f32 %v2182, %v2287
        %v2350 = vadd.f32 %v2182, %v2291
        %v2351 = vadd.f32 %v2182, %v2295
        %v2352 = vadd.f32 %v2187, %v2283
        %v2353 = vadd.f32 %v2187, %v2287
        %v2354 = vadd.f32 %v2187, %v2291
        %v2355 = vadd.f32 %v2187, %v2295
        %v2356 = vadd.f32 %v2192, %v2283
        %v2357 = vadd.f32 %v2192, %v2287
        %v2358 = vadd.f32 %v2192, %v2291
        %v2359 = vadd.f32 %v2192, %v2295
        %v2360 = vadd.f32 %v2197, %v2283
        %v2361 = vadd.f32 %v2197, %v2287
        %v2362 = vadd.f32 %v2197, %v2291
        %v2363 = vadd.f32 %v2197, %v2295
        %v2364 = vadd.f32 %v2202, %v2283
        %v2365 = vadd.f32 %v2202, %v2287
        %v2366 = vadd.f32 %v2202, %v2291
        %v2367 = vadd.f32 %v2202, %v2295
        %v2368 = vadd.f32 %v2207, %v2283
        %v2369 = vadd.f32 %v2207, %v2287
        %v2370 = vadd.f32 %v2207, %v2291
        %v2371 = vadd.f32 %v2207, %v2295
        %v2372 = vadd.f32 %v2212, %v2283
        %v2373 = vadd.f32 %v2212, %v2287
        %v2374 = vadd.f32 %v2212, %v2291
        %v2375 = vadd.f32 %v2212, %v2295
        %v2376 = vadd.f32 %v2217, %v2283
        %v2377 = vadd.f32 %v2217, %v2287
        %v2378 = vadd.f32 %v2217, %v2291
        %v2379 = vadd.f32 %v2217, %v2295
        %v2380 = vadd.f32 %v2222, %v2283
        %v2381 = vadd.f32 %v2222, %v2287
        %v2382 = vadd.f32 %v2222, %v2291
        %v2383 = vadd.f32 %v2222, %v2295
        %v2384 = vadd.f32 %v2227, %v2283
        %v2385 = vadd.f32 %v2227, %v2287
        %v2386 = vadd.f32 %v2227, %v2291
        %v2387 = vadd.f32 %v2227, %v2295
        %v2388 = vadd.f32 %v2232, %v2283
        %v2389 = vadd.f32 %v2232, %v2287
        %v2390 = vadd.f32 %v2232, %v2291
        %v2391 = vadd.f32 %v2232, %v2295
        %v2392 = vadd.f32 %v2237, %v2283
        %v2393 = vadd.f32 %v2237, %v2287
        %v2394 = vadd.f32 %v2237, %v2291
        %v2395 = vadd.f32 %v2237, %v2295
        %v2396 = vadd.f32 %v2242, %v2283
        %v2397 = vadd.f32 %v2242, %v2287
        %v2398 = vadd.f32 %v2242, %v2291
        %v2399 = vadd.f32 %v2242, %v2295
        %v2400 = vadd.f32 %v2247, %v2283
        %v2401 = vadd.f32 %v2247, %v2287
        %v2402 = vadd.f32 %v2247, %v2291
        %v2403 = vadd.f32 %v2247, %v2295
        %v2404 = vadd.f32 %v2252, %v2283
        %v2405 = vadd.f32 %v2252, %v2287
        %v2406 = vadd.f32 %v2252, %v2291
        %v2407 = vadd.f32 %v2252, %v2295
        %v2408 = vadd.f32 %v2257, %v2283
        %v2409 = vadd.f32 %v2257, %v2287
        %v2410 = vadd.f32 %v2257, %v2291
        %v2411 = vadd.f32 %v2257, %v2295
        %v2412 = vadd.f32 %v2262, %v2283
        %v2413 = vadd.f32 %v2262, %v2287
        %v2414 = vadd.f32 %v2262, %v2291
        %v2415 = vadd.f32 %v2262, %v2295
        %v2416 = vadd.f32 %v2267, %v2283
        %v2417 = vadd.f32 %v2267, %v2287
        %v2418 = vadd.f32 %v2267, %v2291
        %v2419 = vadd.f32 %v2267, %v2295
        %v2420 = vadd.f32 %v2272, %v2283
        %v2421 = vadd.f32 %v2272, %v2287
        %v2422 = vadd.f32 %v2272, %v2291
        %v2423 = vadd.f32 %v2272, %v2295
        %v2424 = vadd.f32 %v2277, %v2283
        %v2425 = vadd.f32 %v2277, %v2287
        %v2426 = vadd.f32 %v2277, %v2291
        %v2427 = vadd.f32 %v2277, %v2295
        %v2428 = vsub.f32 %v2300, %v1638
        %v2429 = vsub.f32 %v2301, %v1640
        %v2430 = vsub.f32 %v2302, %v1895
        %v2431 = vsub.f32 %v2303, %v1897
        %v2432 = vsub.f32 %v2304, %v1644
        %v2433 = vsub.f32 %v2305, %v1646
        %v2434 = vsub.f32 %v2306, %v1901
        %v2435 = vsub.f32 %v2307, %v1903
        %v2436 = vsub.f32 %v2308, %v1650
        %v2437 = vsub.f32 %v2309, %v1652
        %v2438 = vsub.f32 %v2310, %v1907
        %v2439 = vsub.f32 %v2311, %v1909
        %v2440 = vsub.f32 %v2312, %v1656
        %v2441 = vsub.f32 %v2313, %v1658
        %v2442 = vsub.f32 %v2314, %v1913
        %v2443 = vsub.f32 %v2315, %v1915
        %v2444 = vsub.f32 %v2316, %v1662
        %v2445 = vsub.f32 %v2317, %v1664
        %v2446 = vsub.f32 %v2318, %v1919
        %v2447 = vsub.f32 %v2319, %v1921
        %v2448 = vsub.f32 %v2320, %v1668
        %v2449 = vsub.f32 %v2321, %v1670
        %v2450 = vsub.f32 %v2322, %v1925
        %v2451 = vsub.f32 %v2323, %v1927
        %v2452 = vsub.f32 %v2324, %v1674
        %v2453 = vsub.f32 %v2325, %v1676
        %v2454 = vsub.f32 %v2326, %v1931
        %v2455 = vsub.f32 %v2327, %v1933
        %v2456 = vsub.f32 %v2328, %v1680
        %v2457 = vsub.f32 %v2329, %v1682
        %v2458 = vsub.f32 %v2330, %v1937
        %v2459 = vsub.f32 %v2331, %v1939
        %v2460 = vsub.f32 %v2332, %v1686
        %v2461 = vsub.f32 %v2333, %v1688
        %v2462 = vsub.f32 %v2334, %v1943
        %v2463 = vsub.f32 %v2335, %v1945
        %v2464 = vsub.f32 %v2336, %v1692
        %v2465 = vsub.f32 %v2337, %v1694
        %v2466 = vsub.f32 %v2338, %v1949
        %v2467 = vsub.f32 %v2339, %v1951
        %v2468 = vsub.f32 %v2340, %v1698
        %v2469 = vsub.f32 %v2341, %v1700
        %v2470 = vsub.f32 %v2342, %v1955
        %v2471 = vsub.f32 %v2343, %v1957
        %v2472 = vsub.f32 %v2344, %v1704
        %v2473 = vsub.f32 %v2345, %v1706
        %v2474 = vsub.f32 %v2346, %v1961
        %v2475 = vsub.f32 %v2347, %v1963
        %v2476 = vsub.f32 %v2348, %v1710
        %v2477 = vsub.f32 %v2349, %v1712
        %v2478 = vsub.f32 %v2350, %v1967
        %v2479 = vsub.f32 %v2351, %v1969
        %v2480 = vsub.f32 %v2352, %v1716
        %v2481 = vsub.f32 %v2353, %v1718
        %v2482 = vsub.f32 %v2354, %v1973
        %v2483 = vsub.f32 %v2355, %v1975
        %v2484 = vsub.f32 %v2356, %v1722
        %v2485 = vsub.f32 %v2357, %v1724
        %v2486 = vsub.f32 %v2358, %v1979
        %v2487 = vsub.f32 %v2359, %v1981
        %v2488 = vsub.f32 %v2360, %v1728
        %v2489 = vsub.f32 %v2361, %v1730
        %v2490 = vsub.f32 %v2362, %v1985
        %v2491 = vsub.f32 %v2363, %v1987
        %v2492 = vsub.f32 %v2364, %v1734
        %v2493 = vsub.f32 %v2365, %v1736
        %v2494 = vsub.f32 %v2366, %v1991
        %v2495 = vsub.f32 %v2367, %v1993
        %v2496 = vsub.f32 %v2368, %v1740
        %v2497 = vsub.f32 %v2369, %v1742
        %v2498 = vsub.f32 %v2370, %v1997
        %v2499 = vsub.f32 %v2371, %v1999
        %v2500 = vsub.f32 %v2372, %v1746
        %v2501 = vsub.f32 %v2373, %v1748
        %v2502 = vsub.f32 %v2374, %v2003
        %v2503 = vsub.f32 %v2375, %v2005
        %v2504 = vsub.f32 %v2376, %v1752
        %v2505 = vsub.f32 %v2377, %v1754
        %v2506 = vsub.f32 %v2378, %v2009
        %v2507 = vsub.f32 %v2379, %v2011
        %v2508 = vsub.f32 %v2380, %v1758
        %v2509 = vsub.f32 %v2381, %v1760
        %v2510 = vsub.f32 %v2382, %v2015
        %v2511 = vsub.f32 %v2383, %v2017
        %v2512 = vsub.f32 %v2384, %v1764
        %v2513 = vsub.f32 %v2385, %v1766
        %v2514 = vsub.f32 %v2386, %v2021
        %v2515 = vsub.f32 %v2387, %v2023
        %v2516 = vsub.f32 %v2388, %v1770
        %v2517 = vsub.f32 %v2389, %v1772
        %v2518 = vsub.f32 %v2390, %v2027
        %v2519 = vsub.f32 %v2391, %v2029
        %v2520 = vsub.f32 %v2392, %v1776
        %v2521 = vsub.f32 %v2393, %v1778
        %v2522 = vsub.f32 %v2394, %v2033
        %v2523 = vsub.f32 %v2395, %v2035
        %v2524 = vsub.f32 %v2396, %v1782
        %v2525 = vsub.f32 %v2397, %v1784
        %v2526 = vsub.f32 %v2398, %v2039
        %v2527 = vsub.f32 %v2399, %v2041
        %v2528 = vsub.f32 %v2400, %v1788
        %v2529 = vsub.f32 %v2401, %v1790
        %v2530 = vsub.f32 %v2402, %v2045
        %v2531 = vsub.f32 %v2403, %v2047
        %v2532 = vsub.f32 %v2404, %v1794
        %v2533 = vsub.f32 %v2405, %v1796
        %v2534 = vsub.f32 %v2406, %v2051
        %v2535 = vsub.f32 %v2407, %v2053
        %v2536 = vsub.f32 %v2408, %v1800
        %v2537 = vsub.f32 %v2409, %v1802
        %v2538 = vsub.f32 %v2410, %v2057
        %v2539 = vsub.f32 %v2411, %v2059
        %v2540 = vsub.f32 %v2412, %v1806
        %v2541 = vsub.f32 %v2413, %v1808
        %v2542 = vsub.f32 %v2414, %v2063
        %v2543 = vsub.f32 %v2415, %v2065
        %v2544 = vsub.f32 %v2416, %v1812
        %v2545 = vsub.f32 %v2417, %v1814
        %v2546 = vsub.f32 %v2418, %v2069
        %v2547 = vsub.f32 %v2419, %v2071
        %v2548 = vsub.f32 %v2420, %v1818
        %v2549 = vsub.f32 %v2421, %v1820
        %v2550 = vsub.f32 %v2422, %v2075
        %v2551 = vsub.f32 %v2423, %v2077
        %v2552 = vsub.f32 %v2424, %v1824
        %v2553 = vsub.f32 %v2425, %v1826
        %v2554 = vsub.f32 %v2426, %v2081
        %v2555 = vsub.f32 %v2427, %v2083
        %v2556 = vmax.f32 %v2428, 0.0
        %v2557 = vmax.f32 %v2429, 0.0
        %v2558 = vmax.f32 %v2430, 0.0
        %v2559 = vmax.f32 %v2431, 0.0
        %v2560 = vmax.f32 %v2432, 0.0
        %v2561 = vmax.f32 %v2433, 0.0
        %v2562 = vmax.f32 %v2434, 0.0
        %v2563 = vmax.f32 %v2435, 0.0
        %v2564 = vmax.f32 %v2436, 0.0
        %v2565 = vmax.f32 %v2437, 0.0
        %v2566 = vmax.f32 %v2438, 0.0
        %v2567 = vmax.f32 %v2439, 0.0
        %v2568 = vmax.f32 %v2440, 0.0
        %v2569 = vmax.f32 %v2441, 0.0
        %v2570 = vmax.f32 %v2442, 0.0
        %v2571 = vmax.f32 %v2443, 0.0
        %v2572 = vmax.f32 %v2444, 0.0
        %v2573 = vmax.f32 %v2445, 0.0
        %v2574 = vmax.f32 %v2446, 0.0
        %v2575 = vmax.f32 %v2447, 0.0
        %v2576 = vmax.f32 %v2448, 0.0
        %v2577 = vmax.f32 %v2449, 0.0
        %v2578 = vmax.f32 %v2450, 0.0
        %v2579 = vmax.f32 %v2451, 0.0
        %v2580 = vmax.f32 %v2452, 0.0
        %v2581 = vmax.f32 %v2453, 0.0
        %v2582 = vmax.f32 %v2454, 0.0
        %v2583 = vmax.f32 %v2455, 0.0
        %v2584 = vmax.f32 %v2456, 0.0
        %v2585 = vmax.f32 %v2457, 0.0
        %v2586 = vmax.f32 %v2458, 0.0
        %v2587 = vmax.f32 %v2459, 0.0
        %v2588 = vmax.f32 %v2460, 0.0
        %v2589 = vmax.f32 %v2461, 0.0
        %v2590 = vmax.f32 %v2462, 0.0
        %v2591 = vmax.f32 %v2463, 0.0
        %v2592 = vmax.f32 %v2464, 0.0
        %v2593 = vmax.f32 %v2465, 0.0
        %v2594 = vmax.f32 %v2466, 0.0
        %v2595 = vmax.f32 %v2467, 0.0
        %v2596 = vmax.f32 %v2468, 0.0
        %v2597 = vmax.f32 %v2469, 0.0
        %v2598 = vmax.f32 %v2470, 0.0
        %v2599 = vmax.f32 %v2471, 0.0
        %v2600 = vmax.f32 %v2472, 0.0
        %v2601 = vmax.f32 %v2473, 0.0
        %v2602 = vmax.f32 %v2474, 0.0
        %v2603 = vmax.f32 %v2475, 0.0
        %v2604 = vmax.f32 %v2476, 0.0
        %v2605 = vmax.f32 %v2477, 0.0
        %v2606 = vmax.f32 %v2478, 0.0
        %v2607 = vmax.f32 %v2479, 0.0
        %v2608 = vmax.f32 %v2480, 0.0
        %v2609 = vmax.f32 %v2481, 0.0
        %v2610 = vmax.f32 %v2482, 0.0
        %v2611 = vmax.f32 %v2483, 0.0
        %v2612 = vmax.f32 %v2484, 0.0
        %v2613 = vmax.f32 %v2485, 0.0
        %v2614 = vmax.f32 %v2486, 0.0
        %v2615 = vmax.f32 %v2487, 0.0
        %v2616 = vmax.f32 %v2488, 0.0
        %v2617 = vmax.f32 %v2489, 0.0
        %v2618 = vmax.f32 %v2490, 0.0
        %v2619 = vmax.f32 %v2491, 0.0
        %v2620 = vmax.f32 %v2492, 0.0
        %v2621 = vmax.f32 %v2493, 0.0
        %v2622 = vmax.f32 %v2494, 0.0
        %v2623 = vmax.f32 %v2495, 0.0
        %v2624 = vmax.f32 %v2496, 0.0
        %v2625 = vmax.f32 %v2497, 0.0
        %v2626 = vmax.f32 %v2498, 0.0
        %v2627 = vmax.f32 %v2499, 0.0
        %v2628 = vmax.f32 %v2500, 0.0
        %v2629 = vmax.f32 %v2501, 0.0
        %v2630 = vmax.f32 %v2502, 0.0
        %v2631 = vmax.f32 %v2503, 0.0
        %v2632 = vmax.f32 %v2504, 0.0
        %v2633 = vmax.f32 %v2505, 0.0
        %v2634 = vmax.f32 %v2506, 0.0
        %v2635 = vmax.f32 %v2507, 0.0
        %v2636 = vmax.f32 %v2508, 0.0
        %v2637 = vmax.f32 %v2509, 0.0
        %v2638 = vmax.f32 %v2510, 0.0
        %v2639 = vmax.f32 %v2511, 0.0
        %v2640 = vmax.f32 %v2512, 0.0
        %v2641 = vmax.f32 %v2513, 0.0
        %v2642 = vmax.f32 %v2514, 0.0
        %v2643 = vmax.f32 %v2515, 0.0
        %v2644 = vmax.f32 %v2516, 0.0
        %v2645 = vmax.f32 %v2517, 0.0
        %v2646 = vmax.f32 %v2518, 0.0
        %v2647 = vmax.f32 %v2519, 0.0
        %v2648 = vmax.f32 %v2520, 0.0
        %v2649 = vmax.f32 %v2521, 0.0
        %v2650 = vmax.f32 %v2522, 0.0
        %v2651 = vmax.f32 %v2523, 0.0
        %v2652 = vmax.f32 %v2524, 0.0
        %v2653 = vmax.f32 %v2525, 0.0
        %v2654 = vmax.f32 %v2526, 0.0
        %v2655 = vmax.f32 %v2527, 0.0
        %v2656 = vmax.f32 %v2528, 0.0
        %v2657 = vmax.f32 %v2529, 0.0
        %v2658 = vmax.f32 %v2530, 0.0
        %v2659 = vmax.f32 %v2531, 0.0
        %v2660 = vmax.f32 %v2532, 0.0
        %v2661 = vmax.f32 %v2533, 0.0
        %v2662 = vmax.f32 %v2534, 0.0
        %v2663 = vmax.f32 %v2535, 0.0
        %v2664 = vmax.f32 %v2536, 0.0
        %v2665 = vmax.f32 %v2537, 0.0
        %v2666 = vmax.f32 %v2538, 0.0
        %v2667 = vmax.f32 %v2539, 0.0
        %v2668 = vmax.f32 %v2540, 0.0
        %v2669 = vmax.f32 %v2541, 0.0
        %v2670 = vmax.f32 %v2542, 0.0
        %v2671 = vmax.f32 %v2543, 0.0
        %v2672 = vmax.f32 %v2544, 0.0
        %v2673 = vmax.f32 %v2545, 0.0
        %v2674 = vmax.f32 %v2546, 0.0
        %v2675 = vmax.f32 %v2547, 0.0
        %v2676 = vmax.f32 %v2548, 0.0
        %v2677 = vmax.f32 %v2549, 0.0
        %v2678 = vmax.f32 %v2550, 0.0
        %v2679 = vmax.f32 %v2551, 0.0
        %v2680 = vmax.f32 %v2552, 0.0
        %v2681 = vmax.f32 %v2553, 0.0
        %v2682 = vmax.f32 %v2554, 0.0
        %v2683 = vmax.f32 %v2555, 0.0
        %v2684 = vld [vmem:[%s444] sm:$0xff]
        %v2685 = vld [vmem:[%s444 + $0x8] sm:$0xff]
        %v2686 = vld [vmem:[%s444 + $0x10] sm:$0xff]
        %v2687 = vld [vmem:[%s444 + $0x18] sm:$0xff]
        %v2688 = vld [vmem:[%s444 + $0x20] sm:$0xff]
        %v2689 = vld [vmem:[%s444 + $0x28] sm:$0xff]
        %v2690 = vld [vmem:[%s444 + $0x30] sm:$0xff]
        %v2691 = vld [vmem:[%s444 + $0x38] sm:$0xff]
        %v2692 = vld [vmem:[%s444 + $0x40] sm:$0xff]
        %v2693 = vld [vmem:[%s444 + $0x48] sm:$0xff]
        %v2694 = vld [vmem:[%s444 + $0x50] sm:$0xff]
        %v2695 = vld [vmem:[%s444 + $0x58] sm:$0xff]
        %v2696 = vld [vmem:[%s444 + $0x60] sm:$0xff]
        %v2697 = vld [vmem:[%s444 + $0x68] sm:$0xff]
        %v2698 = vld [vmem:[%s444 + $0x70] sm:$0xff]
        %v2699 = vld [vmem:[%s444 + $0x78] sm:$0xff]
        %v2700 = vld [vmem:[%s444 + $0x80] sm:$0xff]
        %v2701 = vld [vmem:[%s444 + $0x88] sm:$0xff]
        %v2702 = vld [vmem:[%s444 + $0x90] sm:$0xff]
        %v2703 = vld [vmem:[%s444 + $0x98] sm:$0xff]
        %v2704 = vld [vmem:[%s444 + $0xa0] sm:$0xff]
        %v2705 = vld [vmem:[%s444 + $0xa8] sm:$0xff]
        %v2706 = vld [vmem:[%s444 + $0xb0] sm:$0xff]
        %v2707 = vld [vmem:[%s444 + $0xb8] sm:$0xff]
        %v2708 = vld [vmem:[%s444 + $0xc0] sm:$0xff]
        %v2709 = vld [vmem:[%s444 + $0xc8] sm:$0xff]
        %v2710 = vld [vmem:[%s444 + $0xd0] sm:$0xff]
        %v2711 = vld [vmem:[%s444 + $0xd8] sm:$0xff]
        %v2712 = vld [vmem:[%s444 + $0xe0] sm:$0xff]
        %v2713 = vld [vmem:[%s444 + $0xe8] sm:$0xff]
        %v2714 = vld [vmem:[%s444 + $0xf0] sm:$0xff]
        %v2715 = vld [vmem:[%s444 + $0xf8] sm:$0xff]
        %v2716 = vld [vmem:[%s450] ss:$2 sm:$0xf]
        %2718 = vset.pattern.permute.xlu0 1
        %2719 = vperm.xlu0 %2718, %v2684
        %v2720 = vpop.permute.xlu0 %2719
        %2723 = vset.pattern.permute.xlu0 1
        %2724 = vperm.xlu0 %2723, %v2685
        %v2725 = vpop.permute.xlu0 %2724
        %2728 = vset.pattern.permute.xlu0 1
        %2729 = vperm.xlu0 %2728, %v2686
        %v2730 = vpop.permute.xlu0 %2729
        %2733 = vset.pattern.permute.xlu0 1
        %2734 = vperm.xlu0 %2733, %v2687
        %v2735 = vpop.permute.xlu0 %2734
        %2738 = vset.pattern.permute.xlu0 1
        %2739 = vperm.xlu0 %2738, %v2688
        %v2740 = vpop.permute.xlu0 %2739
        %2743 = vset.pattern.permute.xlu0 1
        %2744 = vperm.xlu0 %2743, %v2689
        %v2745 = vpop.permute.xlu0 %2744
        %2748 = vset.pattern.permute.xlu0 1
        %2749 = vperm.xlu0 %2748, %v2690
        %v2750 = vpop.permute.xlu0 %2749
        %2753 = vset.pattern.permute.xlu0 1
        %2754 = vperm.xlu0 %2753, %v2691
        %v2755 = vpop.permute.xlu0 %2754
        %2758 = vset.pattern.permute.xlu0 1
        %2759 = vperm.xlu0 %2758, %v2692
        %v2760 = vpop.permute.xlu0 %2759
        %2763 = vset.pattern.permute.xlu0 1
        %2764 = vperm.xlu0 %2763, %v2693
        %v2765 = vpop.permute.xlu0 %2764
        %2768 = vset.pattern.permute.xlu0 1
        %2769 = vperm.xlu0 %2768, %v2694
        %v2770 = vpop.permute.xlu0 %2769
        %2773 = vset.pattern.permute.xlu0 1
        %2774 = vperm.xlu0 %2773, %v2695
        %v2775 = vpop.permute.xlu0 %2774
        %2778 = vset.pattern.permute.xlu0 1
        %2779 = vperm.xlu0 %2778, %v2696
        %v2780 = vpop.permute.xlu0 %2779
        %2783 = vset.pattern.permute.xlu0 1
        %2784 = vperm.xlu0 %2783, %v2697
        %v2785 = vpop.permute.xlu0 %2784
        %2788 = vset.pattern.permute.xlu0 1
        %2789 = vperm.xlu0 %2788, %v2698
        %v2790 = vpop.permute.xlu0 %2789
        %2793 = vset.pattern.permute.xlu0 1
        %2794 = vperm.xlu0 %2793, %v2699
        %v2795 = vpop.permute.xlu0 %2794
        %2798 = vset.pattern.permute.xlu0 1
        %2799 = vperm.xlu0 %2798, %v2700
        %v2800 = vpop.permute.xlu0 %2799
        %2803 = vset.pattern.permute.xlu0 1
        %2804 = vperm.xlu0 %2803, %v2701
        %v2805 = vpop.permute.xlu0 %2804
        %2808 = vset.pattern.permute.xlu0 1
        %2809 = vperm.xlu0 %2808, %v2702
        %v2810 = vpop.permute.xlu0 %2809
        %2813 = vset.pattern.permute.xlu0 1
        %2814 = vperm.xlu0 %2813, %v2703
        %v2815 = vpop.permute.xlu0 %2814
        %2818 = vset.pattern.permute.xlu0 1
        %2819 = vperm.xlu0 %2818, %v2704
        %v2820 = vpop.permute.xlu0 %2819
        %2823 = vset.pattern.permute.xlu0 1
        %2824 = vperm.xlu0 %2823, %v2705
        %v2825 = vpop.permute.xlu0 %2824
        %2828 = vset.pattern.permute.xlu0 1
        %2829 = vperm.xlu0 %2828, %v2706
        %v2830 = vpop.permute.xlu0 %2829
        %2833 = vset.pattern.permute.xlu0 1
        %2834 = vperm.xlu0 %2833, %v2707
        %v2835 = vpop.permute.xlu0 %2834
        %2838 = vset.pattern.permute.xlu0 1
        %2839 = vperm.xlu0 %2838, %v2708
        %v2840 = vpop.permute.xlu0 %2839
        %2843 = vset.pattern.permute.xlu0 1
        %2844 = vperm.xlu0 %2843, %v2709
        %v2845 = vpop.permute.xlu0 %2844
        %2848 = vset.pattern.permute.xlu0 1
        %2849 = vperm.xlu0 %2848, %v2710
        %v2850 = vpop.permute.xlu0 %2849
        %2853 = vset.pattern.permute.xlu0 1
        %2854 = vperm.xlu0 %2853, %v2711
        %v2855 = vpop.permute.xlu0 %2854
        %2858 = vset.pattern.permute.xlu0 1
        %2859 = vperm.xlu0 %2858, %v2712
        %v2860 = vpop.permute.xlu0 %2859
        %2863 = vset.pattern.permute.xlu0 1
        %2864 = vperm.xlu0 %2863, %v2713
        %v2865 = vpop.permute.xlu0 %2864
        %2868 = vset.pattern.permute.xlu0 1
        %2869 = vperm.xlu0 %2868, %v2714
        %v2870 = vpop.permute.xlu0 %2869
        %2873 = vset.pattern.permute.xlu0 1
        %2874 = vperm.xlu0 %2873, %v2715
        %v2875 = vpop.permute.xlu0 %2874
        %v2878 = vlaneseq
        %v2879 = vshrl.u32 %v2878, 7
        %v2880 = vsub.s32 0, %v2879
        %v2881 = vrot.slane %v2716, %v2880
        %v2882 = vlaneseq
        %v2883 = vshrl.u32 %v2882, 7
        %v2884 = vsub.s32 1, %v2883
        %v2885 = vrot.slane %v2716, %v2884
        %v2886 = vlaneseq
        %v2887 = vshrl.u32 %v2886, 7
        %v2888 = vsub.s32 2, %v2887
        %v2889 = vrot.slane %v2716, %v2888
        %v2890 = vlaneseq
        %v2891 = vshrl.u32 %v2890, 7
        %v2892 = vsub.s32 3, %v2891
        %v2893 = vrot.slane %v2716, %v2892
        %vm2898 = vcmp.eq.f32.partialorder %v2720, %v2881
        %vm2899 = vcmp.eq.f32.partialorder %v2720, %v2885
        %vm2900 = vcmp.eq.f32.partialorder %v2720, %v2889
        %vm2901 = vcmp.eq.f32.partialorder %v2720, %v2893
        %vm2902 = vcmp.eq.f32.partialorder %v2725, %v2881
        %vm2903 = vcmp.eq.f32.partialorder %v2725, %v2885
        %vm2904 = vcmp.eq.f32.partialorder %v2725, %v2889
        %vm2905 = vcmp.eq.f32.partialorder %v2725, %v2893
        %vm2906 = vcmp.eq.f32.partialorder %v2730, %v2881
        %vm2907 = vcmp.eq.f32.partialorder %v2730, %v2885
        %vm2908 = vcmp.eq.f32.partialorder %v2730, %v2889
        %vm2909 = vcmp.eq.f32.partialorder %v2730, %v2893
        %vm2910 = vcmp.eq.f32.partialorder %v2735, %v2881
        %vm2911 = vcmp.eq.f32.partialorder %v2735, %v2885
        %vm2912 = vcmp.eq.f32.partialorder %v2735, %v2889
        %vm2913 = vcmp.eq.f32.partialorder %v2735, %v2893
        %vm2914 = vcmp.eq.f32.partialorder %v2740, %v2881
        %vm2915 = vcmp.eq.f32.partialorder %v2740, %v2885
        %vm2916 = vcmp.eq.f32.partialorder %v2740, %v2889
        %vm2917 = vcmp.eq.f32.partialorder %v2740, %v2893
        %vm2918 = vcmp.eq.f32.partialorder %v2745, %v2881
        %vm2919 = vcmp.eq.f32.partialorder %v2745, %v2885
        %vm2920 = vcmp.eq.f32.partialorder %v2745, %v2889
        %vm2921 = vcmp.eq.f32.partialorder %v2745, %v2893
        %vm2922 = vcmp.eq.f32.partialorder %v2750, %v2881
        %vm2923 = vcmp.eq.f32.partialorder %v2750, %v2885
        %vm2924 = vcmp.eq.f32.partialorder %v2750, %v2889
        %vm2925 = vcmp.eq.f32.partialorder %v2750, %v2893
        %vm2926 = vcmp.eq.f32.partialorder %v2755, %v2881
        %vm2927 = vcmp.eq.f32.partialorder %v2755, %v2885
        %vm2928 = vcmp.eq.f32.partialorder %v2755, %v2889
        %vm2929 = vcmp.eq.f32.partialorder %v2755, %v2893
        %vm2930 = vcmp.eq.f32.partialorder %v2760, %v2881
        %vm2931 = vcmp.eq.f32.partialorder %v2760, %v2885
        %vm2932 = vcmp.eq.f32.partialorder %v2760, %v2889
        %vm2933 = vcmp.eq.f32.partialorder %v2760, %v2893
        %vm2934 = vcmp.eq.f32.partialorder %v2765, %v2881
        %vm2935 = vcmp.eq.f32.partialorder %v2765, %v2885
        %vm2936 = vcmp.eq.f32.partialorder %v2765, %v2889
        %vm2937 = vcmp.eq.f32.partialorder %v2765, %v2893
        %vm2938 = vcmp.eq.f32.partialorder %v2770, %v2881
        %vm2939 = vcmp.eq.f32.partialorder %v2770, %v2885
        %vm2940 = vcmp.eq.f32.partialorder %v2770, %v2889
        %vm2941 = vcmp.eq.f32.partialorder %v2770, %v2893
        %vm2942 = vcmp.eq.f32.partialorder %v2775, %v2881
        %vm2943 = vcmp.eq.f32.partialorder %v2775, %v2885
        %vm2944 = vcmp.eq.f32.partialorder %v2775, %v2889
        %vm2945 = vcmp.eq.f32.partialorder %v2775, %v2893
        %vm2946 = vcmp.eq.f32.partialorder %v2780, %v2881
        %vm2947 = vcmp.eq.f32.partialorder %v2780, %v2885
        %vm2948 = vcmp.eq.f32.partialorder %v2780, %v2889
        %vm2949 = vcmp.eq.f32.partialorder %v2780, %v2893
        %vm2950 = vcmp.eq.f32.partialorder %v2785, %v2881
        %vm2951 = vcmp.eq.f32.partialorder %v2785, %v2885
        %vm2952 = vcmp.eq.f32.partialorder %v2785, %v2889
        %vm2953 = vcmp.eq.f32.partialorder %v2785, %v2893
        %vm2954 = vcmp.eq.f32.partialorder %v2790, %v2881
        %vm2955 = vcmp.eq.f32.partialorder %v2790, %v2885
        %vm2956 = vcmp.eq.f32.partialorder %v2790, %v2889
        %vm2957 = vcmp.eq.f32.partialorder %v2790, %v2893
        %vm2958 = vcmp.eq.f32.partialorder %v2795, %v2881
        %vm2959 = vcmp.eq.f32.partialorder %v2795, %v2885
        %vm2960 = vcmp.eq.f32.partialorder %v2795, %v2889
        %vm2961 = vcmp.eq.f32.partialorder %v2795, %v2893
        %vm2962 = vcmp.eq.f32.partialorder %v2800, %v2881
        %vm2963 = vcmp.eq.f32.partialorder %v2800, %v2885
        %vm2964 = vcmp.eq.f32.partialorder %v2800, %v2889
        %vm2965 = vcmp.eq.f32.partialorder %v2800, %v2893
        %vm2966 = vcmp.eq.f32.partialorder %v2805, %v2881
        %vm2967 = vcmp.eq.f32.partialorder %v2805, %v2885
        %vm2968 = vcmp.eq.f32.partialorder %v2805, %v2889
        %vm2969 = vcmp.eq.f32.partialorder %v2805, %v2893
        %vm2970 = vcmp.eq.f32.partialorder %v2810, %v2881
        %vm2971 = vcmp.eq.f32.partialorder %v2810, %v2885
        %vm2972 = vcmp.eq.f32.partialorder %v2810, %v2889
        %vm2973 = vcmp.eq.f32.partialorder %v2810, %v2893
        %vm2974 = vcmp.eq.f32.partialorder %v2815, %v2881
        %vm2975 = vcmp.eq.f32.partialorder %v2815, %v2885
        %vm2976 = vcmp.eq.f32.partialorder %v2815, %v2889
        %vm2977 = vcmp.eq.f32.partialorder %v2815, %v2893
        %vm2978 = vcmp.eq.f32.partialorder %v2820, %v2881
        %vm2979 = vcmp.eq.f32.partialorder %v2820, %v2885
        %vm2980 = vcmp.eq.f32.partialorder %v2820, %v2889
        %vm2981 = vcmp.eq.f32.partialorder %v2820, %v2893
        %vm2982 = vcmp.eq.f32.partialorder %v2825, %v2881
        %vm2983 = vcmp.eq.f32.partialorder %v2825, %v2885
        %vm2984 = vcmp.eq.f32.partialorder %v2825, %v2889
        %vm2985 = vcmp.eq.f32.partialorder %v2825, %v2893
        %vm2986 = vcmp.eq.f32.partialorder %v2830, %v2881
        %vm2987 = vcmp.eq.f32.partialorder %v2830, %v2885
        %vm2988 = vcmp.eq.f32.partialorder %v2830, %v2889
        %vm2989 = vcmp.eq.f32.partialorder %v2830, %v2893
        %vm2990 = vcmp.eq.f32.partialorder %v2835, %v2881
        %vm2991 = vcmp.eq.f32.partialorder %v2835, %v2885
        %vm2992 = vcmp.eq.f32.partialorder %v2835, %v2889
        %vm2993 = vcmp.eq.f32.partialorder %v2835, %v2893
        %vm2994 = vcmp.eq.f32.partialorder %v2840, %v2881
        %vm2995 = vcmp.eq.f32.partialorder %v2840, %v2885
        %vm2996 = vcmp.eq.f32.partialorder %v2840, %v2889
        %vm2997 = vcmp.eq.f32.partialorder %v2840, %v2893
        %vm2998 = vcmp.eq.f32.partialorder %v2845, %v2881
        %vm2999 = vcmp.eq.f32.partialorder %v2845, %v2885
        %vm3000 = vcmp.eq.f32.partialorder %v2845, %v2889
        %vm3001 = vcmp.eq.f32.partialorder %v2845, %v2893
        %vm3002 = vcmp.eq.f32.partialorder %v2850, %v2881
        %vm3003 = vcmp.eq.f32.partialorder %v2850, %v2885
        %vm3004 = vcmp.eq.f32.partialorder %v2850, %v2889
        %vm3005 = vcmp.eq.f32.partialorder %v2850, %v2893
        %vm3006 = vcmp.eq.f32.partialorder %v2855, %v2881
        %vm3007 = vcmp.eq.f32.partialorder %v2855, %v2885
        %vm3008 = vcmp.eq.f32.partialorder %v2855, %v2889
        %vm3009 = vcmp.eq.f32.partialorder %v2855, %v2893
        %vm3010 = vcmp.eq.f32.partialorder %v2860, %v2881
        %vm3011 = vcmp.eq.f32.partialorder %v2860, %v2885
        %vm3012 = vcmp.eq.f32.partialorder %v2860, %v2889
        %vm3013 = vcmp.eq.f32.partialorder %v2860, %v2893
        %vm3014 = vcmp.eq.f32.partialorder %v2865, %v2881
        %vm3015 = vcmp.eq.f32.partialorder %v2865, %v2885
        %vm3016 = vcmp.eq.f32.partialorder %v2865, %v2889
        %vm3017 = vcmp.eq.f32.partialorder %v2865, %v2893
        %vm3018 = vcmp.eq.f32.partialorder %v2870, %v2881
        %vm3019 = vcmp.eq.f32.partialorder %v2870, %v2885
        %vm3020 = vcmp.eq.f32.partialorder %v2870, %v2889
        %vm3021 = vcmp.eq.f32.partialorder %v2870, %v2893
        %vm3022 = vcmp.eq.f32.partialorder %v2875, %v2881
        %vm3023 = vcmp.eq.f32.partialorder %v2875, %v2885
        %vm3024 = vcmp.eq.f32.partialorder %v2875, %v2889
        %vm3025 = vcmp.eq.f32.partialorder %v2875, %v2893
        %v3026 = vsel %vm2898, 1e+16, %v2556
        %v3027 = vsel %vm2899, 1e+16, %v2557
        %v3028 = vsel %vm2900, 1e+16, %v2558
        %v3029 = vsel %vm2901, 1e+16, %v2559
        %v3030 = vsel %vm2902, 1e+16, %v2560
        %v3031 = vsel %vm2903, 1e+16, %v2561
        %v3032 = vsel %vm2904, 1e+16, %v2562
        %v3033 = vsel %vm2905, 1e+16, %v2563
        %v3034 = vsel %vm2906, 1e+16, %v2564
        %v3035 = vsel %vm2907, 1e+16, %v2565
        %v3036 = vsel %vm2908, 1e+16, %v2566
        %v3037 = vsel %vm2909, 1e+16, %v2567
        %v3038 = vsel %vm2910, 1e+16, %v2568
        %v3039 = vsel %vm2911, 1e+16, %v2569
        %v3040 = vsel %vm2912, 1e+16, %v2570
        %v3041 = vsel %vm2913, 1e+16, %v2571
        %v3042 = vsel %vm2914, 1e+16, %v2572
        %v3043 = vsel %vm2915, 1e+16, %v2573
        %v3044 = vsel %vm2916, 1e+16, %v2574
        %v3045 = vsel %vm2917, 1e+16, %v2575
        %v3046 = vsel %vm2918, 1e+16, %v2576
        %v3047 = vsel %vm2919, 1e+16, %v2577
        %v3048 = vsel %vm2920, 1e+16, %v2578
        %v3049 = vsel %vm2921, 1e+16, %v2579
        %v3050 = vsel %vm2922, 1e+16, %v2580
        %v3051 = vsel %vm2923, 1e+16, %v2581
        %v3052 = vsel %vm2924, 1e+16, %v2582
        %v3053 = vsel %vm2925, 1e+16, %v2583
        %v3054 = vsel %vm2926, 1e+16, %v2584
        %v3055 = vsel %vm2927, 1e+16, %v2585
        %v3056 = vsel %vm2928, 1e+16, %v2586
        %v3057 = vsel %vm2929, 1e+16, %v2587
        %v3058 = vsel %vm2930, 1e+16, %v2588
        %v3059 = vsel %vm2931, 1e+16, %v2589
        %v3060 = vsel %vm2932, 1e+16, %v2590
        %v3061 = vsel %vm2933, 1e+16, %v2591
        %v3062 = vsel %vm2934, 1e+16, %v2592
        %v3063 = vsel %vm2935, 1e+16, %v2593
        %v3064 = vsel %vm2936, 1e+16, %v2594
        %v3065 = vsel %vm2937, 1e+16, %v2595
        %v3066 = vsel %vm2938, 1e+16, %v2596
        %v3067 = vsel %vm2939, 1e+16, %v2597
        %v3068 = vsel %vm2940, 1e+16, %v2598
        %v3069 = vsel %vm2941, 1e+16, %v2599
        %v3070 = vsel %vm2942, 1e+16, %v2600
        %v3071 = vsel %vm2943, 1e+16, %v2601
        %v3072 = vsel %vm2944, 1e+16, %v2602
        %v3073 = vsel %vm2945, 1e+16, %v2603
        %v3074 = vsel %vm2946, 1e+16, %v2604
        %v3075 = vsel %vm2947, 1e+16, %v2605
        %v3076 = vsel %vm2948, 1e+16, %v2606
        %v3077 = vsel %vm2949, 1e+16, %v2607
        %v3078 = vsel %vm2950, 1e+16, %v2608
        %v3079 = vsel %vm2951, 1e+16, %v2609
        %v3080 = vsel %vm2952, 1e+16, %v2610
        %v3081 = vsel %vm2953, 1e+16, %v2611
        %v3082 = vsel %vm2954, 1e+16, %v2612
        %v3083 = vsel %vm2955, 1e+16, %v2613
        %v3084 = vsel %vm2956, 1e+16, %v2614
        %v3085 = vsel %vm2957, 1e+16, %v2615
        %v3086 = vsel %vm2958, 1e+16, %v2616
        %v3087 = vsel %vm2959, 1e+16, %v2617
        %v3088 = vsel %vm2960, 1e+16, %v2618
        %v3089 = vsel %vm2961, 1e+16, %v2619
        %v3090 = vsel %vm2962, 1e+16, %v2620
        %v3091 = vsel %vm2963, 1e+16, %v2621
        %v3092 = vsel %vm2964, 1e+16, %v2622
        %v3093 = vsel %vm2965, 1e+16, %v2623
        %v3094 = vsel %vm2966, 1e+16, %v2624
        %v3095 = vsel %vm2967, 1e+16, %v2625
        %v3096 = vsel %vm2968, 1e+16, %v2626
        %v3097 = vsel %vm2969, 1e+16, %v2627
        %v3098 = vsel %vm2970, 1e+16, %v2628
        %v3099 = vsel %vm2971, 1e+16, %v2629
        %v3100 = vsel %vm2972, 1e+16, %v2630
        %v3101 = vsel %vm2973, 1e+16, %v2631
        %v3102 = vsel %vm2974, 1e+16, %v2632
        %v3103 = vsel %vm2975, 1e+16, %v2633
        %v3104 = vsel %vm2976, 1e+16, %v2634
        %v3105 = vsel %vm2977, 1e+16, %v2635
        %v3106 = vsel %vm2978, 1e+16, %v2636
        %v3107 = vsel %vm2979, 1e+16, %v2637
        %v3108 = vsel %vm2980, 1e+16, %v2638
        %v3109 = vsel %vm2981, 1e+16, %v2639
        %v3110 = vsel %vm2982, 1e+16, %v2640
        %v3111 = vsel %vm2983, 1e+16, %v2641
        %v3112 = vsel %vm2984, 1e+16, %v2642
        %v3113 = vsel %vm2985, 1e+16, %v2643
        %v3114 = vsel %vm2986, 1e+16, %v2644
        %v3115 = vsel %vm2987, 1e+16, %v2645
        %v3116 = vsel %vm2988, 1e+16, %v2646
        %v3117 = vsel %vm2989, 1e+16, %v2647
        %v3118 = vsel %vm2990, 1e+16, %v2648
        %v3119 = vsel %vm2991, 1e+16, %v2649
        %v3120 = vsel %vm2992, 1e+16, %v2650
        %v3121 = vsel %vm2993, 1e+16, %v2651
        %v3122 = vsel %vm2994, 1e+16, %v2652
        %v3123 = vsel %vm2995, 1e+16, %v2653
        %v3124 = vsel %vm2996, 1e+16, %v2654
        %v3125 = vsel %vm2997, 1e+16, %v2655
        %v3126 = vsel %vm2998, 1e+16, %v2656
        %v3127 = vsel %vm2999, 1e+16, %v2657
        %v3128 = vsel %vm3000, 1e+16, %v2658
        %v3129 = vsel %vm3001, 1e+16, %v2659
        %v3130 = vsel %vm3002, 1e+16, %v2660
        %v3131 = vsel %vm3003, 1e+16, %v2661
        %v3132 = vsel %vm3004, 1e+16, %v2662
        %v3133 = vsel %vm3005, 1e+16, %v2663
        %v3134 = vsel %vm3006, 1e+16, %v2664
        %v3135 = vsel %vm3007, 1e+16, %v2665
        %v3136 = vsel %vm3008, 1e+16, %v2666
        %v3137 = vsel %vm3009, 1e+16, %v2667
        %v3138 = vsel %vm3010, 1e+16, %v2668
        %v3139 = vsel %vm3011, 1e+16, %v2669
        %v3140 = vsel %vm3012, 1e+16, %v2670
        %v3141 = vsel %vm3013, 1e+16, %v2671
        %v3142 = vsel %vm3014, 1e+16, %v2672
        %v3143 = vsel %vm3015, 1e+16, %v2673
        %v3144 = vsel %vm3016, 1e+16, %v2674
        %v3145 = vsel %vm3017, 1e+16, %v2675
        %v3146 = vsel %vm3018, 1e+16, %v2676
        %v3147 = vsel %vm3019, 1e+16, %v2677
        %v3148 = vsel %vm3020, 1e+16, %v2678
        %v3149 = vsel %vm3021, 1e+16, %v2679
        %v3150 = vsel %vm3022, 1e+16, %v2680
        %v3151 = vsel %vm3023, 1e+16, %v2681
        %v3152 = vsel %vm3024, 1e+16, %v2682
        %v3153 = vsel %vm3025, 1e+16, %v2683
        %v3154 = vld [vmem:[#allocation4] sm:$0xff]
        %v3155 = vld [vmem:[#allocation4 + $0x8] sm:$0xff]
        %v3156 = vld [vmem:[#allocation4 + $0x10] sm:$0xff]
        %v3157 = vld [vmem:[#allocation4 + $0x18] sm:$0xff]
        %v3158 = vld [vmem:[#allocation4 + $0x20] sm:$0xff]
        %v3159 = vld [vmem:[#allocation4 + $0x28] sm:$0xff]
        %v3160 = vld [vmem:[#allocation4 + $0x30] sm:$0xff]
        %v3161 = vld [vmem:[#allocation4 + $0x38] sm:$0xff]
        %v3162 = vld [vmem:[#allocation4 + $0x40] sm:$0xff]
        %v3163 = vld [vmem:[#allocation4 + $0x48] sm:$0xff]
        %v3164 = vld [vmem:[#allocation4 + $0x50] sm:$0xff]
        %v3165 = vld [vmem:[#allocation4 + $0x58] sm:$0xff]
        %v3166 = vld [vmem:[#allocation4 + $0x60] sm:$0xff]
        %v3167 = vld [vmem:[#allocation4 + $0x68] sm:$0xff]
        %v3168 = vld [vmem:[#allocation4 + $0x70] sm:$0xff]
        %v3169 = vld [vmem:[#allocation4 + $0x78] sm:$0xff]
        %v3170 = vld [vmem:[#allocation4 + $0x80] sm:$0xff]
        %v3171 = vld [vmem:[#allocation4 + $0x88] sm:$0xff]
        %v3172 = vld [vmem:[#allocation4 + $0x90] sm:$0xff]
        %v3173 = vld [vmem:[#allocation4 + $0x98] sm:$0xff]
        %v3174 = vld [vmem:[#allocation4 + $0xa0] sm:$0xff]
        %v3175 = vld [vmem:[#allocation4 + $0xa8] sm:$0xff]
        %v3176 = vld [vmem:[#allocation4 + $0xb0] sm:$0xff]
        %v3177 = vld [vmem:[#allocation4 + $0xb8] sm:$0xff]
        %v3178 = vld [vmem:[#allocation4 + $0xc0] sm:$0xff]
        %v3179 = vld [vmem:[#allocation4 + $0xc8] sm:$0xff]
        %v3180 = vld [vmem:[#allocation4 + $0xd0] sm:$0xff]
        %v3181 = vld [vmem:[#allocation4 + $0xd8] sm:$0xff]
        %v3182 = vld [vmem:[#allocation4 + $0xe0] sm:$0xff]
        %v3183 = vld [vmem:[#allocation4 + $0xe8] sm:$0xff]
        %v3184 = vld [vmem:[#allocation4 + $0xf0] sm:$0xff]
        %v3185 = vld [vmem:[#allocation4 + $0xf8] sm:$0xff]
        %v3186 = vmin.f32 %v3154, %v3026
        %v3187 = vmin.f32 %v3155, %v3030
        %v3188 = vmin.f32 %v3156, %v3034
        %v3189 = vmin.f32 %v3157, %v3038
        %v3190 = vmin.f32 %v3158, %v3042
        %v3191 = vmin.f32 %v3159, %v3046
        %v3192 = vmin.f32 %v3160, %v3050
        %v3193 = vmin.f32 %v3161, %v3054
        %v3194 = vmin.f32 %v3162, %v3058
        %v3195 = vmin.f32 %v3163, %v3062
        %v3196 = vmin.f32 %v3164, %v3066
        %v3197 = vmin.f32 %v3165, %v3070
        %v3198 = vmin.f32 %v3166, %v3074
        %v3199 = vmin.f32 %v3167, %v3078
        %v3200 = vmin.f32 %v3168, %v3082
        %v3201 = vmin.f32 %v3169, %v3086
        %v3202 = vmin.f32 %v3170, %v3090
        %v3203 = vmin.f32 %v3171, %v3094
        %v3204 = vmin.f32 %v3172, %v3098
        %v3205 = vmin.f32 %v3173, %v3102
        %v3206 = vmin.f32 %v3174, %v3106
        %v3207 = vmin.f32 %v3175, %v3110
        %v3208 = vmin.f32 %v3176, %v3114
        %v3209 = vmin.f32 %v3177, %v3118
        %v3210 = vmin.f32 %v3178, %v3122
        %v3211 = vmin.f32 %v3179, %v3126
        %v3212 = vmin.f32 %v3180, %v3130
        %v3213 = vmin.f32 %v3181, %v3134
        %v3214 = vmin.f32 %v3182, %v3138
        %v3215 = vmin.f32 %v3183, %v3142
        %v3216 = vmin.f32 %v3184, %v3146
        %v3217 = vmin.f32 %v3185, %v3150
        %v3218 = vmin.f32 %v3186, %v3027
        %v3219 = vmin.f32 %v3187, %v3031
        %v3220 = vmin.f32 %v3188, %v3035
        %v3221 = vmin.f32 %v3189, %v3039
        %v3222 = vmin.f32 %v3190, %v3043
        %v3223 = vmin.f32 %v3191, %v3047
        %v3224 = vmin.f32 %v3192, %v3051
        %v3225 = vmin.f32 %v3193, %v3055
        %v3226 = vmin.f32 %v3194, %v3059
        %v3227 = vmin.f32 %v3195, %v3063
        %v3228 = vmin.f32 %v3196, %v3067
        %v3229 = vmin.f32 %v3197, %v3071
        %v3230 = vmin.f32 %v3198, %v3075
        %v3231 = vmin.f32 %v3199, %v3079
        %v3232 = vmin.f32 %v3200, %v3083
        %v3233 = vmin.f32 %v3201, %v3087
        %v3234 = vmin.f32 %v3202, %v3091
        %v3235 = vmin.f32 %v3203, %v3095
        %v3236 = vmin.f32 %v3204, %v3099
        %v3237 = vmin.f32 %v3205, %v3103
        %v3238 = vmin.f32 %v3206, %v3107
        %v3239 = vmin.f32 %v3207, %v3111
        %v3240 = vmin.f32 %v3208, %v3115
        %v3241 = vmin.f32 %v3209, %v3119
        %v3242 = vmin.f32 %v3210, %v3123
        %v3243 = vmin.f32 %v3211, %v3127
        %v3244 = vmin.f32 %v3212, %v3131
        %v3245 = vmin.f32 %v3213, %v3135
        %v3246 = vmin.f32 %v3214, %v3139
        %v3247 = vmin.f32 %v3215, %v3143
        %v3248 = vmin.f32 %v3216, %v3147
        %v3249 = vmin.f32 %v3217, %v3151
        %v3250 = vmin.f32 %v3218, %v3028
        %v3251 = vmin.f32 %v3219, %v3032
        %v3252 = vmin.f32 %v3220, %v3036
        %v3253 = vmin.f32 %v3221, %v3040
        %v3254 = vmin.f32 %v3222, %v3044
        %v3255 = vmin.f32 %v3223, %v3048
        %v3256 = vmin.f32 %v3224, %v3052
        %v3257 = vmin.f32 %v3225, %v3056
        %v3258 = vmin.f32 %v3226, %v3060
        %v3259 = vmin.f32 %v3227, %v3064
        %v3260 = vmin.f32 %v3228, %v3068
        %v3261 = vmin.f32 %v3229, %v3072
        %v3262 = vmin.f32 %v3230, %v3076
        %v3263 = vmin.f32 %v3231, %v3080
        %v3264 = vmin.f32 %v3232, %v3084
        %v3265 = vmin.f32 %v3233, %v3088
        %v3266 = vmin.f32 %v3234, %v3092
        %v3267 = vmin.f32 %v3235, %v3096
        %v3268 = vmin.f32 %v3236, %v3100
        %v3269 = vmin.f32 %v3237, %v3104
        %v3270 = vmin.f32 %v3238, %v3108
        %v3271 = vmin.f32 %v3239, %v3112
        %v3272 = vmin.f32 %v3240, %v3116
        %v3273 = vmin.f32 %v3241, %v3120
        %v3274 = vmin.f32 %v3242, %v3124
        %v3275 = vmin.f32 %v3243, %v3128
        %v3276 = vmin.f32 %v3244, %v3132
        %v3277 = vmin.f32 %v3245, %v3136
        %v3278 = vmin.f32 %v3246, %v3140
        %v3279 = vmin.f32 %v3247, %v3144
        %v3280 = vmin.f32 %v3248, %v3148
        %v3281 = vmin.f32 %v3249, %v3152
        %v3282 = vmin.f32 %v3250, %v3029
        %v3283 = vmin.f32 %v3251, %v3033
        %v3284 = vmin.f32 %v3252, %v3037
        %v3285 = vmin.f32 %v3253, %v3041
        %v3286 = vmin.f32 %v3254, %v3045
        %v3287 = vmin.f32 %v3255, %v3049
        %v3288 = vmin.f32 %v3256, %v3053
        %v3289 = vmin.f32 %v3257, %v3057
        %v3290 = vmin.f32 %v3258, %v3061
        %v3291 = vmin.f32 %v3259, %v3065
        %v3292 = vmin.f32 %v3260, %v3069
        %v3293 = vmin.f32 %v3261, %v3073
        %v3294 = vmin.f32 %v3262, %v3077
        %v3295 = vmin.f32 %v3263, %v3081
        %v3296 = vmin.f32 %v3264, %v3085
        %v3297 = vmin.f32 %v3265, %v3089
        %v3298 = vmin.f32 %v3266, %v3093
        %v3299 = vmin.f32 %v3267, %v3097
        %v3300 = vmin.f32 %v3268, %v3101
        %v3301 = vmin.f32 %v3269, %v3105
        %v3302 = vmin.f32 %v3270, %v3109
        %v3303 = vmin.f32 %v3271, %v3113
        %v3304 = vmin.f32 %v3272, %v3117
        %v3305 = vmin.f32 %v3273, %v3121
        %v3306 = vmin.f32 %v3274, %v3125
        %v3307 = vmin.f32 %v3275, %v3129
        %v3308 = vmin.f32 %v3276, %v3133
        %v3309 = vmin.f32 %v3277, %v3137
        %v3310 = vmin.f32 %v3278, %v3141
        %v3311 = vmin.f32 %v3279, %v3145
        %v3312 = vmin.f32 %v3280, %v3149
        %v3313 = vmin.f32 %v3281, %v3153
        %3314 = vst [vmem:[#allocation4] sm:$0xff] %v3282
        %3315 = vst [vmem:[#allocation4 + $0x8] sm:$0xff] %v3283
        %3316 = vst [vmem:[#allocation4 + $0x10] sm:$0xff] %v3284
        %3317 = vst [vmem:[#allocation4 + $0x18] sm:$0xff] %v3285
        %3318 = vst [vmem:[#allocation4 + $0x20] sm:$0xff] %v3286
        %3319 = vst [vmem:[#allocation4 + $0x28] sm:$0xff] %v3287
        %3320 = vst [vmem:[#allocation4 + $0x30] sm:$0xff] %v3288
        %3321 = vst [vmem:[#allocation4 + $0x38] sm:$0xff] %v3289
        %3322 = vst [vmem:[#allocation4 + $0x40] sm:$0xff] %v3290
        %3323 = vst [vmem:[#allocation4 + $0x48] sm:$0xff] %v3291
        %3324 = vst [vmem:[#allocation4 + $0x50] sm:$0xff] %v3292
        %3325 = vst [vmem:[#allocation4 + $0x58] sm:$0xff] %v3293
        %3326 = vst [vmem:[#allocation4 + $0x60] sm:$0xff] %v3294
        %3327 = vst [vmem:[#allocation4 + $0x68] sm:$0xff] %v3295
        %3328 = vst [vmem:[#allocation4 + $0x70] sm:$0xff] %v3296
        %3329 = vst [vmem:[#allocation4 + $0x78] sm:$0xff] %v3297
        %3330 = vst [vmem:[#allocation4 + $0x80] sm:$0xff] %v3298
        %3331 = vst [vmem:[#allocation4 + $0x88] sm:$0xff] %v3299
        %3332 = vst [vmem:[#allocation4 + $0x90] sm:$0xff] %v3300
        %3333 = vst [vmem:[#allocation4 + $0x98] sm:$0xff] %v3301
        %3334 = vst [vmem:[#allocation4 + $0xa0] sm:$0xff] %v3302
        %3335 = vst [vmem:[#allocation4 + $0xa8] sm:$0xff] %v3303
        %3336 = vst [vmem:[#allocation4 + $0xb0] sm:$0xff] %v3304
        %3337 = vst [vmem:[#allocation4 + $0xb8] sm:$0xff] %v3305
        %3338 = vst [vmem:[#allocation4 + $0xc0] sm:$0xff] %v3306
        %3339 = vst [vmem:[#allocation4 + $0xc8] sm:$0xff] %v3307
        %3340 = vst [vmem:[#allocation4 + $0xd0] sm:$0xff] %v3308
        %3341 = vst [vmem:[#allocation4 + $0xd8] sm:$0xff] %v3309
        %3342 = vst [vmem:[#allocation4 + $0xe0] sm:$0xff] %v3310
        %3343 = vst [vmem:[#allocation4 + $0xe8] sm:$0xff] %v3311
        %3344 = vst [vmem:[#allocation4 + $0xf0] sm:$0xff] %v3312
        %3345 = vst [vmem:[#allocation4 + $0xf8] sm:$0xff] %v3313
        %s3346 = smul.u32 %s34, 256
        %s3347 = sadd.s32 %s35, 1
        %s3348 = smul.u32 %s3347, 512
        %p3349 = scmp.lt.s32.totalorder %s3346, %s3348
        %s3350 = smul.u32 %s35, 512
        %s3351 = sadd.s32 %s34, 1
        %s3352 = smul.u32 %s3351, 256
        %p3353 = scmp.lt.s32.totalorder %s3350, %s3352
        %p3354 = pnand %p3349, %p3353
        %p3355 = pneg %p3354
        // Predicated region
        $region65: #{tpu_custom_call.1} parent=47 // pred_check
          _
        $region66: #{tpu_custom_call.1} parent=47 // pred_check_branch
          %3357 = sbr.rel (%p3354) target = $region68
        $region67: #{tpu_custom_call.1} parent=47 // pred_region
          %v3358 = vlaneseq
          %v3359 = vshrl.u32 %v3358, 7
          %v3360 = vadd.s32 %v3359, 8
          %v3361 = vadd.s32 %v3359, 16
          %v3362 = vadd.s32 %v3359, 24
          %v3363 = vadd.s32 %v3359, 32
          %v3364 = vadd.s32 %v3359, 40
          %v3365 = vadd.s32 %v3359, 48
          %v3366 = vadd.s32 %v3359, 56
          %v3367 = vadd.s32 %v3359, 64
          %v3368 = vadd.s32 %v3359, 72
          %v3369 = vadd.s32 %v3359, 80
          %v3370 = vadd.s32 %v3359, 88
          %v3371 = vadd.s32 %v3359, 96
          %v3372 = vadd.s32 %v3359, 104
          %v3373 = vadd.s32 %v3359, 112
          %v3374 = vadd.s32 %v3359, 120
          %v3375 = vadd.s32 %v3359, 128
          %v3376 = vadd.s32 %v3359, 136
          %v3377 = vadd.s32 %v3359, 144
          %v3378 = vadd.s32 %v3359, 152
          %v3379 = vadd.s32 %v3359, 160
          %v3380 = vadd.s32 %v3359, 168
          %v3381 = vadd.s32 %v3359, 176
          %v3382 = vadd.s32 %v3359, 184
          %v3383 = vadd.s32 %v3359, 192
          %v3384 = vadd.s32 %v3359, 200
          %v3385 = vadd.s32 %v3359, 208
          %v3386 = vadd.s32 %v3359, 216
          %v3387 = vadd.s32 %v3359, 224
          %v3388 = vadd.s32 %v3359, 232
          %v3389 = vadd.s32 %v3359, 240
          %v3390 = vadd.s32 %v3359, 248
          %v3391 = vstv %s3346
          %v3392 = vadd.s32 %v3391, %v3359
          %v3393 = vadd.s32 %v3391, %v3360
          %v3394 = vadd.s32 %v3391, %v3361
          %v3395 = vadd.s32 %v3391, %v3362
          %v3396 = vadd.s32 %v3391, %v3363
          %v3397 = vadd.s32 %v3391, %v3364
          %v3398 = vadd.s32 %v3391, %v3365
          %v3399 = vadd.s32 %v3391, %v3366
          %v3400 = vadd.s32 %v3391, %v3367
          %v3401 = vadd.s32 %v3391, %v3368
          %v3402 = vadd.s32 %v3391, %v3369
          %v3403 = vadd.s32 %v3391, %v3370
          %v3404 = vadd.s32 %v3391, %v3371
          %v3405 = vadd.s32 %v3391, %v3372
          %v3406 = vadd.s32 %v3391, %v3373
          %v3407 = vadd.s32 %v3391, %v3374
          %v3408 = vadd.s32 %v3391, %v3375
          %v3409 = vadd.s32 %v3391, %v3376
          %v3410 = vadd.s32 %v3391, %v3377
          %v3411 = vadd.s32 %v3391, %v3378
          %v3412 = vadd.s32 %v3391, %v3379
          %v3413 = vadd.s32 %v3391, %v3380
          %v3414 = vadd.s32 %v3391, %v3381
          %v3415 = vadd.s32 %v3391, %v3382
          %v3416 = vadd.s32 %v3391, %v3383
          %v3417 = vadd.s32 %v3391, %v3384
          %v3418 = vadd.s32 %v3391, %v3385
          %v3419 = vadd.s32 %v3391, %v3386
          %v3420 = vadd.s32 %v3391, %v3387
          %v3421 = vadd.s32 %v3391, %v3388
          %v3422 = vadd.s32 %v3391, %v3389
          %v3423 = vadd.s32 %v3391, %v3390
          %v3424 = vlaneseq
          %v3425 = vand.u32 %v3424, 127
          %v3426 = vadd.s32 %v3425, 128
          %v3427 = vadd.s32 %v3425, 256
          %v3428 = vadd.s32 %v3425, 384
          %v3429 = vstv %s3350
          %v3430 = vadd.s32 %v3429, %v3425
          %v3431 = vadd.s32 %v3429, %v3426
          %v3432 = vadd.s32 %v3429, %v3427
          %v3433 = vadd.s32 %v3429, %v3428
          %vm3434 = vcmp.ne.s32.totalorder %v3392, %v3430
          %vm3435 = vcmp.ne.s32.totalorder %v3392, %v3431
          %vm3436 = vcmp.ne.s32.totalorder %v3392, %v3432
          %vm3437 = vcmp.ne.s32.totalorder %v3392, %v3433
          %vm3438 = vcmp.ne.s32.totalorder %v3393, %v3430
          %vm3439 = vcmp.ne.s32.totalorder %v3393, %v3431
          %vm3440 = vcmp.ne.s32.totalorder %v3393, %v3432
          %vm3441 = vcmp.ne.s32.totalorder %v3393, %v3433
          %vm3442 = vcmp.ne.s32.totalorder %v3394, %v3430
          %vm3443 = vcmp.ne.s32.totalorder %v3394, %v3431
          %vm3444 = vcmp.ne.s32.totalorder %v3394, %v3432
          %vm3445 = vcmp.ne.s32.totalorder %v3394, %v3433
          %vm3446 = vcmp.ne.s32.totalorder %v3395, %v3430
          %vm3447 = vcmp.ne.s32.totalorder %v3395, %v3431
          %vm3448 = vcmp.ne.s32.totalorder %v3395, %v3432
          %vm3449 = vcmp.ne.s32.totalorder %v3395, %v3433
          %vm3450 = vcmp.ne.s32.totalorder %v3396, %v3430
          %vm3451 = vcmp.ne.s32.totalorder %v3396, %v3431
          %vm3452 = vcmp.ne.s32.totalorder %v3396, %v3432
          %vm3453 = vcmp.ne.s32.totalorder %v3396, %v3433
          %vm3454 = vcmp.ne.s32.totalorder %v3397, %v3430
          %vm3455 = vcmp.ne.s32.totalorder %v3397, %v3431
          %vm3456 = vcmp.ne.s32.totalorder %v3397, %v3432
          %vm3457 = vcmp.ne.s32.totalorder %v3397, %v3433
          %vm3458 = vcmp.ne.s32.totalorder %v3398, %v3430
          %vm3459 = vcmp.ne.s32.totalorder %v3398, %v3431
          %vm3460 = vcmp.ne.s32.totalorder %v3398, %v3432
          %vm3461 = vcmp.ne.s32.totalorder %v3398, %v3433
          %vm3462 = vcmp.ne.s32.totalorder %v3399, %v3430
          %vm3463 = vcmp.ne.s32.totalorder %v3399, %v3431
          %vm3464 = vcmp.ne.s32.totalorder %v3399, %v3432
          %vm3465 = vcmp.ne.s32.totalorder %v3399, %v3433
          %vm3466 = vcmp.ne.s32.totalorder %v3400, %v3430
          %vm3467 = vcmp.ne.s32.totalorder %v3400, %v3431
          %vm3468 = vcmp.ne.s32.totalorder %v3400, %v3432
          %vm3469 = vcmp.ne.s32.totalorder %v3400, %v3433
          %vm3470 = vcmp.ne.s32.totalorder %v3401, %v3430
          %vm3471 = vcmp.ne.s32.totalorder %v3401, %v3431
          %vm3472 = vcmp.ne.s32.totalorder %v3401, %v3432
          %vm3473 = vcmp.ne.s32.totalorder %v3401, %v3433
          %vm3474 = vcmp.ne.s32.totalorder %v3402, %v3430
          %vm3475 = vcmp.ne.s32.totalorder %v3402, %v3431
          %vm3476 = vcmp.ne.s32.totalorder %v3402, %v3432
          %vm3477 = vcmp.ne.s32.totalorder %v3402, %v3433
          %vm3478 = vcmp.ne.s32.totalorder %v3403, %v3430
          %vm3479 = vcmp.ne.s32.totalorder %v3403, %v3431
          %vm3480 = vcmp.ne.s32.totalorder %v3403, %v3432
          %vm3481 = vcmp.ne.s32.totalorder %v3403, %v3433
          %vm3482 = vcmp.ne.s32.totalorder %v3404, %v3430
          %vm3483 = vcmp.ne.s32.totalorder %v3404, %v3431
          %vm3484 = vcmp.ne.s32.totalorder %v3404, %v3432
          %vm3485 = vcmp.ne.s32.totalorder %v3404, %v3433
          %vm3486 = vcmp.ne.s32.totalorder %v3405, %v3430
          %vm3487 = vcmp.ne.s32.totalorder %v3405, %v3431
          %vm3488 = vcmp.ne.s32.totalorder %v3405, %v3432
          %vm3489 = vcmp.ne.s32.totalorder %v3405, %v3433
          %vm3490 = vcmp.ne.s32.totalorder %v3406, %v3430
          %vm3491 = vcmp.ne.s32.totalorder %v3406, %v3431
          %vm3492 = vcmp.ne.s32.totalorder %v3406, %v3432
          %vm3493 = vcmp.ne.s32.totalorder %v3406, %v3433
          %vm3494 = vcmp.ne.s32.totalorder %v3407, %v3430
          %vm3495 = vcmp.ne.s32.totalorder %v3407, %v3431
          %vm3496 = vcmp.ne.s32.totalorder %v3407, %v3432
          %vm3497 = vcmp.ne.s32.totalorder %v3407, %v3433
          %vm3498 = vcmp.ne.s32.totalorder %v3408, %v3430
          %vm3499 = vcmp.ne.s32.totalorder %v3408, %v3431
          %vm3500 = vcmp.ne.s32.totalorder %v3408, %v3432
          %vm3501 = vcmp.ne.s32.totalorder %v3408, %v3433
          %vm3502 = vcmp.ne.s32.totalorder %v3409, %v3430
          %vm3503 = vcmp.ne.s32.totalorder %v3409, %v3431
          %vm3504 = vcmp.ne.s32.totalorder %v3409, %v3432
          %vm3505 = vcmp.ne.s32.totalorder %v3409, %v3433
          %vm3506 = vcmp.ne.s32.totalorder %v3410, %v3430
          %vm3507 = vcmp.ne.s32.totalorder %v3410, %v3431
          %vm3508 = vcmp.ne.s32.totalorder %v3410, %v3432
          %vm3509 = vcmp.ne.s32.totalorder %v3410, %v3433
          %vm3510 = vcmp.ne.s32.totalorder %v3411, %v3430
          %vm3511 = vcmp.ne.s32.totalorder %v3411, %v3431
          %vm3512 = vcmp.ne.s32.totalorder %v3411, %v3432
          %vm3513 = vcmp.ne.s32.totalorder %v3411, %v3433
          %vm3514 = vcmp.ne.s32.totalorder %v3412, %v3430
          %vm3515 = vcmp.ne.s32.totalorder %v3412, %v3431
          %vm3516 = vcmp.ne.s32.totalorder %v3412, %v3432
          %vm3517 = vcmp.ne.s32.totalorder %v3412, %v3433
          %vm3518 = vcmp.ne.s32.totalorder %v3413, %v3430
          %vm3519 = vcmp.ne.s32.totalorder %v3413, %v3431
          %vm3520 = vcmp.ne.s32.totalorder %v3413, %v3432
          %vm3521 = vcmp.ne.s32.totalorder %v3413, %v3433
          %vm3522 = vcmp.ne.s32.totalorder %v3414, %v3430
          %vm3523 = vcmp.ne.s32.totalorder %v3414, %v3431
          %vm3524 = vcmp.ne.s32.totalorder %v3414, %v3432
          %vm3525 = vcmp.ne.s32.totalorder %v3414, %v3433
          %vm3526 = vcmp.ne.s32.totalorder %v3415, %v3430
          %vm3527 = vcmp.ne.s32.totalorder %v3415, %v3431
          %vm3528 = vcmp.ne.s32.totalorder %v3415, %v3432
          %vm3529 = vcmp.ne.s32.totalorder %v3415, %v3433
          %vm3530 = vcmp.ne.s32.totalorder %v3416, %v3430
          %vm3531 = vcmp.ne.s32.totalorder %v3416, %v3431
          %vm3532 = vcmp.ne.s32.totalorder %v3416, %v3432
          %vm3533 = vcmp.ne.s32.totalorder %v3416, %v3433
          %vm3534 = vcmp.ne.s32.totalorder %v3417, %v3430
          %vm3535 = vcmp.ne.s32.totalorder %v3417, %v3431
          %vm3536 = vcmp.ne.s32.totalorder %v3417, %v3432
          %vm3537 = vcmp.ne.s32.totalorder %v3417, %v3433
          %vm3538 = vcmp.ne.s32.totalorder %v3418, %v3430
          %vm3539 = vcmp.ne.s32.totalorder %v3418, %v3431
          %vm3540 = vcmp.ne.s32.totalorder %v3418, %v3432
          %vm3541 = vcmp.ne.s32.totalorder %v3418, %v3433
          %vm3542 = vcmp.ne.s32.totalorder %v3419, %v3430
          %vm3543 = vcmp.ne.s32.totalorder %v3419, %v3431
          %vm3544 = vcmp.ne.s32.totalorder %v3419, %v3432
          %vm3545 = vcmp.ne.s32.totalorder %v3419, %v3433
          %vm3546 = vcmp.ne.s32.totalorder %v3420, %v3430
          %vm3547 = vcmp.ne.s32.totalorder %v3420, %v3431
          %vm3548 = vcmp.ne.s32.totalorder %v3420, %v3432
          %vm3549 = vcmp.ne.s32.totalorder %v3420, %v3433
          %vm3550 = vcmp.ne.s32.totalorder %v3421, %v3430
          %vm3551 = vcmp.ne.s32.totalorder %v3421, %v3431
          %vm3552 = vcmp.ne.s32.totalorder %v3421, %v3432
          %vm3553 = vcmp.ne.s32.totalorder %v3421, %v3433
          %vm3554 = vcmp.ne.s32.totalorder %v3422, %v3430
          %vm3555 = vcmp.ne.s32.totalorder %v3422, %v3431
          %vm3556 = vcmp.ne.s32.totalorder %v3422, %v3432
          %vm3557 = vcmp.ne.s32.totalorder %v3422, %v3433
          %vm3558 = vcmp.ne.s32.totalorder %v3423, %v3430
          %vm3559 = vcmp.ne.s32.totalorder %v3423, %v3431
          %vm3560 = vcmp.ne.s32.totalorder %v3423, %v3432
          %vm3561 = vcmp.ne.s32.totalorder %v3423, %v3433
          %vm3562 = vmand %vm2898, %vm3434
          %vm3563 = vmand %vm2899, %vm3435
          %vm3564 = vmand %vm2900, %vm3436
          %vm3565 = vmand %vm2901, %vm3437
          %vm3566 = vmand %vm2902, %vm3438
          %vm3567 = vmand %vm2903, %vm3439
          %vm3568 = vmand %vm2904, %vm3440
          %vm3569 = vmand %vm2905, %vm3441
          %vm3570 = vmand %vm2906, %vm3442
          %vm3571 = vmand %vm2907, %vm3443
          %vm3572 = vmand %vm2908, %vm3444
          %vm3573 = vmand %vm2909, %vm3445
          %vm3574 = vmand %vm2910, %vm3446
          %vm3575 = vmand %vm2911, %vm3447
          %vm3576 = vmand %vm2912, %vm3448
          %vm3577 = vmand %vm2913, %vm3449
          %vm3578 = vmand %vm2914, %vm3450
          %vm3579 = vmand %vm2915, %vm3451
          %vm3580 = vmand %vm2916, %vm3452
          %vm3581 = vmand %vm2917, %vm3453
          %vm3582 = vmand %vm2918, %vm3454
          %vm3583 = vmand %vm2919, %vm3455
          %vm3584 = vmand %vm2920, %vm3456
          %vm3585 = vmand %vm2921, %vm3457
          %vm3586 = vmand %vm2922, %vm3458
          %vm3587 = vmand %vm2923, %vm3459
          %vm3588 = vmand %vm2924, %vm3460
          %vm3589 = vmand %vm2925, %vm3461
          %vm3590 = vmand %vm2926, %vm3462
          %vm3591 = vmand %vm2927, %vm3463
          %vm3592 = vmand %vm2928, %vm3464
          %vm3593 = vmand %vm2929, %vm3465
          %vm3594 = vmand %vm2930, %vm3466
          %vm3595 = vmand %vm2931, %vm3467
          %vm3596 = vmand %vm2932, %vm3468
          %vm3597 = vmand %vm2933, %vm3469
          %vm3598 = vmand %vm2934, %vm3470
          %vm3599 = vmand %vm2935, %vm3471
          %vm3600 = vmand %vm2936, %vm3472
          %vm3601 = vmand %vm2937, %vm3473
          %vm3602 = vmand %vm2938, %vm3474
          %vm3603 = vmand %vm2939, %vm3475
          %vm3604 = vmand %vm2940, %vm3476
          %vm3605 = vmand %vm2941, %vm3477
          %vm3606 = vmand %vm2942, %vm3478
          %vm3607 = vmand %vm2943, %vm3479
          %vm3608 = vmand %vm2944, %vm3480
          %vm3609 = vmand %vm2945, %vm3481
          %vm3610 = vmand %vm2946, %vm3482
          %vm3611 = vmand %vm2947, %vm3483
          %vm3612 = vmand %vm2948, %vm3484
          %vm3613 = vmand %vm2949, %vm3485
          %vm3614 = vmand %vm2950, %vm3486
          %vm3615 = vmand %vm2951, %vm3487
          %vm3616 = vmand %vm2952, %vm3488
          %vm3617 = vmand %vm2953, %vm3489
          %vm3618 = vmand %vm2954, %vm3490
          %vm3619 = vmand %vm2955, %vm3491
          %vm3620 = vmand %vm2956, %vm3492
          %vm3621 = vmand %vm2957, %vm3493
          %vm3622 = vmand %vm2958, %vm3494
          %vm3623 = vmand %vm2959, %vm3495
          %vm3624 = vmand %vm2960, %vm3496
          %vm3625 = vmand %vm2961, %vm3497
          %vm3626 = vmand %vm2962, %vm3498
          %vm3627 = vmand %vm2963, %vm3499
          %vm3628 = vmand %vm2964, %vm3500
          %vm3629 = vmand %vm2965, %vm3501
          %vm3630 = vmand %vm2966, %vm3502
          %vm3631 = vmand %vm2967, %vm3503
          %vm3632 = vmand %vm2968, %vm3504
          %vm3633 = vmand %vm2969, %vm3505
          %vm3634 = vmand %vm2970, %vm3506
          %vm3635 = vmand %vm2971, %vm3507
          %vm3636 = vmand %vm2972, %vm3508
          %vm3637 = vmand %vm2973, %vm3509
          %vm3638 = vmand %vm2974, %vm3510
          %vm3639 = vmand %vm2975, %vm3511
          %vm3640 = vmand %vm2976, %vm3512
          %vm3641 = vmand %vm2977, %vm3513
          %vm3642 = vmand %vm2978, %vm3514
          %vm3643 = vmand %vm2979, %vm3515
          %vm3644 = vmand %vm2980, %vm3516
          %vm3645 = vmand %vm2981, %vm3517
          %vm3646 = vmand %vm2982, %vm3518
          %vm3647 = vmand %vm2983, %vm3519
          %vm3648 = vmand %vm2984, %vm3520
          %vm3649 = vmand %vm2985, %vm3521
          %vm3650 = vmand %vm2986, %vm3522
          %vm3651 = vmand %vm2987, %vm3523
          %vm3652 = vmand %vm2988, %vm3524
          %vm3653 = vmand %vm2989, %vm3525
          %vm3654 = vmand %vm2990, %vm3526
          %vm3655 = vmand %vm2991, %vm3527
          %vm3656 = vmand %vm2992, %vm3528
          %vm3657 = vmand %vm2993, %vm3529
          %vm3658 = vmand %vm2994, %vm3530
          %vm3659 = vmand %vm2995, %vm3531
          %vm3660 = vmand %vm2996, %vm3532
          %vm3661 = vmand %vm2997, %vm3533
          %vm3662 = vmand %vm2998, %vm3534
          %vm3663 = vmand %vm2999, %vm3535
          %vm3664 = vmand %vm3000, %vm3536
          %vm3665 = vmand %vm3001, %vm3537
          %vm3666 = vmand %vm3002, %vm3538
          %vm3667 = vmand %vm3003, %vm3539
          %vm3668 = vmand %vm3004, %vm3540
          %vm3669 = vmand %vm3005, %vm3541
          %vm3670 = vmand %vm3006, %vm3542
          %vm3671 = vmand %vm3007, %vm3543
          %vm3672 = vmand %vm3008, %vm3544
          %vm3673 = vmand %vm3009, %vm3545
          %vm3674 = vmand %vm3010, %vm3546
          %vm3675 = vmand %vm3011, %vm3547
          %vm3676 = vmand %vm3012, %vm3548
          %vm3677 = vmand %vm3013, %vm3549
          %vm3678 = vmand %vm3014, %vm3550
          %vm3679 = vmand %vm3015, %vm3551
          %vm3680 = vmand %vm3016, %vm3552
          %vm3681 = vmand %vm3017, %vm3553
          %vm3682 = vmand %vm3018, %vm3554
          %vm3683 = vmand %vm3019, %vm3555
          %vm3684 = vmand %vm3020, %vm3556
          %vm3685 = vmand %vm3021, %vm3557
          %vm3686 = vmand %vm3022, %vm3558
          %vm3687 = vmand %vm3023, %vm3559
          %vm3688 = vmand %vm3024, %vm3560
          %vm3689 = vmand %vm3025, %vm3561
          %v3690 = vsel %vm3562, %v2556, 0.0
          %v3691 = vsel %vm3563, %v2557, 0.0
          %v3692 = vsel %vm3564, %v2558, 0.0
          %v3693 = vsel %vm3565, %v2559, 0.0
          %v3694 = vsel %vm3566, %v2560, 0.0
          %v3695 = vsel %vm3567, %v2561, 0.0
          %v3696 = vsel %vm3568, %v2562, 0.0
          %v3697 = vsel %vm3569, %v2563, 0.0
          %v3698 = vsel %vm3570, %v2564, 0.0
          %v3699 = vsel %vm3571, %v2565, 0.0
          %v3700 = vsel %vm3572, %v2566, 0.0
          %v3701 = vsel %vm3573, %v2567, 0.0
          %v3702 = vsel %vm3574, %v2568, 0.0
          %v3703 = vsel %vm3575, %v2569, 0.0
          %v3704 = vsel %vm3576, %v2570, 0.0
          %v3705 = vsel %vm3577, %v2571, 0.0
          %v3706 = vsel %vm3578, %v2572, 0.0
          %v3707 = vsel %vm3579, %v2573, 0.0
          %v3708 = vsel %vm3580, %v2574, 0.0
          %v3709 = vsel %vm3581, %v2575, 0.0
          %v3710 = vsel %vm3582, %v2576, 0.0
          %v3711 = vsel %vm3583, %v2577, 0.0
          %v3712 = vsel %vm3584, %v2578, 0.0
          %v3713 = vsel %vm3585, %v2579, 0.0
          %v3714 = vsel %vm3586, %v2580, 0.0
          %v3715 = vsel %vm3587, %v2581, 0.0
          %v3716 = vsel %vm3588, %v2582, 0.0
          %v3717 = vsel %vm3589, %v2583, 0.0
          %v3718 = vsel %vm3590, %v2584, 0.0
          %v3719 = vsel %vm3591, %v2585, 0.0
          %v3720 = vsel %vm3592, %v2586, 0.0
          %v3721 = vsel %vm3593, %v2587, 0.0
          %v3722 = vsel %vm3594, %v2588, 0.0
          %v3723 = vsel %vm3595, %v2589, 0.0
          %v3724 = vsel %vm3596, %v2590, 0.0
          %v3725 = vsel %vm3597, %v2591, 0.0
          %v3726 = vsel %vm3598, %v2592, 0.0
          %v3727 = vsel %vm3599, %v2593, 0.0
          %v3728 = vsel %vm3600, %v2594, 0.0
          %v3729 = vsel %vm3601, %v2595, 0.0
          %v3730 = vsel %vm3602, %v2596, 0.0
          %v3731 = vsel %vm3603, %v2597, 0.0
          %v3732 = vsel %vm3604, %v2598, 0.0
          %v3733 = vsel %vm3605, %v2599, 0.0
          %v3734 = vsel %vm3606, %v2600, 0.0
          %v3735 = vsel %vm3607, %v2601, 0.0
          %v3736 = vsel %vm3608, %v2602, 0.0
          %v3737 = vsel %vm3609, %v2603, 0.0
          %v3738 = vsel %vm3610, %v2604, 0.0
          %v3739 = vsel %vm3611, %v2605, 0.0
          %v3740 = vsel %vm3612, %v2606, 0.0
          %v3741 = vsel %vm3613, %v2607, 0.0
          %v3742 = vsel %vm3614, %v2608, 0.0
          %v3743 = vsel %vm3615, %v2609, 0.0
          %v3744 = vsel %vm3616, %v2610, 0.0
          %v3745 = vsel %vm3617, %v2611, 0.0
          %v3746 = vsel %vm3618, %v2612, 0.0
          %v3747 = vsel %vm3619, %v2613, 0.0
          %v3748 = vsel %vm3620, %v2614, 0.0
          %v3749 = vsel %vm3621, %v2615, 0.0
          %v3750 = vsel %vm3622, %v2616, 0.0
          %v3751 = vsel %vm3623, %v2617, 0.0
          %v3752 = vsel %vm3624, %v2618, 0.0
          %v3753 = vsel %vm3625, %v2619, 0.0
          %v3754 = vsel %vm3626, %v2620, 0.0
          %v3755 = vsel %vm3627, %v2621, 0.0
          %v3756 = vsel %vm3628, %v2622, 0.0
          %v3757 = vsel %vm3629, %v2623, 0.0
          %v3758 = vsel %vm3630, %v2624, 0.0
          %v3759 = vsel %vm3631, %v2625, 0.0
          %v3760 = vsel %vm3632, %v2626, 0.0
          %v3761 = vsel %vm3633, %v2627, 0.0
          %v3762 = vsel %vm3634, %v2628, 0.0
          %v3763 = vsel %vm3635, %v2629, 0.0
          %v3764 = vsel %vm3636, %v2630, 0.0
          %v3765 = vsel %vm3637, %v2631, 0.0
          %v3766 = vsel %vm3638, %v2632, 0.0
          %v3767 = vsel %vm3639, %v2633, 0.0
          %v3768 = vsel %vm3640, %v2634, 0.0
          %v3769 = vsel %vm3641, %v2635, 0.0
          %v3770 = vsel %vm3642, %v2636, 0.0
          %v3771 = vsel %vm3643, %v2637, 0.0
          %v3772 = vsel %vm3644, %v2638, 0.0
          %v3773 = vsel %vm3645, %v2639, 0.0
          %v3774 = vsel %vm3646, %v2640, 0.0
          %v3775 = vsel %vm3647, %v2641, 0.0
          %v3776 = vsel %vm3648, %v2642, 0.0
          %v3777 = vsel %vm3649, %v2643, 0.0
          %v3778 = vsel %vm3650, %v2644, 0.0
          %v3779 = vsel %vm3651, %v2645, 0.0
          %v3780 = vsel %vm3652, %v2646, 0.0
          %v3781 = vsel %vm3653, %v2647, 0.0
          %v3782 = vsel %vm3654, %v2648, 0.0
          %v3783 = vsel %vm3655, %v2649, 0.0
          %v3784 = vsel %vm3656, %v2650, 0.0
          %v3785 = vsel %vm3657, %v2651, 0.0
          %v3786 = vsel %vm3658, %v2652, 0.0
          %v3787 = vsel %vm3659, %v2653, 0.0
          %v3788 = vsel %vm3660, %v2654, 0.0
          %v3789 = vsel %vm3661, %v2655, 0.0
          %v3790 = vsel %vm3662, %v2656, 0.0
          %v3791 = vsel %vm3663, %v2657, 0.0
          %v3792 = vsel %vm3664, %v2658, 0.0
          %v3793 = vsel %vm3665, %v2659, 0.0
          %v3794 = vsel %vm3666, %v2660, 0.0
          %v3795 = vsel %vm3667, %v2661, 0.0
          %v3796 = vsel %vm3668, %v2662, 0.0
          %v3797 = vsel %vm3669, %v2663, 0.0
          %v3798 = vsel %vm3670, %v2664, 0.0
          %v3799 = vsel %vm3671, %v2665, 0.0
          %v3800 = vsel %vm3672, %v2666, 0.0
          %v3801 = vsel %vm3673, %v2667, 0.0
          %v3802 = vsel %vm3674, %v2668, 0.0
          %v3803 = vsel %vm3675, %v2669, 0.0
          %v3804 = vsel %vm3676, %v2670, 0.0
          %v3805 = vsel %vm3677, %v2671, 0.0
          %v3806 = vsel %vm3678, %v2672, 0.0
          %v3807 = vsel %vm3679, %v2673, 0.0
          %v3808 = vsel %vm3680, %v2674, 0.0
          %v3809 = vsel %vm3681, %v2675, 0.0
          %v3810 = vsel %vm3682, %v2676, 0.0
          %v3811 = vsel %vm3683, %v2677, 0.0
          %v3812 = vsel %vm3684, %v2678, 0.0
          %v3813 = vsel %vm3685, %v2679, 0.0
          %v3814 = vsel %vm3686, %v2680, 0.0
          %v3815 = vsel %vm3687, %v2681, 0.0
          %v3816 = vsel %vm3688, %v2682, 0.0
          %v3817 = vsel %vm3689, %v2683, 0.0
          %v3818 = vld [vmem:[#allocation3] sm:$0xff]
          %v3819 = vld [vmem:[#allocation3 + $0x8] sm:$0xff]
          %v3820 = vld [vmem:[#allocation3 + $0x10] sm:$0xff]
          %v3821 = vld [vmem:[#allocation3 + $0x18] sm:$0xff]
          %v3822 = vld [vmem:[#allocation3 + $0x20] sm:$0xff]
          %v3823 = vld [vmem:[#allocation3 + $0x28] sm:$0xff]
          %v3824 = vld [vmem:[#allocation3 + $0x30] sm:$0xff]
          %v3825 = vld [vmem:[#allocation3 + $0x38] sm:$0xff]
          %v3826 = vld [vmem:[#allocation3 + $0x40] sm:$0xff]
          %v3827 = vld [vmem:[#allocation3 + $0x48] sm:$0xff]
          %v3828 = vld [vmem:[#allocation3 + $0x50] sm:$0xff]
          %v3829 = vld [vmem:[#allocation3 + $0x58] sm:$0xff]
          %v3830 = vld [vmem:[#allocation3 + $0x60] sm:$0xff]
          %v3831 = vld [vmem:[#allocation3 + $0x68] sm:$0xff]
          %v3832 = vld [vmem:[#allocation3 + $0x70] sm:$0xff]
          %v3833 = vld [vmem:[#allocation3 + $0x78] sm:$0xff]
          %v3834 = vld [vmem:[#allocation3 + $0x80] sm:$0xff]
          %v3835 = vld [vmem:[#allocation3 + $0x88] sm:$0xff]
          %v3836 = vld [vmem:[#allocation3 + $0x90] sm:$0xff]
          %v3837 = vld [vmem:[#allocation3 + $0x98] sm:$0xff]
          %v3838 = vld [vmem:[#allocation3 + $0xa0] sm:$0xff]
          %v3839 = vld [vmem:[#allocation3 + $0xa8] sm:$0xff]
          %v3840 = vld [vmem:[#allocation3 + $0xb0] sm:$0xff]
          %v3841 = vld [vmem:[#allocation3 + $0xb8] sm:$0xff]
          %v3842 = vld [vmem:[#allocation3 + $0xc0] sm:$0xff]
          %v3843 = vld [vmem:[#allocation3 + $0xc8] sm:$0xff]
          %v3844 = vld [vmem:[#allocation3 + $0xd0] sm:$0xff]
          %v3845 = vld [vmem:[#allocation3 + $0xd8] sm:$0xff]
          %v3846 = vld [vmem:[#allocation3 + $0xe0] sm:$0xff]
          %v3847 = vld [vmem:[#allocation3 + $0xe8] sm:$0xff]
          %v3848 = vld [vmem:[#allocation3 + $0xf0] sm:$0xff]
          %v3849 = vld [vmem:[#allocation3 + $0xf8] sm:$0xff]
          %v3850 = vmax.f32 %v3818, %v3690
          %v3851 = vmax.f32 %v3819, %v3694
          %v3852 = vmax.f32 %v3820, %v3698
          %v3853 = vmax.f32 %v3821, %v3702
          %v3854 = vmax.f32 %v3822, %v3706
          %v3855 = vmax.f32 %v3823, %v3710
          %v3856 = vmax.f32 %v3824, %v3714
          %v3857 = vmax.f32 %v3825, %v3718
          %v3858 = vmax.f32 %v3826, %v3722
          %v3859 = vmax.f32 %v3827, %v3726
          %v3860 = vmax.f32 %v3828, %v3730
          %v3861 = vmax.f32 %v3829, %v3734
          %v3862 = vmax.f32 %v3830, %v3738
          %v3863 = vmax.f32 %v3831, %v3742
          %v3864 = vmax.f32 %v3832, %v3746
          %v3865 = vmax.f32 %v3833, %v3750
          %v3866 = vmax.f32 %v3834, %v3754
          %v3867 = vmax.f32 %v3835, %v3758
          %v3868 = vmax.f32 %v3836, %v3762
          %v3869 = vmax.f32 %v3837, %v3766
          %v3870 = vmax.f32 %v3838, %v3770
          %v3871 = vmax.f32 %v3839, %v3774
          %v3872 = vmax.f32 %v3840, %v3778
          %v3873 = vmax.f32 %v3841, %v3782
          %v3874 = vmax.f32 %v3842, %v3786
          %v3875 = vmax.f32 %v3843, %v3790
          %v3876 = vmax.f32 %v3844, %v3794
          %v3877 = vmax.f32 %v3845, %v3798
          %v3878 = vmax.f32 %v3846, %v3802
          %v3879 = vmax.f32 %v3847, %v3806
          %v3880 = vmax.f32 %v3848, %v3810
          %v3881 = vmax.f32 %v3849, %v3814
          %v3882 = vmax.f32 %v3850, %v3691
          %v3883 = vmax.f32 %v3851, %v3695
          %v3884 = vmax.f32 %v3852, %v3699
          %v3885 = vmax.f32 %v3853, %v3703
          %v3886 = vmax.f32 %v3854, %v3707
          %v3887 = vmax.f32 %v3855, %v3711
          %v3888 = vmax.f32 %v3856, %v3715
          %v3889 = vmax.f32 %v3857, %v3719
          %v3890 = vmax.f32 %v3858, %v3723
          %v3891 = vmax.f32 %v3859, %v3727
          %v3892 = vmax.f32 %v3860, %v3731
          %v3893 = vmax.f32 %v3861, %v3735
          %v3894 = vmax.f32 %v3862, %v3739
          %v3895 = vmax.f32 %v3863, %v3743
          %v3896 = vmax.f32 %v3864, %v3747
          %v3897 = vmax.f32 %v3865, %v3751
          %v3898 = vmax.f32 %v3866, %v3755
          %v3899 = vmax.f32 %v3867, %v3759
          %v3900 = vmax.f32 %v3868, %v3763
          %v3901 = vmax.f32 %v3869, %v3767
          %v3902 = vmax.f32 %v3870, %v3771
          %v3903 = vmax.f32 %v3871, %v3775
          %v3904 = vmax.f32 %v3872, %v3779
          %v3905 = vmax.f32 %v3873, %v3783
          %v3906 = vmax.f32 %v3874, %v3787
          %v3907 = vmax.f32 %v3875, %v3791
          %v3908 = vmax.f32 %v3876, %v3795
          %v3909 = vmax.f32 %v3877, %v3799
          %v3910 = vmax.f32 %v3878, %v3803
          %v3911 = vmax.f32 %v3879, %v3807
          %v3912 = vmax.f32 %v3880, %v3811
          %v3913 = vmax.f32 %v3881, %v3815
          %v3914 = vmax.f32 %v3882, %v3692
          %v3915 = vmax.f32 %v3883, %v3696
          %v3916 = vmax.f32 %v3884, %v3700
          %v3917 = vmax.f32 %v3885, %v3704
          %v3918 = vmax.f32 %v3886, %v3708
          %v3919 = vmax.f32 %v3887, %v3712
          %v3920 = vmax.f32 %v3888, %v3716
          %v3921 = vmax.f32 %v3889, %v3720
          %v3922 = vmax.f32 %v3890, %v3724
          %v3923 = vmax.f32 %v3891, %v3728
          %v3924 = vmax.f32 %v3892, %v3732
          %v3925 = vmax.f32 %v3893, %v3736
          %v3926 = vmax.f32 %v3894, %v3740
          %v3927 = vmax.f32 %v3895, %v3744
          %v3928 = vmax.f32 %v3896, %v3748
          %v3929 = vmax.f32 %v3897, %v3752
          %v3930 = vmax.f32 %v3898, %v3756
          %v3931 = vmax.f32 %v3899, %v3760
          %v3932 = vmax.f32 %v3900, %v3764
          %v3933 = vmax.f32 %v3901, %v3768
          %v3934 = vmax.f32 %v3902, %v3772
          %v3935 = vmax.f32 %v3903, %v3776
          %v3936 = vmax.f32 %v3904, %v3780
          %v3937 = vmax.f32 %v3905, %v3784
          %v3938 = vmax.f32 %v3906, %v3788
          %v3939 = vmax.f32 %v3907, %v3792
          %v3940 = vmax.f32 %v3908, %v3796
          %v3941 = vmax.f32 %v3909, %v3800
          %v3942 = vmax.f32 %v3910, %v3804
          %v3943 = vmax.f32 %v3911, %v3808
          %v3944 = vmax.f32 %v3912, %v3812
          %v3945 = vmax.f32 %v3913, %v3816
          %v3946 = vmax.f32 %v3914, %v3693
          %v3947 = vmax.f32 %v3915, %v3697
          %v3948 = vmax.f32 %v3916, %v3701
          %v3949 = vmax.f32 %v3917, %v3705
          %v3950 = vmax.f32 %v3918, %v3709
          %v3951 = vmax.f32 %v3919, %v3713
          %v3952 = vmax.f32 %v3920, %v3717
          %v3953 = vmax.f32 %v3921, %v3721
          %v3954 = vmax.f32 %v3922, %v3725
          %v3955 = vmax.f32 %v3923, %v3729
          %v3956 = vmax.f32 %v3924, %v3733
          %v3957 = vmax.f32 %v3925, %v3737
          %v3958 = vmax.f32 %v3926, %v3741
          %v3959 = vmax.f32 %v3927, %v3745
          %v3960 = vmax.f32 %v3928, %v3749
          %v3961 = vmax.f32 %v3929, %v3753
          %v3962 = vmax.f32 %v3930, %v3757
          %v3963 = vmax.f32 %v3931, %v3761
          %v3964 = vmax.f32 %v3932, %v3765
          %v3965 = vmax.f32 %v3933, %v3769
          %v3966 = vmax.f32 %v3934, %v3773
          %v3967 = vmax.f32 %v3935, %v3777
          %v3968 = vmax.f32 %v3936, %v3781
          %v3969 = vmax.f32 %v3937, %v3785
          %v3970 = vmax.f32 %v3938, %v3789
          %v3971 = vmax.f32 %v3939, %v3793
          %v3972 = vmax.f32 %v3940, %v3797
          %v3973 = vmax.f32 %v3941, %v3801
          %v3974 = vmax.f32 %v3942, %v3805
          %v3975 = vmax.f32 %v3943, %v3809
          %v3976 = vmax.f32 %v3944, %v3813
          %v3977 = vmax.f32 %v3945, %v3817
          %3978 = vst [vmem:[#allocation3] sm:$0xff] %v3946
          %3979 = vst [vmem:[#allocation3 + $0x8] sm:$0xff] %v3947
          %3980 = vst [vmem:[#allocation3 + $0x10] sm:$0xff] %v3948
          %3981 = vst [vmem:[#allocation3 + $0x18] sm:$0xff] %v3949
          %3982 = vst [vmem:[#allocation3 + $0x20] sm:$0xff] %v3950
          %3983 = vst [vmem:[#allocation3 + $0x28] sm:$0xff] %v3951
          %3984 = vst [vmem:[#allocation3 + $0x30] sm:$0xff] %v3952
          %3985 = vst [vmem:[#allocation3 + $0x38] sm:$0xff] %v3953
          %3986 = vst [vmem:[#allocation3 + $0x40] sm:$0xff] %v3954
          %3987 = vst [vmem:[#allocation3 + $0x48] sm:$0xff] %v3955
          %3988 = vst [vmem:[#allocation3 + $0x50] sm:$0xff] %v3956
          %3989 = vst [vmem:[#allocation3 + $0x58] sm:$0xff] %v3957
          %3990 = vst [vmem:[#allocation3 + $0x60] sm:$0xff] %v3958
          %3991 = vst [vmem:[#allocation3 + $0x68] sm:$0xff] %v3959
          %3992 = vst [vmem:[#allocation3 + $0x70] sm:$0xff] %v3960
          %3993 = vst [vmem:[#allocation3 + $0x78] sm:$0xff] %v3961
          %3994 = vst [vmem:[#allocation3 + $0x80] sm:$0xff] %v3962
          %3995 = vst [vmem:[#allocation3 + $0x88] sm:$0xff] %v3963
          %3996 = vst [vmem:[#allocation3 + $0x90] sm:$0xff] %v3964
          %3997 = vst [vmem:[#allocation3 + $0x98] sm:$0xff] %v3965
          %3998 = vst [vmem:[#allocation3 + $0xa0] sm:$0xff] %v3966
          %3999 = vst [vmem:[#allocation3 + $0xa8] sm:$0xff] %v3967
          %4000 = vst [vmem:[#allocation3 + $0xb0] sm:$0xff] %v3968
          %4001 = vst [vmem:[#allocation3 + $0xb8] sm:$0xff] %v3969
          %4002 = vst [vmem:[#allocation3 + $0xc0] sm:$0xff] %v3970
          %4003 = vst [vmem:[#allocation3 + $0xc8] sm:$0xff] %v3971
          %4004 = vst [vmem:[#allocation3 + $0xd0] sm:$0xff] %v3972
          %4005 = vst [vmem:[#allocation3 + $0xd8] sm:$0xff] %v3973
          %4006 = vst [vmem:[#allocation3 + $0xe0] sm:$0xff] %v3974
          %4007 = vst [vmem:[#allocation3 + $0xe8] sm:$0xff] %v3975
          %4008 = vst [vmem:[#allocation3 + $0xf0] sm:$0xff] %v3976
          %4009 = vst [vmem:[#allocation3 + $0xf8] sm:$0xff] %v3977
        $region68: #{tpu_custom_call.1} parent=47 // pred_fallthru
          _
        %p4010 = pneg %p3355
        // Predicated region
        $region69: #{tpu_custom_call.1} parent=47 // pred_check
          _
        $region70: #{tpu_custom_call.1} parent=47 // pred_check_branch
          %4012 = sbr.rel (%p3355) target = $region72
        $region71: #{tpu_custom_call.1} parent=47 // pred_region
          %v4013 = vsel %vm2898, %v2556, 0.0
          %v4014 = vsel %vm2899, %v2557, 0.0
          %v4015 = vsel %vm2900, %v2558, 0.0
          %v4016 = vsel %vm2901, %v2559, 0.0
          %v4017 = vsel %vm2902, %v2560, 0.0
          %v4018 = vsel %vm2903, %v2561, 0.0
          %v4019 = vsel %vm2904, %v2562, 0.0
          %v4020 = vsel %vm2905, %v2563, 0.0
          %v4021 = vsel %vm2906, %v2564, 0.0
          %v4022 = vsel %vm2907, %v2565, 0.0
          %v4023 = vsel %vm2908, %v2566, 0.0
          %v4024 = vsel %vm2909, %v2567, 0.0
          %v4025 = vsel %vm2910, %v2568, 0.0
          %v4026 = vsel %vm2911, %v2569, 0.0
          %v4027 = vsel %vm2912, %v2570, 0.0
          %v4028 = vsel %vm2913, %v2571, 0.0
          %v4029 = vsel %vm2914, %v2572, 0.0
          %v4030 = vsel %vm2915, %v2573, 0.0
          %v4031 = vsel %vm2916, %v2574, 0.0
          %v4032 = vsel %vm2917, %v2575, 0.0
          %v4033 = vsel %vm2918, %v2576, 0.0
          %v4034 = vsel %vm2919, %v2577, 0.0
          %v4035 = vsel %vm2920, %v2578, 0.0
          %v4036 = vsel %vm2921, %v2579, 0.0
          %v4037 = vsel %vm2922, %v2580, 0.0
          %v4038 = vsel %vm2923, %v2581, 0.0
          %v4039 = vsel %vm2924, %v2582, 0.0
          %v4040 = vsel %vm2925, %v2583, 0.0
          %v4041 = vsel %vm2926, %v2584, 0.0
          %v4042 = vsel %vm2927, %v2585, 0.0
          %v4043 = vsel %vm2928, %v2586, 0.0
          %v4044 = vsel %vm2929, %v2587, 0.0
          %v4045 = vsel %vm2930, %v2588, 0.0
          %v4046 = vsel %vm2931, %v2589, 0.0
          %v4047 = vsel %vm2932, %v2590, 0.0
          %v4048 = vsel %vm2933, %v2591, 0.0
          %v4049 = vsel %vm2934, %v2592, 0.0
          %v4050 = vsel %vm2935, %v2593, 0.0
          %v4051 = vsel %vm2936, %v2594, 0.0
          %v4052 = vsel %vm2937, %v2595, 0.0
          %v4053 = vsel %vm2938, %v2596, 0.0
          %v4054 = vsel %vm2939, %v2597, 0.0
          %v4055 = vsel %vm2940, %v2598, 0.0
          %v4056 = vsel %vm2941, %v2599, 0.0
          %v4057 = vsel %vm2942, %v2600, 0.0
          %v4058 = vsel %vm2943, %v2601, 0.0
          %v4059 = vsel %vm2944, %v2602, 0.0
          %v4060 = vsel %vm2945, %v2603, 0.0
          %v4061 = vsel %vm2946, %v2604, 0.0
          %v4062 = vsel %vm2947, %v2605, 0.0
          %v4063 = vsel %vm2948, %v2606, 0.0
          %v4064 = vsel %vm2949, %v2607, 0.0
          %v4065 = vsel %vm2950, %v2608, 0.0
          %v4066 = vsel %vm2951, %v2609, 0.0
          %v4067 = vsel %vm2952, %v2610, 0.0
          %v4068 = vsel %vm2953, %v2611, 0.0
          %v4069 = vsel %vm2954, %v2612, 0.0
          %v4070 = vsel %vm2955, %v2613, 0.0
          %v4071 = vsel %vm2956, %v2614, 0.0
          %v4072 = vsel %vm2957, %v2615, 0.0
          %v4073 = vsel %vm2958, %v2616, 0.0
          %v4074 = vsel %vm2959, %v2617, 0.0
          %v4075 = vsel %vm2960, %v2618, 0.0
          %v4076 = vsel %vm2961, %v2619, 0.0
          %v4077 = vsel %vm2962, %v2620, 0.0
          %v4078 = vsel %vm2963, %v2621, 0.0
          %v4079 = vsel %vm2964, %v2622, 0.0
          %v4080 = vsel %vm2965, %v2623, 0.0
          %v4081 = vsel %vm2966, %v2624, 0.0
          %v4082 = vsel %vm2967, %v2625, 0.0
          %v4083 = vsel %vm2968, %v2626, 0.0
          %v4084 = vsel %vm2969, %v2627, 0.0
          %v4085 = vsel %vm2970, %v2628, 0.0
          %v4086 = vsel %vm2971, %v2629, 0.0
          %v4087 = vsel %vm2972, %v2630, 0.0
          %v4088 = vsel %vm2973, %v2631, 0.0
          %v4089 = vsel %vm2974, %v2632, 0.0
          %v4090 = vsel %vm2975, %v2633, 0.0
          %v4091 = vsel %vm2976, %v2634, 0.0
          %v4092 = vsel %vm2977, %v2635, 0.0
          %v4093 = vsel %vm2978, %v2636, 0.0
          %v4094 = vsel %vm2979, %v2637, 0.0
          %v4095 = vsel %vm2980, %v2638, 0.0
          %v4096 = vsel %vm2981, %v2639, 0.0
          %v4097 = vsel %vm2982, %v2640, 0.0
          %v4098 = vsel %vm2983, %v2641, 0.0
          %v4099 = vsel %vm2984, %v2642, 0.0
          %v4100 = vsel %vm2985, %v2643, 0.0
          %v4101 = vsel %vm2986, %v2644, 0.0
          %v4102 = vsel %vm2987, %v2645, 0.0
          %v4103 = vsel %vm2988, %v2646, 0.0
          %v4104 = vsel %vm2989, %v2647, 0.0
          %v4105 = vsel %vm2990, %v2648, 0.0
          %v4106 = vsel %vm2991, %v2649, 0.0
          %v4107 = vsel %vm2992, %v2650, 0.0
          %v4108 = vsel %vm2993, %v2651, 0.0
          %v4109 = vsel %vm2994, %v2652, 0.0
          %v4110 = vsel %vm2995, %v2653, 0.0
          %v4111 = vsel %vm2996, %v2654, 0.0
          %v4112 = vsel %vm2997, %v2655, 0.0
          %v4113 = vsel %vm2998, %v2656, 0.0
          %v4114 = vsel %vm2999, %v2657, 0.0
          %v4115 = vsel %vm3000, %v2658, 0.0
          %v4116 = vsel %vm3001, %v2659, 0.0
          %v4117 = vsel %vm3002, %v2660, 0.0
          %v4118 = vsel %vm3003, %v2661, 0.0
          %v4119 = vsel %vm3004, %v2662, 0.0
          %v4120 = vsel %vm3005, %v2663, 0.0
          %v4121 = vsel %vm3006, %v2664, 0.0
          %v4122 = vsel %vm3007, %v2665, 0.0
          %v4123 = vsel %vm3008, %v2666, 0.0
          %v4124 = vsel %vm3009, %v2667, 0.0
          %v4125 = vsel %vm3010, %v2668, 0.0
          %v4126 = vsel %vm3011, %v2669, 0.0
          %v4127 = vsel %vm3012, %v2670, 0.0
          %v4128 = vsel %vm3013, %v2671, 0.0
          %v4129 = vsel %vm3014, %v2672, 0.0
          %v4130 = vsel %vm3015, %v2673, 0.0
          %v4131 = vsel %vm3016, %v2674, 0.0
          %v4132 = vsel %vm3017, %v2675, 0.0
          %v4133 = vsel %vm3018, %v2676, 0.0
          %v4134 = vsel %vm3019, %v2677, 0.0
          %v4135 = vsel %vm3020, %v2678, 0.0
          %v4136 = vsel %vm3021, %v2679, 0.0
          %v4137 = vsel %vm3022, %v2680, 0.0
          %v4138 = vsel %vm3023, %v2681, 0.0
          %v4139 = vsel %vm3024, %v2682, 0.0
          %v4140 = vsel %vm3025, %v2683, 0.0
          %v4141 = vld [vmem:[#allocation3] sm:$0xff]
          %v4142 = vld [vmem:[#allocation3 + $0x8] sm:$0xff]
          %v4143 = vld [vmem:[#allocation3 + $0x10] sm:$0xff]
          %v4144 = vld [vmem:[#allocation3 + $0x18] sm:$0xff]
          %v4145 = vld [vmem:[#allocation3 + $0x20] sm:$0xff]
          %v4146 = vld [vmem:[#allocation3 + $0x28] sm:$0xff]
          %v4147 = vld [vmem:[#allocation3 + $0x30] sm:$0xff]
          %v4148 = vld [vmem:[#allocation3 + $0x38] sm:$0xff]
          %v4149 = vld [vmem:[#allocation3 + $0x40] sm:$0xff]
          %v4150 = vld [vmem:[#allocation3 + $0x48] sm:$0xff]
          %v4151 = vld [vmem:[#allocation3 + $0x50] sm:$0xff]
          %v4152 = vld [vmem:[#allocation3 + $0x58] sm:$0xff]
          %v4153 = vld [vmem:[#allocation3 + $0x60] sm:$0xff]
          %v4154 = vld [vmem:[#allocation3 + $0x68] sm:$0xff]
          %v4155 = vld [vmem:[#allocation3 + $0x70] sm:$0xff]
          %v4156 = vld [vmem:[#allocation3 + $0x78] sm:$0xff]
          %v4157 = vld [vmem:[#allocation3 + $0x80] sm:$0xff]
          %v4158 = vld [vmem:[#allocation3 + $0x88] sm:$0xff]
          %v4159 = vld [vmem:[#allocation3 + $0x90] sm:$0xff]
          %v4160 = vld [vmem:[#allocation3 + $0x98] sm:$0xff]
          %v4161 = vld [vmem:[#allocation3 + $0xa0] sm:$0xff]
          %v4162 = vld [vmem:[#allocation3 + $0xa8] sm:$0xff]
          %v4163 = vld [vmem:[#allocation3 + $0xb0] sm:$0xff]
          %v4164 = vld [vmem:[#allocation3 + $0xb8] sm:$0xff]
          %v4165 = vld [vmem:[#allocation3 + $0xc0] sm:$0xff]
          %v4166 = vld [vmem:[#allocation3 + $0xc8] sm:$0xff]
          %v4167 = vld [vmem:[#allocation3 + $0xd0] sm:$0xff]
          %v4168 = vld [vmem:[#allocation3 + $0xd8] sm:$0xff]
          %v4169 = vld [vmem:[#allocation3 + $0xe0] sm:$0xff]
          %v4170 = vld [vmem:[#allocation3 + $0xe8] sm:$0xff]
          %v4171 = vld [vmem:[#allocation3 + $0xf0] sm:$0xff]
          %v4172 = vld [vmem:[#allocation3 + $0xf8] sm:$0xff]
          %v4173 = vmax.f32 %v4141, %v4013
          %v4174 = vmax.f32 %v4142, %v4017
          %v4175 = vmax.f32 %v4143, %v4021
          %v4176 = vmax.f32 %v4144, %v4025
          %v4177 = vmax.f32 %v4145, %v4029
          %v4178 = vmax.f32 %v4146, %v4033
          %v4179 = vmax.f32 %v4147, %v4037
          %v4180 = vmax.f32 %v4148, %v4041
          %v4181 = vmax.f32 %v4149, %v4045
          %v4182 = vmax.f32 %v4150, %v4049
          %v4183 = vmax.f32 %v4151, %v4053
          %v4184 = vmax.f32 %v4152, %v4057
          %v4185 = vmax.f32 %v4153, %v4061
          %v4186 = vmax.f32 %v4154, %v4065
          %v4187 = vmax.f32 %v4155, %v4069
          %v4188 = vmax.f32 %v4156, %v4073
          %v4189 = vmax.f32 %v4157, %v4077
          %v4190 = vmax.f32 %v4158, %v4081
          %v4191 = vmax.f32 %v4159, %v4085
          %v4192 = vmax.f32 %v4160, %v4089
          %v4193 = vmax.f32 %v4161, %v4093
          %v4194 = vmax.f32 %v4162, %v4097
          %v4195 = vmax.f32 %v4163, %v4101
          %v4196 = vmax.f32 %v4164, %v4105
          %v4197 = vmax.f32 %v4165, %v4109
          %v4198 = vmax.f32 %v4166, %v4113
          %v4199 = vmax.f32 %v4167, %v4117
          %v4200 = vmax.f32 %v4168, %v4121
          %v4201 = vmax.f32 %v4169, %v4125
          %v4202 = vmax.f32 %v4170, %v4129
          %v4203 = vmax.f32 %v4171, %v4133
          %v4204 = vmax.f32 %v4172, %v4137
          %v4205 = vmax.f32 %v4173, %v4014
          %v4206 = vmax.f32 %v4174, %v4018
          %v4207 = vmax.f32 %v4175, %v4022
          %v4208 = vmax.f32 %v4176, %v4026
          %v4209 = vmax.f32 %v4177, %v4030
          %v4210 = vmax.f32 %v4178, %v4034
          %v4211 = vmax.f32 %v4179, %v4038
          %v4212 = vmax.f32 %v4180, %v4042
          %v4213 = vmax.f32 %v4181, %v4046
          %v4214 = vmax.f32 %v4182, %v4050
          %v4215 = vmax.f32 %v4183, %v4054
          %v4216 = vmax.f32 %v4184, %v4058
          %v4217 = vmax.f32 %v4185, %v4062
          %v4218 = vmax.f32 %v4186, %v4066
          %v4219 = vmax.f32 %v4187, %v4070
          %v4220 = vmax.f32 %v4188, %v4074
          %v4221 = vmax.f32 %v4189, %v4078
          %v4222 = vmax.f32 %v4190, %v4082
          %v4223 = vmax.f32 %v4191, %v4086
          %v4224 = vmax.f32 %v4192, %v4090
          %v4225 = vmax.f32 %v4193, %v4094
          %v4226 = vmax.f32 %v4194, %v4098
          %v4227 = vmax.f32 %v4195, %v4102
          %v4228 = vmax.f32 %v4196, %v4106
          %v4229 = vmax.f32 %v4197, %v4110
          %v4230 = vmax.f32 %v4198, %v4114
          %v4231 = vmax.f32 %v4199, %v4118
          %v4232 = vmax.f32 %v4200, %v4122
          %v4233 = vmax.f32 %v4201, %v4126
          %v4234 = vmax.f32 %v4202, %v4130
          %v4235 = vmax.f32 %v4203, %v4134
          %v4236 = vmax.f32 %v4204, %v4138
          %v4237 = vmax.f32 %v4205, %v4015
          %v4238 = vmax.f32 %v4206, %v4019
          %v4239 = vmax.f32 %v4207, %v4023
          %v4240 = vmax.f32 %v4208, %v4027
          %v4241 = vmax.f32 %v4209, %v4031
          %v4242 = vmax.f32 %v4210, %v4035
          %v4243 = vmax.f32 %v4211, %v4039
          %v4244 = vmax.f32 %v4212, %v4043
          %v4245 = vmax.f32 %v4213, %v4047
          %v4246 = vmax.f32 %v4214, %v4051
          %v4247 = vmax.f32 %v4215, %v4055
          %v4248 = vmax.f32 %v4216, %v4059
          %v4249 = vmax.f32 %v4217, %v4063
          %v4250 = vmax.f32 %v4218, %v4067
          %v4251 = vmax.f32 %v4219, %v4071
          %v4252 = vmax.f32 %v4220, %v4075
          %v4253 = vmax.f32 %v4221, %v4079
          %v4254 = vmax.f32 %v4222, %v4083
          %v4255 = vmax.f32 %v4223, %v4087
          %v4256 = vmax.f32 %v4224, %v4091
          %v4257 = vmax.f32 %v4225, %v4095
          %v4258 = vmax.f32 %v4226, %v4099
          %v4259 = vmax.f32 %v4227, %v4103
          %v4260 = vmax.f32 %v4228, %v4107
          %v4261 = vmax.f32 %v4229, %v4111
          %v4262 = vmax.f32 %v4230, %v4115
          %v4263 = vmax.f32 %v4231, %v4119
          %v4264 = vmax.f32 %v4232, %v4123
          %v4265 = vmax.f32 %v4233, %v4127
          %v4266 = vmax.f32 %v4234, %v4131
          %v4267 = vmax.f32 %v4235, %v4135
          %v4268 = vmax.f32 %v4236, %v4139
          %v4269 = vmax.f32 %v4237, %v4016
          %v4270 = vmax.f32 %v4238, %v4020
          %v4271 = vmax.f32 %v4239, %v4024
          %v4272 = vmax.f32 %v4240, %v4028
          %v4273 = vmax.f32 %v4241, %v4032
          %v4274 = vmax.f32 %v4242, %v4036
          %v4275 = vmax.f32 %v4243, %v4040
          %v4276 = vmax.f32 %v4244, %v4044
          %v4277 = vmax.f32 %v4245, %v4048
          %v4278 = vmax.f32 %v4246, %v4052
          %v4279 = vmax.f32 %v4247, %v4056
          %v4280 = vmax.f32 %v4248, %v4060
          %v4281 = vmax.f32 %v4249, %v4064
          %v4282 = vmax.f32 %v4250, %v4068
          %v4283 = vmax.f32 %v4251, %v4072
          %v4284 = vmax.f32 %v4252, %v4076
          %v4285 = vmax.f32 %v4253, %v4080
          %v4286 = vmax.f32 %v4254, %v4084
          %v4287 = vmax.f32 %v4255, %v4088
          %v4288 = vmax.f32 %v4256, %v4092
          %v4289 = vmax.f32 %v4257, %v4096
          %v4290 = vmax.f32 %v4258, %v4100
          %v4291 = vmax.f32 %v4259, %v4104
          %v4292 = vmax.f32 %v4260, %v4108
          %v4293 = vmax.f32 %v4261, %v4112
          %v4294 = vmax.f32 %v4262, %v4116
          %v4295 = vmax.f32 %v4263, %v4120
          %v4296 = vmax.f32 %v4264, %v4124
          %v4297 = vmax.f32 %v4265, %v4128
          %v4298 = vmax.f32 %v4266, %v4132
          %v4299 = vmax.f32 %v4267, %v4136
          %v4300 = vmax.f32 %v4268, %v4140
          %4301 = vst [vmem:[#allocation3] sm:$0xff] %v4269
          %4302 = vst [vmem:[#allocation3 + $0x8] sm:$0xff] %v4270
          %4303 = vst [vmem:[#allocation3 + $0x10] sm:$0xff] %v4271
          %4304 = vst [vmem:[#allocation3 + $0x18] sm:$0xff] %v4272
          %4305 = vst [vmem:[#allocation3 + $0x20] sm:$0xff] %v4273
          %4306 = vst [vmem:[#allocation3 + $0x28] sm:$0xff] %v4274
          %4307 = vst [vmem:[#allocation3 + $0x30] sm:$0xff] %v4275
          %4308 = vst [vmem:[#allocation3 + $0x38] sm:$0xff] %v4276
          %4309 = vst [vmem:[#allocation3 + $0x40] sm:$0xff] %v4277
          %4310 = vst [vmem:[#allocation3 + $0x48] sm:$0xff] %v4278
          %4311 = vst [vmem:[#allocation3 + $0x50] sm:$0xff] %v4279
          %4312 = vst [vmem:[#allocation3 + $0x58] sm:$0xff] %v4280
          %4313 = vst [vmem:[#allocation3 + $0x60] sm:$0xff] %v4281
          %4314 = vst [vmem:[#allocation3 + $0x68] sm:$0xff] %v4282
          %4315 = vst [vmem:[#allocation3 + $0x70] sm:$0xff] %v4283
          %4316 = vst [vmem:[#allocation3 + $0x78] sm:$0xff] %v4284
          %4317 = vst [vmem:[#allocation3 + $0x80] sm:$0xff] %v4285
          %4318 = vst [vmem:[#allocation3 + $0x88] sm:$0xff] %v4286
          %4319 = vst [vmem:[#allocation3 + $0x90] sm:$0xff] %v4287
          %4320 = vst [vmem:[#allocation3 + $0x98] sm:$0xff] %v4288
          %4321 = vst [vmem:[#allocation3 + $0xa0] sm:$0xff] %v4289
          %4322 = vst [vmem:[#allocation3 + $0xa8] sm:$0xff] %v4290
          %4323 = vst [vmem:[#allocation3 + $0xb0] sm:$0xff] %v4291
          %4324 = vst [vmem:[#allocation3 + $0xb8] sm:$0xff] %v4292
          %4325 = vst [vmem:[#allocation3 + $0xc0] sm:$0xff] %v4293
          %4326 = vst [vmem:[#allocation3 + $0xc8] sm:$0xff] %v4294
          %4327 = vst [vmem:[#allocation3 + $0xd0] sm:$0xff] %v4295
          %4328 = vst [vmem:[#allocation3 + $0xd8] sm:$0xff] %v4296
          %4329 = vst [vmem:[#allocation3 + $0xe0] sm:$0xff] %v4297
          %4330 = vst [vmem:[#allocation3 + $0xe8] sm:$0xff] %v4298
          %4331 = vst [vmem:[#allocation3 + $0xf0] sm:$0xff] %v4299
          %4332 = vst [vmem:[#allocation3 + $0xf8] sm:$0xff] %v4300
        $region72: #{tpu_custom_call.1} parent=47 // pred_fallthru
          _
        // Predicated region
        $region73: #{tpu_custom_call.1} parent=47 // pred_check
          %p4333 = pneg %p454
        $region74: #{tpu_custom_call.1} parent=47 // pred_check_branch
          %4335 = sbr.rel (%p4333) target = $region76
        $region75: #{tpu_custom_call.1} parent=47 // pred_region
          %v4336 = vld [vmem:[#allocation3] sm:$0xff]
          %v4337 = vld [vmem:[#allocation3 + $0x8] sm:$0xff]
          %v4338 = vld [vmem:[#allocation3 + $0x10] sm:$0xff]
          %v4339 = vld [vmem:[#allocation3 + $0x18] sm:$0xff]
          %v4340 = vld [vmem:[#allocation3 + $0x20] sm:$0xff]
          %v4341 = vld [vmem:[#allocation3 + $0x28] sm:$0xff]
          %v4342 = vld [vmem:[#allocation3 + $0x30] sm:$0xff]
          %v4343 = vld [vmem:[#allocation3 + $0x38] sm:$0xff]
          %v4344 = vld [vmem:[#allocation3 + $0x40] sm:$0xff]
          %v4345 = vld [vmem:[#allocation3 + $0x48] sm:$0xff]
          %v4346 = vld [vmem:[#allocation3 + $0x50] sm:$0xff]
          %v4347 = vld [vmem:[#allocation3 + $0x58] sm:$0xff]
          %v4348 = vld [vmem:[#allocation3 + $0x60] sm:$0xff]
          %v4349 = vld [vmem:[#allocation3 + $0x68] sm:$0xff]
          %v4350 = vld [vmem:[#allocation3 + $0x70] sm:$0xff]
          %v4351 = vld [vmem:[#allocation3 + $0x78] sm:$0xff]
          %v4352 = vld [vmem:[#allocation3 + $0x80] sm:$0xff]
          %v4353 = vld [vmem:[#allocation3 + $0x88] sm:$0xff]
          %v4354 = vld [vmem:[#allocation3 + $0x90] sm:$0xff]
          %v4355 = vld [vmem:[#allocation3 + $0x98] sm:$0xff]
          %v4356 = vld [vmem:[#allocation3 + $0xa0] sm:$0xff]
          %v4357 = vld [vmem:[#allocation3 + $0xa8] sm:$0xff]
          %v4358 = vld [vmem:[#allocation3 + $0xb0] sm:$0xff]
          %v4359 = vld [vmem:[#allocation3 + $0xb8] sm:$0xff]
          %v4360 = vld [vmem:[#allocation3 + $0xc0] sm:$0xff]
          %v4361 = vld [vmem:[#allocation3 + $0xc8] sm:$0xff]
          %v4362 = vld [vmem:[#allocation3 + $0xd0] sm:$0xff]
          %v4363 = vld [vmem:[#allocation3 + $0xd8] sm:$0xff]
          %v4364 = vld [vmem:[#allocation3 + $0xe0] sm:$0xff]
          %v4365 = vld [vmem:[#allocation3 + $0xe8] sm:$0xff]
          %v4366 = vld [vmem:[#allocation3 + $0xf0] sm:$0xff]
          %v4367 = vld [vmem:[#allocation3 + $0xf8] sm:$0xff]
          %4368 = vmax.xlane.f32.xlu0 %v4336
          %v4369 = vpop.xlane.xlu0 %4368
          %4370 = vmax.xlane.f32.xlu0 %v4337
          %v4371 = vpop.xlane.xlu0 %4370
          %4372 = vmax.xlane.f32.xlu0 %v4338
          %v4373 = vpop.xlane.xlu0 %4372
          %4374 = vmax.xlane.f32.xlu0 %v4339
          %v4375 = vpop.xlane.xlu0 %4374
          %4376 = vmax.xlane.f32.xlu0 %v4340
          %v4377 = vpop.xlane.xlu0 %4376
          %4378 = vmax.xlane.f32.xlu0 %v4341
          %v4379 = vpop.xlane.xlu0 %4378
          %4380 = vmax.xlane.f32.xlu0 %v4342
          %v4381 = vpop.xlane.xlu0 %4380
          %4382 = vmax.xlane.f32.xlu0 %v4343
          %v4383 = vpop.xlane.xlu0 %4382
          %4384 = vmax.xlane.f32.xlu0 %v4344
          %v4385 = vpop.xlane.xlu0 %4384
          %4386 = vmax.xlane.f32.xlu0 %v4345
          %v4387 = vpop.xlane.xlu0 %4386
          %4388 = vmax.xlane.f32.xlu0 %v4346
          %v4389 = vpop.xlane.xlu0 %4388
          %4390 = vmax.xlane.f32.xlu0 %v4347
          %v4391 = vpop.xlane.xlu0 %4390
          %4392 = vmax.xlane.f32.xlu0 %v4348
          %v4393 = vpop.xlane.xlu0 %4392
          %4394 = vmax.xlane.f32.xlu0 %v4349
          %v4395 = vpop.xlane.xlu0 %4394
          %4396 = vmax.xlane.f32.xlu0 %v4350
          %v4397 = vpop.xlane.xlu0 %4396
          %4398 = vmax.xlane.f32.xlu0 %v4351
          %v4399 = vpop.xlane.xlu0 %4398
          %4400 = vmax.xlane.f32.xlu0 %v4352
          %v4401 = vpop.xlane.xlu0 %4400
          %4402 = vmax.xlane.f32.xlu0 %v4353
          %v4403 = vpop.xlane.xlu0 %4402
          %4404 = vmax.xlane.f32.xlu0 %v4354
          %v4405 = vpop.xlane.xlu0 %4404
          %4406 = vmax.xlane.f32.xlu0 %v4355
          %v4407 = vpop.xlane.xlu0 %4406
          %4408 = vmax.xlane.f32.xlu0 %v4356
          %v4409 = vpop.xlane.xlu0 %4408
          %4410 = vmax.xlane.f32.xlu0 %v4357
          %v4411 = vpop.xlane.xlu0 %4410
          %4412 = vmax.xlane.f32.xlu0 %v4358
          %v4413 = vpop.xlane.xlu0 %4412
          %4414 = vmax.xlane.f32.xlu0 %v4359
          %v4415 = vpop.xlane.xlu0 %4414
          %4416 = vmax.xlane.f32.xlu0 %v4360
          %v4417 = vpop.xlane.xlu0 %4416
          %4418 = vmax.xlane.f32.xlu0 %v4361
          %v4419 = vpop.xlane.xlu0 %4418
          %4420 = vmax.xlane.f32.xlu0 %v4362
          %v4421 = vpop.xlane.xlu0 %4420
          %4422 = vmax.xlane.f32.xlu0 %v4363
          %v4423 = vpop.xlane.xlu0 %4422
          %4424 = vmax.xlane.f32.xlu0 %v4364
          %v4425 = vpop.xlane.xlu0 %4424
          %4426 = vmax.xlane.f32.xlu0 %v4365
          %v4427 = vpop.xlane.xlu0 %4426
          %4428 = vmax.xlane.f32.xlu0 %v4366
          %v4429 = vpop.xlane.xlu0 %4428
          %4430 = vmax.xlane.f32.xlu0 %v4367
          %v4431 = vpop.xlane.xlu0 %4430
          %v4432 = vadd.f32 %v4369, 3.2e-15
          %v4433 = vadd.f32 %v4371, 3.2e-15
          %v4434 = vadd.f32 %v4373, 3.2e-15
          %v4435 = vadd.f32 %v4375, 3.2e-15
          %v4436 = vadd.f32 %v4377, 3.2e-15
          %v4437 = vadd.f32 %v4379, 3.2e-15
          %v4438 = vadd.f32 %v4381, 3.2e-15
          %v4439 = vadd.f32 %v4383, 3.2e-15
          %v4440 = vadd.f32 %v4385, 3.2e-15
          %v4441 = vadd.f32 %v4387, 3.2e-15
          %v4442 = vadd.f32 %v4389, 3.2e-15
          %v4443 = vadd.f32 %v4391, 3.2e-15
          %v4444 = vadd.f32 %v4393, 3.2e-15
          %v4445 = vadd.f32 %v4395, 3.2e-15
          %v4446 = vadd.f32 %v4397, 3.2e-15
          %v4447 = vadd.f32 %v4399, 3.2e-15
          %v4448 = vadd.f32 %v4401, 3.2e-15
          %v4449 = vadd.f32 %v4403, 3.2e-15
          %v4450 = vadd.f32 %v4405, 3.2e-15
          %v4451 = vadd.f32 %v4407, 3.2e-15
          %v4452 = vadd.f32 %v4409, 3.2e-15
          %v4453 = vadd.f32 %v4411, 3.2e-15
          %v4454 = vadd.f32 %v4413, 3.2e-15
          %v4455 = vadd.f32 %v4415, 3.2e-15
          %v4456 = vadd.f32 %v4417, 3.2e-15
          %v4457 = vadd.f32 %v4419, 3.2e-15
          %v4458 = vadd.f32 %v4421, 3.2e-15
          %v4459 = vadd.f32 %v4423, 3.2e-15
          %v4460 = vadd.f32 %v4425, 3.2e-15
          %v4461 = vadd.f32 %v4427, 3.2e-15
          %v4462 = vadd.f32 %v4429, 3.2e-15
          %v4463 = vadd.f32 %v4431, 3.2e-15
          %v4464 = vrsqrt.pop %v4432
          %v4465 = vmul.f32 %v4432, %v4464
          %vm4466 = vcmp.eq.f32.partialorder %v4432, inf
          %v4467 = vsel %vm4466, %v4432, %v4465
          %vm4468 = vcmp.eq.f32.partialorder %v4432, 0.0
          %v4469 = vand.u32 %v4432, 2147483648
          %v4470 = vsel %vm4468, %v4469, %v4467
          %v4471 = vrsqrt.pop %v4433
          %v4472 = vmul.f32 %v4433, %v4471
          %vm4473 = vcmp.eq.f32.partialorder %v4433, inf
          %v4474 = vsel %vm4473, %v4433, %v4472
          %vm4475 = vcmp.eq.f32.partialorder %v4433, 0.0
          %v4476 = vand.u32 %v4433, 2147483648
          %v4477 = vsel %vm4475, %v4476, %v4474
          %v4478 = vrsqrt.pop %v4434
          %v4479 = vmul.f32 %v4434, %v4478
          %vm4480 = vcmp.eq.f32.partialorder %v4434, inf
          %v4481 = vsel %vm4480, %v4434, %v4479
          %vm4482 = vcmp.eq.f32.partialorder %v4434, 0.0
          %v4483 = vand.u32 %v4434, 2147483648
          %v4484 = vsel %vm4482, %v4483, %v4481
          %v4485 = vrsqrt.pop %v4435
          %v4486 = vmul.f32 %v4435, %v4485
          %vm4487 = vcmp.eq.f32.partialorder %v4435, inf
          %v4488 = vsel %vm4487, %v4435, %v4486
          %vm4489 = vcmp.eq.f32.partialorder %v4435, 0.0
          %v4490 = vand.u32 %v4435, 2147483648
          %v4491 = vsel %vm4489, %v4490, %v4488
          %v4492 = vrsqrt.pop %v4436
          %v4493 = vmul.f32 %v4436, %v4492
          %vm4494 = vcmp.eq.f32.partialorder %v4436, inf
          %v4495 = vsel %vm4494, %v4436, %v4493
          %vm4496 = vcmp.eq.f32.partialorder %v4436, 0.0
          %v4497 = vand.u32 %v4436, 2147483648
          %v4498 = vsel %vm4496, %v4497, %v4495
          %v4499 = vrsqrt.pop %v4437
          %v4500 = vmul.f32 %v4437, %v4499
          %vm4501 = vcmp.eq.f32.partialorder %v4437, inf
          %v4502 = vsel %vm4501, %v4437, %v4500
          %vm4503 = vcmp.eq.f32.partialorder %v4437, 0.0
          %v4504 = vand.u32 %v4437, 2147483648
          %v4505 = vsel %vm4503, %v4504, %v4502
          %v4506 = vrsqrt.pop %v4438
          %v4507 = vmul.f32 %v4438, %v4506
          %vm4508 = vcmp.eq.f32.partialorder %v4438, inf
          %v4509 = vsel %vm4508, %v4438, %v4507
          %vm4510 = vcmp.eq.f32.partialorder %v4438, 0.0
          %v4511 = vand.u32 %v4438, 2147483648
          %v4512 = vsel %vm4510, %v4511, %v4509
          %v4513 = vrsqrt.pop %v4439
          %v4514 = vmul.f32 %v4439, %v4513
          %vm4515 = vcmp.eq.f32.partialorder %v4439, inf
          %v4516 = vsel %vm4515, %v4439, %v4514
          %vm4517 = vcmp.eq.f32.partialorder %v4439, 0.0
          %v4518 = vand.u32 %v4439, 2147483648
          %v4519 = vsel %vm4517, %v4518, %v4516
          %v4520 = vrsqrt.pop %v4440
          %v4521 = vmul.f32 %v4440, %v4520
          %vm4522 = vcmp.eq.f32.partialorder %v4440, inf
          %v4523 = vsel %vm4522, %v4440, %v4521
          %vm4524 = vcmp.eq.f32.partialorder %v4440, 0.0
          %v4525 = vand.u32 %v4440, 2147483648
          %v4526 = vsel %vm4524, %v4525, %v4523
          %v4527 = vrsqrt.pop %v4441
          %v4528 = vmul.f32 %v4441, %v4527
          %vm4529 = vcmp.eq.f32.partialorder %v4441, inf
          %v4530 = vsel %vm4529, %v4441, %v4528
          %vm4531 = vcmp.eq.f32.partialorder %v4441, 0.0
          %v4532 = vand.u32 %v4441, 2147483648
          %v4533 = vsel %vm4531, %v4532, %v4530
          %v4534 = vrsqrt.pop %v4442
          %v4535 = vmul.f32 %v4442, %v4534
          %vm4536 = vcmp.eq.f32.partialorder %v4442, inf
          %v4537 = vsel %vm4536, %v4442, %v4535
          %vm4538 = vcmp.eq.f32.partialorder %v4442, 0.0
          %v4539 = vand.u32 %v4442, 2147483648
          %v4540 = vsel %vm4538, %v4539, %v4537
          %v4541 = vrsqrt.pop %v4443
          %v4542 = vmul.f32 %v4443, %v4541
          %vm4543 = vcmp.eq.f32.partialorder %v4443, inf
          %v4544 = vsel %vm4543, %v4443, %v4542
          %vm4545 = vcmp.eq.f32.partialorder %v4443, 0.0
          %v4546 = vand.u32 %v4443, 2147483648
          %v4547 = vsel %vm4545, %v4546, %v4544
          %v4548 = vrsqrt.pop %v4444
          %v4549 = vmul.f32 %v4444, %v4548
          %vm4550 = vcmp.eq.f32.partialorder %v4444, inf
          %v4551 = vsel %vm4550, %v4444, %v4549
          %vm4552 = vcmp.eq.f32.partialorder %v4444, 0.0
          %v4553 = vand.u32 %v4444, 2147483648
          %v4554 = vsel %vm4552, %v4553, %v4551
          %v4555 = vrsqrt.pop %v4445
          %v4556 = vmul.f32 %v4445, %v4555
          %vm4557 = vcmp.eq.f32.partialorder %v4445, inf
          %v4558 = vsel %vm4557, %v4445, %v4556
          %vm4559 = vcmp.eq.f32.partialorder %v4445, 0.0
          %v4560 = vand.u32 %v4445, 2147483648
          %v4561 = vsel %vm4559, %v4560, %v4558
          %v4562 = vrsqrt.pop %v4446
          %v4563 = vmul.f32 %v4446, %v4562
          %vm4564 = vcmp.eq.f32.partialorder %v4446, inf
          %v4565 = vsel %vm4564, %v4446, %v4563
          %vm4566 = vcmp.eq.f32.partialorder %v4446, 0.0
          %v4567 = vand.u32 %v4446, 2147483648
          %v4568 = vsel %vm4566, %v4567, %v4565
          %v4569 = vrsqrt.pop %v4447
          %v4570 = vmul.f32 %v4447, %v4569
          %vm4571 = vcmp.eq.f32.partialorder %v4447, inf
          %v4572 = vsel %vm4571, %v4447, %v4570
          %vm4573 = vcmp.eq.f32.partialorder %v4447, 0.0
          %v4574 = vand.u32 %v4447, 2147483648
          %v4575 = vsel %vm4573, %v4574, %v4572
          %v4576 = vrsqrt.pop %v4448
          %v4577 = vmul.f32 %v4448, %v4576
          %vm4578 = vcmp.eq.f32.partialorder %v4448, inf
          %v4579 = vsel %vm4578, %v4448, %v4577
          %vm4580 = vcmp.eq.f32.partialorder %v4448, 0.0
          %v4581 = vand.u32 %v4448, 2147483648
          %v4582 = vsel %vm4580, %v4581, %v4579
          %v4583 = vrsqrt.pop %v4449
          %v4584 = vmul.f32 %v4449, %v4583
          %vm4585 = vcmp.eq.f32.partialorder %v4449, inf
          %v4586 = vsel %vm4585, %v4449, %v4584
          %vm4587 = vcmp.eq.f32.partialorder %v4449, 0.0
          %v4588 = vand.u32 %v4449, 2147483648
          %v4589 = vsel %vm4587, %v4588, %v4586
          %v4590 = vrsqrt.pop %v4450
          %v4591 = vmul.f32 %v4450, %v4590
          %vm4592 = vcmp.eq.f32.partialorder %v4450, inf
          %v4593 = vsel %vm4592, %v4450, %v4591
          %vm4594 = vcmp.eq.f32.partialorder %v4450, 0.0
          %v4595 = vand.u32 %v4450, 2147483648
          %v4596 = vsel %vm4594, %v4595, %v4593
          %v4597 = vrsqrt.pop %v4451
          %v4598 = vmul.f32 %v4451, %v4597
          %vm4599 = vcmp.eq.f32.partialorder %v4451, inf
          %v4600 = vsel %vm4599, %v4451, %v4598
          %vm4601 = vcmp.eq.f32.partialorder %v4451, 0.0
          %v4602 = vand.u32 %v4451, 2147483648
          %v4603 = vsel %vm4601, %v4602, %v4600
          %v4604 = vrsqrt.pop %v4452
          %v4605 = vmul.f32 %v4452, %v4604
          %vm4606 = vcmp.eq.f32.partialorder %v4452, inf
          %v4607 = vsel %vm4606, %v4452, %v4605
          %vm4608 = vcmp.eq.f32.partialorder %v4452, 0.0
          %v4609 = vand.u32 %v4452, 2147483648
          %v4610 = vsel %vm4608, %v4609, %v4607
          %v4611 = vrsqrt.pop %v4453
          %v4612 = vmul.f32 %v4453, %v4611
          %vm4613 = vcmp.eq.f32.partialorder %v4453, inf
          %v4614 = vsel %vm4613, %v4453, %v4612
          %vm4615 = vcmp.eq.f32.partialorder %v4453, 0.0
          %v4616 = vand.u32 %v4453, 2147483648
          %v4617 = vsel %vm4615, %v4616, %v4614
          %v4618 = vrsqrt.pop %v4454
          %v4619 = vmul.f32 %v4454, %v4618
          %vm4620 = vcmp.eq.f32.partialorder %v4454, inf
          %v4621 = vsel %vm4620, %v4454, %v4619
          %vm4622 = vcmp.eq.f32.partialorder %v4454, 0.0
          %v4623 = vand.u32 %v4454, 2147483648
          %v4624 = vsel %vm4622, %v4623, %v4621
          %v4625 = vrsqrt.pop %v4455
          %v4626 = vmul.f32 %v4455, %v4625
          %vm4627 = vcmp.eq.f32.partialorder %v4455, inf
          %v4628 = vsel %vm4627, %v4455, %v4626
          %vm4629 = vcmp.eq.f32.partialorder %v4455, 0.0
          %v4630 = vand.u32 %v4455, 2147483648
          %v4631 = vsel %vm4629, %v4630, %v4628
          %v4632 = vrsqrt.pop %v4456
          %v4633 = vmul.f32 %v4456, %v4632
          %vm4634 = vcmp.eq.f32.partialorder %v4456, inf
          %v4635 = vsel %vm4634, %v4456, %v4633
          %vm4636 = vcmp.eq.f32.partialorder %v4456, 0.0
          %v4637 = vand.u32 %v4456, 2147483648
          %v4638 = vsel %vm4636, %v4637, %v4635
          %v4639 = vrsqrt.pop %v4457
          %v4640 = vmul.f32 %v4457, %v4639
          %vm4641 = vcmp.eq.f32.partialorder %v4457, inf
          %v4642 = vsel %vm4641, %v4457, %v4640
          %vm4643 = vcmp.eq.f32.partialorder %v4457, 0.0
          %v4644 = vand.u32 %v4457, 2147483648
          %v4645 = vsel %vm4643, %v4644, %v4642
          %v4646 = vrsqrt.pop %v4458
          %v4647 = vmul.f32 %v4458, %v4646
          %vm4648 = vcmp.eq.f32.partialorder %v4458, inf
          %v4649 = vsel %vm4648, %v4458, %v4647
          %vm4650 = vcmp.eq.f32.partialorder %v4458, 0.0
          %v4651 = vand.u32 %v4458, 2147483648
          %v4652 = vsel %vm4650, %v4651, %v4649
          %v4653 = vrsqrt.pop %v4459
          %v4654 = vmul.f32 %v4459, %v4653
          %vm4655 = vcmp.eq.f32.partialorder %v4459, inf
          %v4656 = vsel %vm4655, %v4459, %v4654
          %vm4657 = vcmp.eq.f32.partialorder %v4459, 0.0
          %v4658 = vand.u32 %v4459, 2147483648
          %v4659 = vsel %vm4657, %v4658, %v4656
          %v4660 = vrsqrt.pop %v4460
          %v4661 = vmul.f32 %v4460, %v4660
          %vm4662 = vcmp.eq.f32.partialorder %v4460, inf
          %v4663 = vsel %vm4662, %v4460, %v4661
          %vm4664 = vcmp.eq.f32.partialorder %v4460, 0.0
          %v4665 = vand.u32 %v4460, 2147483648
          %v4666 = vsel %vm4664, %v4665, %v4663
          %v4667 = vrsqrt.pop %v4461
          %v4668 = vmul.f32 %v4461, %v4667
          %vm4669 = vcmp.eq.f32.partialorder %v4461, inf
          %v4670 = vsel %vm4669, %v4461, %v4668
          %vm4671 = vcmp.eq.f32.partialorder %v4461, 0.0
          %v4672 = vand.u32 %v4461, 2147483648
          %v4673 = vsel %vm4671, %v4672, %v4670
          %v4674 = vrsqrt.pop %v4462
          %v4675 = vmul.f32 %v4462, %v4674
          %vm4676 = vcmp.eq.f32.partialorder %v4462, inf
          %v4677 = vsel %vm4676, %v4462, %v4675
          %vm4678 = vcmp.eq.f32.partialorder %v4462, 0.0
          %v4679 = vand.u32 %v4462, 2147483648
          %v4680 = vsel %vm4678, %v4679, %v4677
          %v4681 = vrsqrt.pop %v4463
          %v4682 = vmul.f32 %v4463, %v4681
          %vm4683 = vcmp.eq.f32.partialorder %v4463, inf
          %v4684 = vsel %vm4683, %v4463, %v4682
          %vm4685 = vcmp.eq.f32.partialorder %v4463, 0.0
          %v4686 = vand.u32 %v4463, 2147483648
          %v4687 = vsel %vm4685, %v4686, %v4684
          %v4688 = vld [vmem:[#allocation4] sm:$0xff]
          %v4689 = vld [vmem:[#allocation4 + $0x8] sm:$0xff]
          %v4690 = vld [vmem:[#allocation4 + $0x10] sm:$0xff]
          %v4691 = vld [vmem:[#allocation4 + $0x18] sm:$0xff]
          %v4692 = vld [vmem:[#allocation4 + $0x20] sm:$0xff]
          %v4693 = vld [vmem:[#allocation4 + $0x28] sm:$0xff]
          %v4694 = vld [vmem:[#allocation4 + $0x30] sm:$0xff]
          %v4695 = vld [vmem:[#allocation4 + $0x38] sm:$0xff]
          %v4696 = vld [vmem:[#allocation4 + $0x40] sm:$0xff]
          %v4697 = vld [vmem:[#allocation4 + $0x48] sm:$0xff]
          %v4698 = vld [vmem:[#allocation4 + $0x50] sm:$0xff]
          %v4699 = vld [vmem:[#allocation4 + $0x58] sm:$0xff]
          %v4700 = vld [vmem:[#allocation4 + $0x60] sm:$0xff]
          %v4701 = vld [vmem:[#allocation4 + $0x68] sm:$0xff]
          %v4702 = vld [vmem:[#allocation4 + $0x70] sm:$0xff]
          %v4703 = vld [vmem:[#allocation4 + $0x78] sm:$0xff]
          %v4704 = vld [vmem:[#allocation4 + $0x80] sm:$0xff]
          %v4705 = vld [vmem:[#allocation4 + $0x88] sm:$0xff]
          %v4706 = vld [vmem:[#allocation4 + $0x90] sm:$0xff]
          %v4707 = vld [vmem:[#allocation4 + $0x98] sm:$0xff]
          %v4708 = vld [vmem:[#allocation4 + $0xa0] sm:$0xff]
          %v4709 = vld [vmem:[#allocation4 + $0xa8] sm:$0xff]
          %v4710 = vld [vmem:[#allocation4 + $0xb0] sm:$0xff]
          %v4711 = vld [vmem:[#allocation4 + $0xb8] sm:$0xff]
          %v4712 = vld [vmem:[#allocation4 + $0xc0] sm:$0xff]
          %v4713 = vld [vmem:[#allocation4 + $0xc8] sm:$0xff]
          %v4714 = vld [vmem:[#allocation4 + $0xd0] sm:$0xff]
          %v4715 = vld [vmem:[#allocation4 + $0xd8] sm:$0xff]
          %v4716 = vld [vmem:[#allocation4 + $0xe0] sm:$0xff]
          %v4717 = vld [vmem:[#allocation4 + $0xe8] sm:$0xff]
          %v4718 = vld [vmem:[#allocation4 + $0xf0] sm:$0xff]
          %v4719 = vld [vmem:[#allocation4 + $0xf8] sm:$0xff]
          %4720 = vmin.xlane.f32.xlu0 %v4688
          %v4721 = vpop.xlane.xlu0 %4720
          %4722 = vmin.xlane.f32.xlu0 %v4689
          %v4723 = vpop.xlane.xlu0 %4722
          %4724 = vmin.xlane.f32.xlu0 %v4690
          %v4725 = vpop.xlane.xlu0 %4724
          %4726 = vmin.xlane.f32.xlu0 %v4691
          %v4727 = vpop.xlane.xlu0 %4726
          %4728 = vmin.xlane.f32.xlu0 %v4692
          %v4729 = vpop.xlane.xlu0 %4728
          %4730 = vmin.xlane.f32.xlu0 %v4693
          %v4731 = vpop.xlane.xlu0 %4730
          %4732 = vmin.xlane.f32.xlu0 %v4694
          %v4733 = vpop.xlane.xlu0 %4732
          %4734 = vmin.xlane.f32.xlu0 %v4695
          %v4735 = vpop.xlane.xlu0 %4734
          %4736 = vmin.xlane.f32.xlu0 %v4696
          %v4737 = vpop.xlane.xlu0 %4736
          %4738 = vmin.xlane.f32.xlu0 %v4697
          %v4739 = vpop.xlane.xlu0 %4738
          %4740 = vmin.xlane.f32.xlu0 %v4698
          %v4741 = vpop.xlane.xlu0 %4740
          %4742 = vmin.xlane.f32.xlu0 %v4699
          %v4743 = vpop.xlane.xlu0 %4742
          %4744 = vmin.xlane.f32.xlu0 %v4700
          %v4745 = vpop.xlane.xlu0 %4744
          %4746 = vmin.xlane.f32.xlu0 %v4701
          %v4747 = vpop.xlane.xlu0 %4746
          %4748 = vmin.xlane.f32.xlu0 %v4702
          %v4749 = vpop.xlane.xlu0 %4748
          %4750 = vmin.xlane.f32.xlu0 %v4703
          %v4751 = vpop.xlane.xlu0 %4750
          %4752 = vmin.xlane.f32.xlu0 %v4704
          %v4753 = vpop.xlane.xlu0 %4752
          %4754 = vmin.xlane.f32.xlu0 %v4705
          %v4755 = vpop.xlane.xlu0 %4754
          %4756 = vmin.xlane.f32.xlu0 %v4706
          %v4757 = vpop.xlane.xlu0 %4756
          %4758 = vmin.xlane.f32.xlu0 %v4707
          %v4759 = vpop.xlane.xlu0 %4758
          %4760 = vmin.xlane.f32.xlu0 %v4708
          %v4761 = vpop.xlane.xlu0 %4760
          %4762 = vmin.xlane.f32.xlu0 %v4709
          %v4763 = vpop.xlane.xlu0 %4762
          %4764 = vmin.xlane.f32.xlu0 %v4710
          %v4765 = vpop.xlane.xlu0 %4764
          %4766 = vmin.xlane.f32.xlu0 %v4711
          %v4767 = vpop.xlane.xlu0 %4766
          %4768 = vmin.xlane.f32.xlu0 %v4712
          %v4769 = vpop.xlane.xlu0 %4768
          %4770 = vmin.xlane.f32.xlu0 %v4713
          %v4771 = vpop.xlane.xlu0 %4770
          %4772 = vmin.xlane.f32.xlu0 %v4714
          %v4773 = vpop.xlane.xlu0 %4772
          %4774 = vmin.xlane.f32.xlu0 %v4715
          %v4775 = vpop.xlane.xlu0 %4774
          %4776 = vmin.xlane.f32.xlu0 %v4716
          %v4777 = vpop.xlane.xlu0 %4776
          %4778 = vmin.xlane.f32.xlu0 %v4717
          %v4779 = vpop.xlane.xlu0 %4778
          %4780 = vmin.xlane.f32.xlu0 %v4718
          %v4781 = vpop.xlane.xlu0 %4780
          %4782 = vmin.xlane.f32.xlu0 %v4719
          %v4783 = vpop.xlane.xlu0 %4782
          %v4784 = vadd.f32 %v4721, 3.2e-15
          %v4785 = vadd.f32 %v4723, 3.2e-15
          %v4786 = vadd.f32 %v4725, 3.2e-15
          %v4787 = vadd.f32 %v4727, 3.2e-15
          %v4788 = vadd.f32 %v4729, 3.2e-15
          %v4789 = vadd.f32 %v4731, 3.2e-15
          %v4790 = vadd.f32 %v4733, 3.2e-15
          %v4791 = vadd.f32 %v4735, 3.2e-15
          %v4792 = vadd.f32 %v4737, 3.2e-15
          %v4793 = vadd.f32 %v4739, 3.2e-15
          %v4794 = vadd.f32 %v4741, 3.2e-15
          %v4795 = vadd.f32 %v4743, 3.2e-15
          %v4796 = vadd.f32 %v4745, 3.2e-15
          %v4797 = vadd.f32 %v4747, 3.2e-15
          %v4798 = vadd.f32 %v4749, 3.2e-15
          %v4799 = vadd.f32 %v4751, 3.2e-15
          %v4800 = vadd.f32 %v4753, 3.2e-15
          %v4801 = vadd.f32 %v4755, 3.2e-15
          %v4802 = vadd.f32 %v4757, 3.2e-15
          %v4803 = vadd.f32 %v4759, 3.2e-15
          %v4804 = vadd.f32 %v4761, 3.2e-15
          %v4805 = vadd.f32 %v4763, 3.2e-15
          %v4806 = vadd.f32 %v4765, 3.2e-15
          %v4807 = vadd.f32 %v4767, 3.2e-15
          %v4808 = vadd.f32 %v4769, 3.2e-15
          %v4809 = vadd.f32 %v4771, 3.2e-15
          %v4810 = vadd.f32 %v4773, 3.2e-15
          %v4811 = vadd.f32 %v4775, 3.2e-15
          %v4812 = vadd.f32 %v4777, 3.2e-15
          %v4813 = vadd.f32 %v4779, 3.2e-15
          %v4814 = vadd.f32 %v4781, 3.2e-15
          %v4815 = vadd.f32 %v4783, 3.2e-15
          %v4816 = vrsqrt.pop %v4784
          %v4817 = vmul.f32 %v4784, %v4816
          %vm4818 = vcmp.eq.f32.partialorder %v4784, inf
          %v4819 = vsel %vm4818, %v4784, %v4817
          %vm4820 = vcmp.eq.f32.partialorder %v4784, 0.0
          %v4821 = vand.u32 %v4784, 2147483648
          %v4822 = vsel %vm4820, %v4821, %v4819
          %v4823 = vrsqrt.pop %v4785
          %v4824 = vmul.f32 %v4785, %v4823
          %vm4825 = vcmp.eq.f32.partialorder %v4785, inf
          %v4826 = vsel %vm4825, %v4785, %v4824
          %vm4827 = vcmp.eq.f32.partialorder %v4785, 0.0
          %v4828 = vand.u32 %v4785, 2147483648
          %v4829 = vsel %vm4827, %v4828, %v4826
          %v4830 = vrsqrt.pop %v4786
          %v4831 = vmul.f32 %v4786, %v4830
          %vm4832 = vcmp.eq.f32.partialorder %v4786, inf
          %v4833 = vsel %vm4832, %v4786, %v4831
          %vm4834 = vcmp.eq.f32.partialorder %v4786, 0.0
          %v4835 = vand.u32 %v4786, 2147483648
          %v4836 = vsel %vm4834, %v4835, %v4833
          %v4837 = vrsqrt.pop %v4787
          %v4838 = vmul.f32 %v4787, %v4837
          %vm4839 = vcmp.eq.f32.partialorder %v4787, inf
          %v4840 = vsel %vm4839, %v4787, %v4838
          %vm4841 = vcmp.eq.f32.partialorder %v4787, 0.0
          %v4842 = vand.u32 %v4787, 2147483648
          %v4843 = vsel %vm4841, %v4842, %v4840
          %v4844 = vrsqrt.pop %v4788
          %v4845 = vmul.f32 %v4788, %v4844
          %vm4846 = vcmp.eq.f32.partialorder %v4788, inf
          %v4847 = vsel %vm4846, %v4788, %v4845
          %vm4848 = vcmp.eq.f32.partialorder %v4788, 0.0
          %v4849 = vand.u32 %v4788, 2147483648
          %v4850 = vsel %vm4848, %v4849, %v4847
          %v4851 = vrsqrt.pop %v4789
          %v4852 = vmul.f32 %v4789, %v4851
          %vm4853 = vcmp.eq.f32.partialorder %v4789, inf
          %v4854 = vsel %vm4853, %v4789, %v4852
          %vm4855 = vcmp.eq.f32.partialorder %v4789, 0.0
          %v4856 = vand.u32 %v4789, 2147483648
          %v4857 = vsel %vm4855, %v4856, %v4854
          %v4858 = vrsqrt.pop %v4790
          %v4859 = vmul.f32 %v4790, %v4858
          %vm4860 = vcmp.eq.f32.partialorder %v4790, inf
          %v4861 = vsel %vm4860, %v4790, %v4859
          %vm4862 = vcmp.eq.f32.partialorder %v4790, 0.0
          %v4863 = vand.u32 %v4790, 2147483648
          %v4864 = vsel %vm4862, %v4863, %v4861
          %v4865 = vrsqrt.pop %v4791
          %v4866 = vmul.f32 %v4791, %v4865
          %vm4867 = vcmp.eq.f32.partialorder %v4791, inf
          %v4868 = vsel %vm4867, %v4791, %v4866
          %vm4869 = vcmp.eq.f32.partialorder %v4791, 0.0
          %v4870 = vand.u32 %v4791, 2147483648
          %v4871 = vsel %vm4869, %v4870, %v4868
          %v4872 = vrsqrt.pop %v4792
          %v4873 = vmul.f32 %v4792, %v4872
          %vm4874 = vcmp.eq.f32.partialorder %v4792, inf
          %v4875 = vsel %vm4874, %v4792, %v4873
          %vm4876 = vcmp.eq.f32.partialorder %v4792, 0.0
          %v4877 = vand.u32 %v4792, 2147483648
          %v4878 = vsel %vm4876, %v4877, %v4875
          %v4879 = vrsqrt.pop %v4793
          %v4880 = vmul.f32 %v4793, %v4879
          %vm4881 = vcmp.eq.f32.partialorder %v4793, inf
          %v4882 = vsel %vm4881, %v4793, %v4880
          %vm4883 = vcmp.eq.f32.partialorder %v4793, 0.0
          %v4884 = vand.u32 %v4793, 2147483648
          %v4885 = vsel %vm4883, %v4884, %v4882
          %v4886 = vrsqrt.pop %v4794
          %v4887 = vmul.f32 %v4794, %v4886
          %vm4888 = vcmp.eq.f32.partialorder %v4794, inf
          %v4889 = vsel %vm4888, %v4794, %v4887
          %vm4890 = vcmp.eq.f32.partialorder %v4794, 0.0
          %v4891 = vand.u32 %v4794, 2147483648
          %v4892 = vsel %vm4890, %v4891, %v4889
          %v4893 = vrsqrt.pop %v4795
          %v4894 = vmul.f32 %v4795, %v4893
          %vm4895 = vcmp.eq.f32.partialorder %v4795, inf
          %v4896 = vsel %vm4895, %v4795, %v4894
          %vm4897 = vcmp.eq.f32.partialorder %v4795, 0.0
          %v4898 = vand.u32 %v4795, 2147483648
          %v4899 = vsel %vm4897, %v4898, %v4896
          %v4900 = vrsqrt.pop %v4796
          %v4901 = vmul.f32 %v4796, %v4900
          %vm4902 = vcmp.eq.f32.partialorder %v4796, inf
          %v4903 = vsel %vm4902, %v4796, %v4901
          %vm4904 = vcmp.eq.f32.partialorder %v4796, 0.0
          %v4905 = vand.u32 %v4796, 2147483648
          %v4906 = vsel %vm4904, %v4905, %v4903
          %v4907 = vrsqrt.pop %v4797
          %v4908 = vmul.f32 %v4797, %v4907
          %vm4909 = vcmp.eq.f32.partialorder %v4797, inf
          %v4910 = vsel %vm4909, %v4797, %v4908
          %vm4911 = vcmp.eq.f32.partialorder %v4797, 0.0
          %v4912 = vand.u32 %v4797, 2147483648
          %v4913 = vsel %vm4911, %v4912, %v4910
          %v4914 = vrsqrt.pop %v4798
          %v4915 = vmul.f32 %v4798, %v4914
          %vm4916 = vcmp.eq.f32.partialorder %v4798, inf
          %v4917 = vsel %vm4916, %v4798, %v4915
          %vm4918 = vcmp.eq.f32.partialorder %v4798, 0.0
          %v4919 = vand.u32 %v4798, 2147483648
          %v4920 = vsel %vm4918, %v4919, %v4917
          %v4921 = vrsqrt.pop %v4799
          %v4922 = vmul.f32 %v4799, %v4921
          %vm4923 = vcmp.eq.f32.partialorder %v4799, inf
          %v4924 = vsel %vm4923, %v4799, %v4922
          %vm4925 = vcmp.eq.f32.partialorder %v4799, 0.0
          %v4926 = vand.u32 %v4799, 2147483648
          %v4927 = vsel %vm4925, %v4926, %v4924
          %v4928 = vrsqrt.pop %v4800
          %v4929 = vmul.f32 %v4800, %v4928
          %vm4930 = vcmp.eq.f32.partialorder %v4800, inf
          %v4931 = vsel %vm4930, %v4800, %v4929
          %vm4932 = vcmp.eq.f32.partialorder %v4800, 0.0
          %v4933 = vand.u32 %v4800, 2147483648
          %v4934 = vsel %vm4932, %v4933, %v4931
          %v4935 = vrsqrt.pop %v4801
          %v4936 = vmul.f32 %v4801, %v4935
          %vm4937 = vcmp.eq.f32.partialorder %v4801, inf
          %v4938 = vsel %vm4937, %v4801, %v4936
          %vm4939 = vcmp.eq.f32.partialorder %v4801, 0.0
          %v4940 = vand.u32 %v4801, 2147483648
          %v4941 = vsel %vm4939, %v4940, %v4938
          %v4942 = vrsqrt.pop %v4802
          %v4943 = vmul.f32 %v4802, %v4942
          %vm4944 = vcmp.eq.f32.partialorder %v4802, inf
          %v4945 = vsel %vm4944, %v4802, %v4943
          %vm4946 = vcmp.eq.f32.partialorder %v4802, 0.0
          %v4947 = vand.u32 %v4802, 2147483648
          %v4948 = vsel %vm4946, %v4947, %v4945
          %v4949 = vrsqrt.pop %v4803
          %v4950 = vmul.f32 %v4803, %v4949
          %vm4951 = vcmp.eq.f32.partialorder %v4803, inf
          %v4952 = vsel %vm4951, %v4803, %v4950
          %vm4953 = vcmp.eq.f32.partialorder %v4803, 0.0
          %v4954 = vand.u32 %v4803, 2147483648
          %v4955 = vsel %vm4953, %v4954, %v4952
          %v4956 = vrsqrt.pop %v4804
          %v4957 = vmul.f32 %v4804, %v4956
          %vm4958 = vcmp.eq.f32.partialorder %v4804, inf
          %v4959 = vsel %vm4958, %v4804, %v4957
          %vm4960 = vcmp.eq.f32.partialorder %v4804, 0.0
          %v4961 = vand.u32 %v4804, 2147483648
          %v4962 = vsel %vm4960, %v4961, %v4959
          %v4963 = vrsqrt.pop %v4805
          %v4964 = vmul.f32 %v4805, %v4963
          %vm4965 = vcmp.eq.f32.partialorder %v4805, inf
          %v4966 = vsel %vm4965, %v4805, %v4964
          %vm4967 = vcmp.eq.f32.partialorder %v4805, 0.0
          %v4968 = vand.u32 %v4805, 2147483648
          %v4969 = vsel %vm4967, %v4968, %v4966
          %v4970 = vrsqrt.pop %v4806
          %v4971 = vmul.f32 %v4806, %v4970
          %vm4972 = vcmp.eq.f32.partialorder %v4806, inf
          %v4973 = vsel %vm4972, %v4806, %v4971
          %vm4974 = vcmp.eq.f32.partialorder %v4806, 0.0
          %v4975 = vand.u32 %v4806, 2147483648
          %v4976 = vsel %vm4974, %v4975, %v4973
          %v4977 = vrsqrt.pop %v4807
          %v4978 = vmul.f32 %v4807, %v4977
          %vm4979 = vcmp.eq.f32.partialorder %v4807, inf
          %v4980 = vsel %vm4979, %v4807, %v4978
          %vm4981 = vcmp.eq.f32.partialorder %v4807, 0.0
          %v4982 = vand.u32 %v4807, 2147483648
          %v4983 = vsel %vm4981, %v4982, %v4980
          %v4984 = vrsqrt.pop %v4808
          %v4985 = vmul.f32 %v4808, %v4984
          %vm4986 = vcmp.eq.f32.partialorder %v4808, inf
          %v4987 = vsel %vm4986, %v4808, %v4985
          %vm4988 = vcmp.eq.f32.partialorder %v4808, 0.0
          %v4989 = vand.u32 %v4808, 2147483648
          %v4990 = vsel %vm4988, %v4989, %v4987
          %v4991 = vrsqrt.pop %v4809
          %v4992 = vmul.f32 %v4809, %v4991
          %vm4993 = vcmp.eq.f32.partialorder %v4809, inf
          %v4994 = vsel %vm4993, %v4809, %v4992
          %vm4995 = vcmp.eq.f32.partialorder %v4809, 0.0
          %v4996 = vand.u32 %v4809, 2147483648
          %v4997 = vsel %vm4995, %v4996, %v4994
          %v4998 = vrsqrt.pop %v4810
          %v4999 = vmul.f32 %v4810, %v4998
          %vm5000 = vcmp.eq.f32.partialorder %v4810, inf
          %v5001 = vsel %vm5000, %v4810, %v4999
          %vm5002 = vcmp.eq.f32.partialorder %v4810, 0.0
          %v5003 = vand.u32 %v4810, 2147483648
          %v5004 = vsel %vm5002, %v5003, %v5001
          %v5005 = vrsqrt.pop %v4811
          %v5006 = vmul.f32 %v4811, %v5005
          %vm5007 = vcmp.eq.f32.partialorder %v4811, inf
          %v5008 = vsel %vm5007, %v4811, %v5006
          %vm5009 = vcmp.eq.f32.partialorder %v4811, 0.0
          %v5010 = vand.u32 %v4811, 2147483648
          %v5011 = vsel %vm5009, %v5010, %v5008
          %v5012 = vrsqrt.pop %v4812
          %v5013 = vmul.f32 %v4812, %v5012
          %vm5014 = vcmp.eq.f32.partialorder %v4812, inf
          %v5015 = vsel %vm5014, %v4812, %v5013
          %vm5016 = vcmp.eq.f32.partialorder %v4812, 0.0
          %v5017 = vand.u32 %v4812, 2147483648
          %v5018 = vsel %vm5016, %v5017, %v5015
          %v5019 = vrsqrt.pop %v4813
          %v5020 = vmul.f32 %v4813, %v5019
          %vm5021 = vcmp.eq.f32.partialorder %v4813, inf
          %v5022 = vsel %vm5021, %v4813, %v5020
          %vm5023 = vcmp.eq.f32.partialorder %v4813, 0.0
          %v5024 = vand.u32 %v4813, 2147483648
          %v5025 = vsel %vm5023, %v5024, %v5022
          %v5026 = vrsqrt.pop %v4814
          %v5027 = vmul.f32 %v4814, %v5026
          %vm5028 = vcmp.eq.f32.partialorder %v4814, inf
          %v5029 = vsel %vm5028, %v4814, %v5027
          %vm5030 = vcmp.eq.f32.partialorder %v4814, 0.0
          %v5031 = vand.u32 %v4814, 2147483648
          %v5032 = vsel %vm5030, %v5031, %v5029
          %v5033 = vrsqrt.pop %v4815
          %v5034 = vmul.f32 %v4815, %v5033
          %vm5035 = vcmp.eq.f32.partialorder %v4815, inf
          %v5036 = vsel %vm5035, %v4815, %v5034
          %vm5037 = vcmp.eq.f32.partialorder %v4815, 0.0
          %v5038 = vand.u32 %v4815, 2147483648
          %v5039 = vsel %vm5037, %v5038, %v5036
          %v5040 = vsub.f32 %v4470, %v4822
          %v5041 = vsub.f32 %v4477, %v4829
          %v5042 = vsub.f32 %v4484, %v4836
          %v5043 = vsub.f32 %v4491, %v4843
          %v5044 = vsub.f32 %v4498, %v4850
          %v5045 = vsub.f32 %v4505, %v4857
          %v5046 = vsub.f32 %v4512, %v4864
          %v5047 = vsub.f32 %v4519, %v4871
          %v5048 = vsub.f32 %v4526, %v4878
          %v5049 = vsub.f32 %v4533, %v4885
          %v5050 = vsub.f32 %v4540, %v4892
          %v5051 = vsub.f32 %v4547, %v4899
          %v5052 = vsub.f32 %v4554, %v4906
          %v5053 = vsub.f32 %v4561, %v4913
          %v5054 = vsub.f32 %v4568, %v4920
          %v5055 = vsub.f32 %v4575, %v4927
          %v5056 = vsub.f32 %v4582, %v4934
          %v5057 = vsub.f32 %v4589, %v4941
          %v5058 = vsub.f32 %v4596, %v4948
          %v5059 = vsub.f32 %v4603, %v4955
          %v5060 = vsub.f32 %v4610, %v4962
          %v5061 = vsub.f32 %v4617, %v4969
          %v5062 = vsub.f32 %v4624, %v4976
          %v5063 = vsub.f32 %v4631, %v4983
          %v5064 = vsub.f32 %v4638, %v4990
          %v5065 = vsub.f32 %v4645, %v4997
          %v5066 = vsub.f32 %v4652, %v5004
          %v5067 = vsub.f32 %v4659, %v5011
          %v5068 = vsub.f32 %v4666, %v5018
          %v5069 = vsub.f32 %v4673, %v5025
          %v5070 = vsub.f32 %v4680, %v5032
          %v5071 = vsub.f32 %v4687, %v5039
          %vm5072 = vcmp.gt.f32.partialorder %v5040, 20.0
          %vm5073 = vcmp.gt.f32.partialorder %v5041, 20.0
          %vm5074 = vcmp.gt.f32.partialorder %v5042, 20.0
          %vm5075 = vcmp.gt.f32.partialorder %v5043, 20.0
          %vm5076 = vcmp.gt.f32.partialorder %v5044, 20.0
          %vm5077 = vcmp.gt.f32.partialorder %v5045, 20.0
          %vm5078 = vcmp.gt.f32.partialorder %v5046, 20.0
          %vm5079 = vcmp.gt.f32.partialorder %v5047, 20.0
          %vm5080 = vcmp.gt.f32.partialorder %v5048, 20.0
          %vm5081 = vcmp.gt.f32.partialorder %v5049, 20.0
          %vm5082 = vcmp.gt.f32.partialorder %v5050, 20.0
          %vm5083 = vcmp.gt.f32.partialorder %v5051, 20.0
          %vm5084 = vcmp.gt.f32.partialorder %v5052, 20.0
          %vm5085 = vcmp.gt.f32.partialorder %v5053, 20.0
          %vm5086 = vcmp.gt.f32.partialorder %v5054, 20.0
          %vm5087 = vcmp.gt.f32.partialorder %v5055, 20.0
          %vm5088 = vcmp.gt.f32.partialorder %v5056, 20.0
          %vm5089 = vcmp.gt.f32.partialorder %v5057, 20.0
          %vm5090 = vcmp.gt.f32.partialorder %v5058, 20.0
          %vm5091 = vcmp.gt.f32.partialorder %v5059, 20.0
          %vm5092 = vcmp.gt.f32.partialorder %v5060, 20.0
          %vm5093 = vcmp.gt.f32.partialorder %v5061, 20.0
          %vm5094 = vcmp.gt.f32.partialorder %v5062, 20.0
          %vm5095 = vcmp.gt.f32.partialorder %v5063, 20.0
          %vm5096 = vcmp.gt.f32.partialorder %v5064, 20.0
          %vm5097 = vcmp.gt.f32.partialorder %v5065, 20.0
          %vm5098 = vcmp.gt.f32.partialorder %v5066, 20.0
          %vm5099 = vcmp.gt.f32.partialorder %v5067, 20.0
          %vm5100 = vcmp.gt.f32.partialorder %v5068, 20.0
          %vm5101 = vcmp.gt.f32.partialorder %v5069, 20.0
          %vm5102 = vcmp.gt.f32.partialorder %v5070, 20.0
          %vm5103 = vcmp.gt.f32.partialorder %v5071, 20.0
          %v5104 = vmin.f32 %v5040, 20.0
          %v5105 = vmin.f32 %v5041, 20.0
          %v5106 = vmin.f32 %v5042, 20.0
          %v5107 = vmin.f32 %v5043, 20.0
          %v5108 = vmin.f32 %v5044, 20.0
          %v5109 = vmin.f32 %v5045, 20.0
          %v5110 = vmin.f32 %v5046, 20.0
          %v5111 = vmin.f32 %v5047, 20.0
          %v5112 = vmin.f32 %v5048, 20.0
          %v5113 = vmin.f32 %v5049, 20.0
          %v5114 = vmin.f32 %v5050, 20.0
          %v5115 = vmin.f32 %v5051, 20.0
          %v5116 = vmin.f32 %v5052, 20.0
          %v5117 = vmin.f32 %v5053, 20.0
          %v5118 = vmin.f32 %v5054, 20.0
          %v5119 = vmin.f32 %v5055, 20.0
          %v5120 = vmin.f32 %v5056, 20.0
          %v5121 = vmin.f32 %v5057, 20.0
          %v5122 = vmin.f32 %v5058, 20.0
          %v5123 = vmin.f32 %v5059, 20.0
          %v5124 = vmin.f32 %v5060, 20.0
          %v5125 = vmin.f32 %v5061, 20.0
          %v5126 = vmin.f32 %v5062, 20.0
          %v5127 = vmin.f32 %v5063, 20.0
          %v5128 = vmin.f32 %v5064, 20.0
          %v5129 = vmin.f32 %v5065, 20.0
          %v5130 = vmin.f32 %v5066, 20.0
          %v5131 = vmin.f32 %v5067, 20.0
          %v5132 = vmin.f32 %v5068, 20.0
          %v5133 = vmin.f32 %v5069, 20.0
          %v5134 = vmin.f32 %v5070, 20.0
          %v5135 = vmin.f32 %v5071, 20.0
          %v5136 = vmul.f32 %v5104, 1.442695
          %v5137 = vpow.pop %v5136
          %v5138 = vmul.f32 %v5105, 1.442695
          %v5139 = vpow.pop %v5138
          %v5140 = vmul.f32 %v5106, 1.442695
          %v5141 = vpow.pop %v5140
          %v5142 = vmul.f32 %v5107, 1.442695
          %v5143 = vpow.pop %v5142
          %v5144 = vmul.f32 %v5108, 1.442695
          %v5145 = vpow.pop %v5144
          %v5146 = vmul.f32 %v5109, 1.442695
          %v5147 = vpow.pop %v5146
          %v5148 = vmul.f32 %v5110, 1.442695
          %v5149 = vpow.pop %v5148
          %v5150 = vmul.f32 %v5111, 1.442695
          %v5151 = vpow.pop %v5150
          %v5152 = vmul.f32 %v5112, 1.442695
          %v5153 = vpow.pop %v5152
          %v5154 = vmul.f32 %v5113, 1.442695
          %v5155 = vpow.pop %v5154
          %v5156 = vmul.f32 %v5114, 1.442695
          %v5157 = vpow.pop %v5156
          %v5158 = vmul.f32 %v5115, 1.442695
          %v5159 = vpow.pop %v5158
          %v5160 = vmul.f32 %v5116, 1.442695
          %v5161 = vpow.pop %v5160
          %v5162 = vmul.f32 %v5117, 1.442695
          %v5163 = vpow.pop %v5162
          %v5164 = vmul.f32 %v5118, 1.442695
          %v5165 = vpow.pop %v5164
          %v5166 = vmul.f32 %v5119, 1.442695
          %v5167 = vpow.pop %v5166
          %v5168 = vmul.f32 %v5120, 1.442695
          %v5169 = vpow.pop %v5168
          %v5170 = vmul.f32 %v5121, 1.442695
          %v5171 = vpow.pop %v5170
          %v5172 = vmul.f32 %v5122, 1.442695
          %v5173 = vpow.pop %v5172
          %v5174 = vmul.f32 %v5123, 1.442695
          %v5175 = vpow.pop %v5174
          %v5176 = vmul.f32 %v5124, 1.442695
          %v5177 = vpow.pop %v5176
          %v5178 = vmul.f32 %v5125, 1.442695
          %v5179 = vpow.pop %v5178
          %v5180 = vmul.f32 %v5126, 1.442695
          %v5181 = vpow.pop %v5180
          %v5182 = vmul.f32 %v5127, 1.442695
          %v5183 = vpow.pop %v5182
          %v5184 = vmul.f32 %v5128, 1.442695
          %v5185 = vpow.pop %v5184
          %v5186 = vmul.f32 %v5129, 1.442695
          %v5187 = vpow.pop %v5186
          %v5188 = vmul.f32 %v5130, 1.442695
          %v5189 = vpow.pop %v5188
          %v5190 = vmul.f32 %v5131, 1.442695
          %v5191 = vpow.pop %v5190
          %v5192 = vmul.f32 %v5132, 1.442695
          %v5193 = vpow.pop %v5192
          %v5194 = vmul.f32 %v5133, 1.442695
          %v5195 = vpow.pop %v5194
          %v5196 = vmul.f32 %v5134, 1.442695
          %v5197 = vpow.pop %v5196
          %v5198 = vmul.f32 %v5135, 1.442695
          %v5199 = vpow.pop %v5198
          %v5200 = vadd.f32 %v5137, 1.0
          %v5201 = vlog2.pop %v5200
          %v5202 = vmul.f32 %v5201, 0.6931472
          %v5203 = vmul.f32 -0.5, %v5137
          %v5204 = vadd.f32 %v5203, 1.0
          %v5205 = vmul.f32 %v5204, %v5137
          %v5206 = vand.u32 2147483647, %v5137
          %vm5207 = vcmp.lt.f32.partialorder %v5206, 0.0004427343
          %v5208 = vsel %vm5207, %v5205, %v5202
          %v5209 = vadd.f32 %v5139, 1.0
          %v5210 = vlog2.pop %v5209
          %v5211 = vmul.f32 %v5210, 0.6931472
          %v5212 = vmul.f32 -0.5, %v5139
          %v5213 = vadd.f32 %v5212, 1.0
          %v5214 = vmul.f32 %v5213, %v5139
          %v5215 = vand.u32 2147483647, %v5139
          %vm5216 = vcmp.lt.f32.partialorder %v5215, 0.0004427343
          %v5217 = vsel %vm5216, %v5214, %v5211
          %v5218 = vadd.f32 %v5141, 1.0
          %v5219 = vlog2.pop %v5218
          %v5220 = vmul.f32 %v5219, 0.6931472
          %v5221 = vmul.f32 -0.5, %v5141
          %v5222 = vadd.f32 %v5221, 1.0
          %v5223 = vmul.f32 %v5222, %v5141
          %v5224 = vand.u32 2147483647, %v5141
          %vm5225 = vcmp.lt.f32.partialorder %v5224, 0.0004427343
          %v5226 = vsel %vm5225, %v5223, %v5220
          %v5227 = vadd.f32 %v5143, 1.0
          %v5228 = vlog2.pop %v5227
          %v5229 = vmul.f32 %v5228, 0.6931472
          %v5230 = vmul.f32 -0.5, %v5143
          %v5231 = vadd.f32 %v5230, 1.0
          %v5232 = vmul.f32 %v5231, %v5143
          %v5233 = vand.u32 2147483647, %v5143
          %vm5234 = vcmp.lt.f32.partialorder %v5233, 0.0004427343
          %v5235 = vsel %vm5234, %v5232, %v5229
          %v5236 = vadd.f32 %v5145, 1.0
          %v5237 = vlog2.pop %v5236
          %v5238 = vmul.f32 %v5237, 0.6931472
          %v5239 = vmul.f32 -0.5, %v5145
          %v5240 = vadd.f32 %v5239, 1.0
          %v5241 = vmul.f32 %v5240, %v5145
          %v5242 = vand.u32 2147483647, %v5145
          %vm5243 = vcmp.lt.f32.partialorder %v5242, 0.0004427343
          %v5244 = vsel %vm5243, %v5241, %v5238
          %v5245 = vadd.f32 %v5147, 1.0
          %v5246 = vlog2.pop %v5245
          %v5247 = vmul.f32 %v5246, 0.6931472
          %v5248 = vmul.f32 -0.5, %v5147
          %v5249 = vadd.f32 %v5248, 1.0
          %v5250 = vmul.f32 %v5249, %v5147
          %v5251 = vand.u32 2147483647, %v5147
          %vm5252 = vcmp.lt.f32.partialorder %v5251, 0.0004427343
          %v5253 = vsel %vm5252, %v5250, %v5247
          %v5254 = vadd.f32 %v5149, 1.0
          %v5255 = vlog2.pop %v5254
          %v5256 = vmul.f32 %v5255, 0.6931472
          %v5257 = vmul.f32 -0.5, %v5149
          %v5258 = vadd.f32 %v5257, 1.0
          %v5259 = vmul.f32 %v5258, %v5149
          %v5260 = vand.u32 2147483647, %v5149
          %vm5261 = vcmp.lt.f32.partialorder %v5260, 0.0004427343
          %v5262 = vsel %vm5261, %v5259, %v5256
          %v5263 = vadd.f32 %v5151, 1.0
          %v5264 = vlog2.pop %v5263
          %v5265 = vmul.f32 %v5264, 0.6931472
          %v5266 = vmul.f32 -0.5, %v5151
          %v5267 = vadd.f32 %v5266, 1.0
          %v5268 = vmul.f32 %v5267, %v5151
          %v5269 = vand.u32 2147483647, %v5151
          %vm5270 = vcmp.lt.f32.partialorder %v5269, 0.0004427343
          %v5271 = vsel %vm5270, %v5268, %v5265
          %v5272 = vadd.f32 %v5153, 1.0
          %v5273 = vlog2.pop %v5272
          %v5274 = vmul.f32 %v5273, 0.6931472
          %v5275 = vmul.f32 -0.5, %v5153
          %v5276 = vadd.f32 %v5275, 1.0
          %v5277 = vmul.f32 %v5276, %v5153
          %v5278 = vand.u32 2147483647, %v5153
          %vm5279 = vcmp.lt.f32.partialorder %v5278, 0.0004427343
          %v5280 = vsel %vm5279, %v5277, %v5274
          %v5281 = vadd.f32 %v5155, 1.0
          %v5282 = vlog2.pop %v5281
          %v5283 = vmul.f32 %v5282, 0.6931472
          %v5284 = vmul.f32 -0.5, %v5155
          %v5285 = vadd.f32 %v5284, 1.0
          %v5286 = vmul.f32 %v5285, %v5155
          %v5287 = vand.u32 2147483647, %v5155
          %vm5288 = vcmp.lt.f32.partialorder %v5287, 0.0004427343
          %v5289 = vsel %vm5288, %v5286, %v5283
          %v5290 = vadd.f32 %v5157, 1.0
          %v5291 = vlog2.pop %v5290
          %v5292 = vmul.f32 %v5291, 0.6931472
          %v5293 = vmul.f32 -0.5, %v5157
          %v5294 = vadd.f32 %v5293, 1.0
          %v5295 = vmul.f32 %v5294, %v5157
          %v5296 = vand.u32 2147483647, %v5157
          %vm5297 = vcmp.lt.f32.partialorder %v5296, 0.0004427343
          %v5298 = vsel %vm5297, %v5295, %v5292
          %v5299 = vadd.f32 %v5159, 1.0
          %v5300 = vlog2.pop %v5299
          %v5301 = vmul.f32 %v5300, 0.6931472
          %v5302 = vmul.f32 -0.5, %v5159
          %v5303 = vadd.f32 %v5302, 1.0
          %v5304 = vmul.f32 %v5303, %v5159
          %v5305 = vand.u32 2147483647, %v5159
          %vm5306 = vcmp.lt.f32.partialorder %v5305, 0.0004427343
          %v5307 = vsel %vm5306, %v5304, %v5301
          %v5308 = vadd.f32 %v5161, 1.0
          %v5309 = vlog2.pop %v5308
          %v5310 = vmul.f32 %v5309, 0.6931472
          %v5311 = vmul.f32 -0.5, %v5161
          %v5312 = vadd.f32 %v5311, 1.0
          %v5313 = vmul.f32 %v5312, %v5161
          %v5314 = vand.u32 2147483647, %v5161
          %vm5315 = vcmp.lt.f32.partialorder %v5314, 0.0004427343
          %v5316 = vsel %vm5315, %v5313, %v5310
          %v5317 = vadd.f32 %v5163, 1.0
          %v5318 = vlog2.pop %v5317
          %v5319 = vmul.f32 %v5318, 0.6931472
          %v5320 = vmul.f32 -0.5, %v5163
          %v5321 = vadd.f32 %v5320, 1.0
          %v5322 = vmul.f32 %v5321, %v5163
          %v5323 = vand.u32 2147483647, %v5163
          %vm5324 = vcmp.lt.f32.partialorder %v5323, 0.0004427343
          %v5325 = vsel %vm5324, %v5322, %v5319
          %v5326 = vadd.f32 %v5165, 1.0
          %v5327 = vlog2.pop %v5326
          %v5328 = vmul.f32 %v5327, 0.6931472
          %v5329 = vmul.f32 -0.5, %v5165
          %v5330 = vadd.f32 %v5329, 1.0
          %v5331 = vmul.f32 %v5330, %v5165
          %v5332 = vand.u32 2147483647, %v5165
          %vm5333 = vcmp.lt.f32.partialorder %v5332, 0.0004427343
          %v5334 = vsel %vm5333, %v5331, %v5328
          %v5335 = vadd.f32 %v5167, 1.0
          %v5336 = vlog2.pop %v5335
          %v5337 = vmul.f32 %v5336, 0.6931472
          %v5338 = vmul.f32 -0.5, %v5167
          %v5339 = vadd.f32 %v5338, 1.0
          %v5340 = vmul.f32 %v5339, %v5167
          %v5341 = vand.u32 2147483647, %v5167
          %vm5342 = vcmp.lt.f32.partialorder %v5341, 0.0004427343
          %v5343 = vsel %vm5342, %v5340, %v5337
          %v5344 = vadd.f32 %v5169, 1.0
          %v5345 = vlog2.pop %v5344
          %v5346 = vmul.f32 %v5345, 0.6931472
          %v5347 = vmul.f32 -0.5, %v5169
          %v5348 = vadd.f32 %v5347, 1.0
          %v5349 = vmul.f32 %v5348, %v5169
          %v5350 = vand.u32 2147483647, %v5169
          %vm5351 = vcmp.lt.f32.partialorder %v5350, 0.0004427343
          %v5352 = vsel %vm5351, %v5349, %v5346
          %v5353 = vadd.f32 %v5171, 1.0
          %v5354 = vlog2.pop %v5353
          %v5355 = vmul.f32 %v5354, 0.6931472
          %v5356 = vmul.f32 -0.5, %v5171
          %v5357 = vadd.f32 %v5356, 1.0
          %v5358 = vmul.f32 %v5357, %v5171
          %v5359 = vand.u32 2147483647, %v5171
          %vm5360 = vcmp.lt.f32.partialorder %v5359, 0.0004427343
          %v5361 = vsel %vm5360, %v5358, %v5355
          %v5362 = vadd.f32 %v5173, 1.0
          %v5363 = vlog2.pop %v5362
          %v5364 = vmul.f32 %v5363, 0.6931472
          %v5365 = vmul.f32 -0.5, %v5173
          %v5366 = vadd.f32 %v5365, 1.0
          %v5367 = vmul.f32 %v5366, %v5173
          %v5368 = vand.u32 2147483647, %v5173
          %vm5369 = vcmp.lt.f32.partialorder %v5368, 0.0004427343
          %v5370 = vsel %vm5369, %v5367, %v5364
          %v5371 = vadd.f32 %v5175, 1.0
          %v5372 = vlog2.pop %v5371
          %v5373 = vmul.f32 %v5372, 0.6931472
          %v5374 = vmul.f32 -0.5, %v5175
          %v5375 = vadd.f32 %v5374, 1.0
          %v5376 = vmul.f32 %v5375, %v5175
          %v5377 = vand.u32 2147483647, %v5175
          %vm5378 = vcmp.lt.f32.partialorder %v5377, 0.0004427343
          %v5379 = vsel %vm5378, %v5376, %v5373
          %v5380 = vadd.f32 %v5177, 1.0
          %v5381 = vlog2.pop %v5380
          %v5382 = vmul.f32 %v5381, 0.6931472
          %v5383 = vmul.f32 -0.5, %v5177
          %v5384 = vadd.f32 %v5383, 1.0
          %v5385 = vmul.f32 %v5384, %v5177
          %v5386 = vand.u32 2147483647, %v5177
          %vm5387 = vcmp.lt.f32.partialorder %v5386, 0.0004427343
          %v5388 = vsel %vm5387, %v5385, %v5382
          %v5389 = vadd.f32 %v5179, 1.0
          %v5390 = vlog2.pop %v5389
          %v5391 = vmul.f32 %v5390, 0.6931472
          %v5392 = vmul.f32 -0.5, %v5179
          %v5393 = vadd.f32 %v5392, 1.0
          %v5394 = vmul.f32 %v5393, %v5179
          %v5395 = vand.u32 2147483647, %v5179
          %vm5396 = vcmp.lt.f32.partialorder %v5395, 0.0004427343
          %v5397 = vsel %vm5396, %v5394, %v5391
          %v5398 = vadd.f32 %v5181, 1.0
          %v5399 = vlog2.pop %v5398
          %v5400 = vmul.f32 %v5399, 0.6931472
          %v5401 = vmul.f32 -0.5, %v5181
          %v5402 = vadd.f32 %v5401, 1.0
          %v5403 = vmul.f32 %v5402, %v5181
          %v5404 = vand.u32 2147483647, %v5181
          %vm5405 = vcmp.lt.f32.partialorder %v5404, 0.0004427343
          %v5406 = vsel %vm5405, %v5403, %v5400
          %v5407 = vadd.f32 %v5183, 1.0
          %v5408 = vlog2.pop %v5407
          %v5409 = vmul.f32 %v5408, 0.6931472
          %v5410 = vmul.f32 -0.5, %v5183
          %v5411 = vadd.f32 %v5410, 1.0
          %v5412 = vmul.f32 %v5411, %v5183
          %v5413 = vand.u32 2147483647, %v5183
          %vm5414 = vcmp.lt.f32.partialorder %v5413, 0.0004427343
          %v5415 = vsel %vm5414, %v5412, %v5409
          %v5416 = vadd.f32 %v5185, 1.0
          %v5417 = vlog2.pop %v5416
          %v5418 = vmul.f32 %v5417, 0.6931472
          %v5419 = vmul.f32 -0.5, %v5185
          %v5420 = vadd.f32 %v5419, 1.0
          %v5421 = vmul.f32 %v5420, %v5185
          %v5422 = vand.u32 2147483647, %v5185
          %vm5423 = vcmp.lt.f32.partialorder %v5422, 0.0004427343
          %v5424 = vsel %vm5423, %v5421, %v5418
          %v5425 = vadd.f32 %v5187, 1.0
          %v5426 = vlog2.pop %v5425
          %v5427 = vmul.f32 %v5426, 0.6931472
          %v5428 = vmul.f32 -0.5, %v5187
          %v5429 = vadd.f32 %v5428, 1.0
          %v5430 = vmul.f32 %v5429, %v5187
          %v5431 = vand.u32 2147483647, %v5187
          %vm5432 = vcmp.lt.f32.partialorder %v5431, 0.0004427343
          %v5433 = vsel %vm5432, %v5430, %v5427
          %v5434 = vadd.f32 %v5189, 1.0
          %v5435 = vlog2.pop %v5434
          %v5436 = vmul.f32 %v5435, 0.6931472
          %v5437 = vmul.f32 -0.5, %v5189
          %v5438 = vadd.f32 %v5437, 1.0
          %v5439 = vmul.f32 %v5438, %v5189
          %v5440 = vand.u32 2147483647, %v5189
          %vm5441 = vcmp.lt.f32.partialorder %v5440, 0.0004427343
          %v5442 = vsel %vm5441, %v5439, %v5436
          %v5443 = vadd.f32 %v5191, 1.0
          %v5444 = vlog2.pop %v5443
          %v5445 = vmul.f32 %v5444, 0.6931472
          %v5446 = vmul.f32 -0.5, %v5191
          %v5447 = vadd.f32 %v5446, 1.0
          %v5448 = vmul.f32 %v5447, %v5191
          %v5449 = vand.u32 2147483647, %v5191
          %vm5450 = vcmp.lt.f32.partialorder %v5449, 0.0004427343
          %v5451 = vsel %vm5450, %v5448, %v5445
          %v5452 = vadd.f32 %v5193, 1.0
          %v5453 = vlog2.pop %v5452
          %v5454 = vmul.f32 %v5453, 0.6931472
          %v5455 = vmul.f32 -0.5, %v5193
          %v5456 = vadd.f32 %v5455, 1.0
          %v5457 = vmul.f32 %v5456, %v5193
          %v5458 = vand.u32 2147483647, %v5193
          %vm5459 = vcmp.lt.f32.partialorder %v5458, 0.0004427343
          %v5460 = vsel %vm5459, %v5457, %v5454
          %v5461 = vadd.f32 %v5195, 1.0
          %v5462 = vlog2.pop %v5461
          %v5463 = vmul.f32 %v5462, 0.6931472
          %v5464 = vmul.f32 -0.5, %v5195
          %v5465 = vadd.f32 %v5464, 1.0
          %v5466 = vmul.f32 %v5465, %v5195
          %v5467 = vand.u32 2147483647, %v5195
          %vm5468 = vcmp.lt.f32.partialorder %v5467, 0.0004427343
          %v5469 = vsel %vm5468, %v5466, %v5463
          %v5470 = vadd.f32 %v5197, 1.0
          %v5471 = vlog2.pop %v5470
          %v5472 = vmul.f32 %v5471, 0.6931472
          %v5473 = vmul.f32 -0.5, %v5197
          %v5474 = vadd.f32 %v5473, 1.0
          %v5475 = vmul.f32 %v5474, %v5197
          %v5476 = vand.u32 2147483647, %v5197
          %vm5477 = vcmp.lt.f32.partialorder %v5476, 0.0004427343
          %v5478 = vsel %vm5477, %v5475, %v5472
          %v5479 = vadd.f32 %v5199, 1.0
          %v5480 = vlog2.pop %v5479
          %v5481 = vmul.f32 %v5480, 0.6931472
          %v5482 = vmul.f32 -0.5, %v5199
          %v5483 = vadd.f32 %v5482, 1.0
          %v5484 = vmul.f32 %v5483, %v5199
          %v5485 = vand.u32 2147483647, %v5199
          %vm5486 = vcmp.lt.f32.partialorder %v5485, 0.0004427343
          %v5487 = vsel %vm5486, %v5484, %v5481
          %v5488 = vsel %vm5072, %v5040, %v5208
          %v5489 = vsel %vm5073, %v5041, %v5217
          %v5490 = vsel %vm5074, %v5042, %v5226
          %v5491 = vsel %vm5075, %v5043, %v5235
          %v5492 = vsel %vm5076, %v5044, %v5244
          %v5493 = vsel %vm5077, %v5045, %v5253
          %v5494 = vsel %vm5078, %v5046, %v5262
          %v5495 = vsel %vm5079, %v5047, %v5271
          %v5496 = vsel %vm5080, %v5048, %v5280
          %v5497 = vsel %vm5081, %v5049, %v5289
          %v5498 = vsel %vm5082, %v5050, %v5298
          %v5499 = vsel %vm5083, %v5051, %v5307
          %v5500 = vsel %vm5084, %v5052, %v5316
          %v5501 = vsel %vm5085, %v5053, %v5325
          %v5502 = vsel %vm5086, %v5054, %v5334
          %v5503 = vsel %vm5087, %v5055, %v5343
          %v5504 = vsel %vm5088, %v5056, %v5352
          %v5505 = vsel %vm5089, %v5057, %v5361
          %v5506 = vsel %vm5090, %v5058, %v5370
          %v5507 = vsel %vm5091, %v5059, %v5379
          %v5508 = vsel %vm5092, %v5060, %v5388
          %v5509 = vsel %vm5093, %v5061, %v5397
          %v5510 = vsel %vm5094, %v5062, %v5406
          %v5511 = vsel %vm5095, %v5063, %v5415
          %v5512 = vsel %vm5096, %v5064, %v5424
          %v5513 = vsel %vm5097, %v5065, %v5433
          %v5514 = vsel %vm5098, %v5066, %v5442
          %v5515 = vsel %vm5099, %v5067, %v5451
          %v5516 = vsel %vm5100, %v5068, %v5460
          %v5517 = vsel %vm5101, %v5069, %v5469
          %v5518 = vsel %vm5102, %v5070, %v5478
          %v5519 = vsel %vm5103, %v5071, %v5487
          %5520 = vst [vmem:[%s424] sm:$0xff] %v5488
          %5521 = vst [vmem:[%s424 + $0x8] sm:$0xff] %v5489
          %5522 = vst [vmem:[%s424 + $0x10] sm:$0xff] %v5490
          %5523 = vst [vmem:[%s424 + $0x18] sm:$0xff] %v5491
          %5524 = vst [vmem:[%s424 + $0x20] sm:$0xff] %v5492
          %5525 = vst [vmem:[%s424 + $0x28] sm:$0xff] %v5493
          %5526 = vst [vmem:[%s424 + $0x30] sm:$0xff] %v5494
          %5527 = vst [vmem:[%s424 + $0x38] sm:$0xff] %v5495
          %5528 = vst [vmem:[%s424 + $0x40] sm:$0xff] %v5496
          %5529 = vst [vmem:[%s424 + $0x48] sm:$0xff] %v5497
          %5530 = vst [vmem:[%s424 + $0x50] sm:$0xff] %v5498
          %5531 = vst [vmem:[%s424 + $0x58] sm:$0xff] %v5499
          %5532 = vst [vmem:[%s424 + $0x60] sm:$0xff] %v5500
          %5533 = vst [vmem:[%s424 + $0x68] sm:$0xff] %v5501
          %5534 = vst [vmem:[%s424 + $0x70] sm:$0xff] %v5502
          %5535 = vst [vmem:[%s424 + $0x78] sm:$0xff] %v5503
          %5536 = vst [vmem:[%s424 + $0x80] sm:$0xff] %v5504
          %5537 = vst [vmem:[%s424 + $0x88] sm:$0xff] %v5505
          %5538 = vst [vmem:[%s424 + $0x90] sm:$0xff] %v5506
          %5539 = vst [vmem:[%s424 + $0x98] sm:$0xff] %v5507
          %5540 = vst [vmem:[%s424 + $0xa0] sm:$0xff] %v5508
          %5541 = vst [vmem:[%s424 + $0xa8] sm:$0xff] %v5509
          %5542 = vst [vmem:[%s424 + $0xb0] sm:$0xff] %v5510
          %5543 = vst [vmem:[%s424 + $0xb8] sm:$0xff] %v5511
          %5544 = vst [vmem:[%s424 + $0xc0] sm:$0xff] %v5512
          %5545 = vst [vmem:[%s424 + $0xc8] sm:$0xff] %v5513
          %5546 = vst [vmem:[%s424 + $0xd0] sm:$0xff] %v5514
          %5547 = vst [vmem:[%s424 + $0xd8] sm:$0xff] %v5515
          %5548 = vst [vmem:[%s424 + $0xe0] sm:$0xff] %v5516
          %5549 = vst [vmem:[%s424 + $0xe8] sm:$0xff] %v5517
          %5550 = vst [vmem:[%s424 + $0xf0] sm:$0xff] %v5518
          %5551 = vst [vmem:[%s424 + $0xf8] sm:$0xff] %v5519
        $region76: #{tpu_custom_call.1} parent=47 // pred_fallthru
          _
        %s5552 = sand.u32 %s222, 1
        %s5553 = scalar_lea.sflag [#allocation7], %s5552
        %s5554 = sand.u32 %s222, 1
        %s5555 = smul.addr %s5554, 256
        %s5556 = scalar_lea.vmem [#allocation11], %s5555
        %s5557 = sand.u32 %s248, 1
        %s5558 = scalar_lea.sflag [#allocation13], %s5557
        %s5559 = sand.u32 %s248, 1
        %s5560 = smul.addr %s5559, 256
        %s5561 = scalar_lea.vmem [#allocation12], %s5560
        // Predicated region
        $region77: #{tpu_custom_call.1} parent=47 // pred_check
          %p5562 = pneg %p232
        $region78: #{tpu_custom_call.1} parent=47 // pred_check_branch
          %5564 = sbr.rel (%p5562) target = $region80
        $region79: #{tpu_custom_call.1} parent=47 // pred_region
          %s5565 = smul.u32 32, %s34
          %s5567 = ssub.s32 4096, 4096
          %5568 = vsyncadd %s5553, %s5567
          %s5569 = smul.addr %s5565, 128
          %s5570 = scalar_lea.hbm %s7, %s5569
          %s5571 = sshll.u32 %s5556, 4
          %s5572 = int_to_ptr.vmem [resolvable:$true] %s5571
          %5577 = dma.vmem_to_hbm [thread:$0]  %s5572, 4096, %s5570, %s5553, 128, 128, 8
        $region80: #{tpu_custom_call.1} parent=47 // pred_fallthru
          _
        // Predicated region
        $region81: #{tpu_custom_call.1} parent=47 // pred_check
          %p5578 = pneg %p258
        $region82: #{tpu_custom_call.1} parent=47 // pred_check_branch
          %5580 = sbr.rel (%p5578) target = $region84
        $region83: #{tpu_custom_call.1} parent=47 // pred_region
          %s5581 = smul.u32 32, %s34
          %s5583 = ssub.s32 4096, 4096
          %5584 = vsyncadd %s5558, %s5583
          %s5585 = smul.addr %s5581, 128
          %s5586 = scalar_lea.hbm %s8, %s5585
          %s5587 = sshll.u32 %s5561, 4
          %s5588 = int_to_ptr.vmem [resolvable:$true] %s5587
          %5593 = dma.vmem_to_hbm [thread:$0]  %s5588, 4096, %s5586, %s5558, 128, 128, 8
        $region84: #{tpu_custom_call.1} parent=47 // pred_fallthru
          _
      $region48: #{tpu_custom_call.1} parent=5 // pred_fallthru
        _
      %p5594 = scmp.le.s32.totalorder 2, %s25
      // Predicated region
      $region85: #{tpu_custom_call.1} parent=5 // pred_check
        %p5595 = pneg %p5594
      $region86: #{tpu_custom_call.1} parent=5 // pred_check_branch
        %5597 = sbr.rel (%p5595) target = $region88
      $region87: #{tpu_custom_call.1} parent=5 // pred_region
        %s5598 = ssub.s32 %s25, 2
        // Predicated region
        $region89: #{tpu_custom_call.1} parent=87 // pred_check
          %p5599 = pneg %p238
        $region90: #{tpu_custom_call.1} parent=87 // pred_check_branch
          %5601 = sbr.rel (%p5599) target = $region92
        $region91: #{tpu_custom_call.1} parent=87 // pred_region
          %s5602 = sand.u32 %s223, 1
          %s5603 = scalar_lea.sflag [#allocation7], %s5602
          %s5604 = sand.u32 %s223, 1
          %s5605 = smul.addr %s5604, 256
          %s5606 = scalar_lea.vmem [#allocation11], %s5605
          %5607 = dma.done %s5603, 4096
        $region92: #{tpu_custom_call.1} parent=87 // pred_fallthru
          _
        // Predicated region
        $region93: #{tpu_custom_call.1} parent=87 // pred_check
          %p5608 = pneg %p264
        $region94: #{tpu_custom_call.1} parent=87 // pred_check_branch
          %5610 = sbr.rel (%p5608) target = $region96
        $region95: #{tpu_custom_call.1} parent=87 // pred_region
          %s5611 = sand.u32 %s249, 1
          %s5612 = scalar_lea.sflag [#allocation13], %s5611
          %s5613 = sand.u32 %s249, 1
          %s5614 = smul.addr %s5613, 256
          %s5615 = scalar_lea.vmem [#allocation12], %s5614
          %5616 = dma.done %s5612, 4096
        $region96: #{tpu_custom_call.1} parent=87 // pred_fallthru
          _
      $region88: #{tpu_custom_call.1} parent=5 // pred_fallthru
        _
    $region6: #{tpu_custom_call.1} parent=1 // loop_footer
      %s29 = sadd.s32 1, %s25
    $region7: #{tpu_custom_call.1} parent=1 // loop_footer_branch
      %24 = sbr.rel target = $region3
    $region8: #{tpu_custom_call.1} parent=1 // loop_exit
      _
    %5617 = vsyncpa [#allocation6], 1
    %s5618 = scalar_lea.sflag [#allocation6], 1
    %5619 = vsyncpa %s5618, 1
    %5620 = vsyncpa [#allocation9], 1
    %5621 = vsyncpa [#allocation7], 1
    %s5622 = scalar_lea.sflag [#allocation7], 1
    %5623 = vsyncpa %s5622, 1
    %5624 = vsyncpa [#allocation13], 1
    %s5625 = scalar_lea.sflag [#allocation13], 1
    %5626 = vsyncpa %s5625, 1

</llo_original>
